<compile_context>
chip_gen: v7x
topology: tpu7x:2x2x1
jax: 0.10.0
libtpu: 0.0.40
codegen_flags: <defaults>
</compile_context>

<pallas_src>
import jax
import jax.numpy as jnp
import numpy as np
from jax.experimental import pallas as pl
from jax.experimental.pallas import tpu as pltpu

# ----------------------------- configuration --------------------------------
DATA_SIZE = 1                 # output channels (less time); the module's
                              # _initial/_readout layers require DATA_SIZE == 1
DIM = 1 + DATA_SIZE           # path channels (time + data)
NOISE_SIZE = 3
HIDDEN = 16                   # SDE hidden size
MLP_SIZE = 32
NUM_LAYERS = 2                # -> 3 linear layers per MLP (structure hard-coded)
CDE_HIDDEN = 16
CDE_MLP = 32
CDE_LAYERS = 2
TSCALE = 1.0
CDE_DT_SCALE = 1.0


def _lipswish(x):
    return 0.909 * x * (1.0 / (1.0 + jnp.exp(-x)))


# --------------------------- weight slab packing ------------------------------
def _pack_slab(entries):
    """Pack (name, 2-D array) entries into one (R, 128) f32 slab.

    Each entry is 8-row aligned and starts at column 0 so the in-kernel static
    slices never straddle an (8, 128) tile in an awkward way; the whole slab is
    a single DMA instead of ~29 tiny per-weight DMAs.
    """
    layout = {}
    blocks = []
    row = 0
    for name, arr in entries:
        arr = np.asarray(arr, np.float32)
        assert arr.ndim == 2 and arr.shape[1] <= 128, (name, arr.shape)
        rows, cols = arr.shape
        rpad = ((rows + 7) // 8) * 8
        buf = np.zeros((rpad, 128), np.float32)
        buf[:rows, :cols] = arr
        layout[name] = (row, rows, cols)
        blocks.append(buf)
        row += rpad
    slab = np.concatenate(blocks, axis=0)
    return jnp.asarray(slab), layout


# --------------------- fused generator kernel (grid = (1,)) ------------------
def make_generator_kernel(B, length, path_len, layout):
    dt_cde = float(path_len - 1) * CDE_DT_SCALE
    t_end = float(path_len - 1)

    def kernel(ts_ref, dWe_ref, xT_ref, Y0_ref, dX0_ref, dXT_ref, slab_ref,
               out_ref, ys_scratch):
        # static slices into the packed weight slab (hoisted, loaded once)
        def W(name):
            r0, rows, cols = layout[name]
            return slab_ref[r0:r0 + rows, 0:cols]

        A1, a1 = W("A1"), W("a1")
        A2, a2 = W("A2"), W("a2")
        A3, a3 = W("A3"), W("a3")
        Ft, Fh, fb1 = W("Ft"), W("Fh"), W("fb1")
        F2, f2b = W("F2"), W("f2b")
        F3, f3 = W("F3g"), W("f3g")
        R_row, rb = W("R_row"), W("rb")
        Wt_c, Wx_c, Wc_c, b1_c = W("Wt_c"), W("Wx_c"), W("Wc_c"), W("b1_c")
        W2b, b2_c = W("W2b"), W("b2_c")
        W3b, b3_c = W("W3b"), W("b3_c")
        Wi_x, Wi_c, bi = W("Wi_x"), W("Wi_c"), W("bi")
        wro_h_row, Wro_c, bro = W("wro_h_row"), W("Wro_c"), W("bro")

        # ------------------ NeuralCDE prologue -> c0 ------------------------
        # initial MLP (tanh=False); first layer has K = DIM = 2 -> do it on the
        # VPU as broadcast-mul-adds instead of a degenerate MXU dot.
        Y0 = Y0_ref[...]
        h_pre = a1
        for d in range(DIM):
            h_pre = h_pre + Y0[:, d:d + 1] * A1[d:d + 1, :]
        h = _lipswish(h_pre)
        h = _lipswish(jnp.dot(h, A2, preferred_element_type=jnp.float32) + a2)
        h0 = jnp.dot(h, A3, preferred_element_type=jnp.float32) + a3

        def cde_vf(t, hstate, dX):
            # CDE vector field: MLP([t, h]) viewed (B, chid, dim) contracted
            # with dX, via one fused (B, cmlp) @ (cmlp, chid*dim) chain.
            hh = _lipswish(jnp.dot(hstate, Fh, preferred_element_type=jnp.float32)
                           + t * Ft + fb1)
            hh = _lipswish(jnp.dot(hh, F2, preferred_element_type=jnp.float32)
                           + f2b)
            m = jnp.tanh(jnp.dot(hh, F3, preferred_element_type=jnp.float32) + f3)
            acc = m[:, 0:CDE_HIDDEN] * dX[:, 0:1]
            for d in range(1, DIM):
                acc = acc + m[:, d * CDE_HIDDEN:(d + 1) * CDE_HIDDEN] * dX[:, d:d + 1]
            return acc

        # single reversible-Heun step over [0, t_end] with zero diffusion
        f0c = cde_vf(0.0, h0, dX0_ref[...])
        zc = h0 + f0c * dt_cde                         # z0 == h0
        f1c = cde_vf(t_end, zc, dXT_ref[...])
        hT = h0 + 0.5 * dt_cde * (f0c + f1c)
        # CDE readout (16 -> 1): VPU mul + lane reduce, not an N=1 MXU dot
        c0 = jnp.sum(hT * R_row, axis=-1, keepdims=True) + rb       # (B, 1)

        # ------------- hoisted c0-dependent constants -----------------------
        bias1 = c0 * Wc_c + b1_c                       # (B, 2*MLP), n_conditions == 1
        # SDE readout c0 term, spread over HIDDEN lanes so the final lane
        # reduce folds it back in (avoids any in-loop / transpose work).
        ro_spread = (c0 * Wro_c + bro) * (1.0 / float(HIDDEN))       # (B, 1)

        def fg(t, x):
            # fused drift || diffusion MLP: one matmul chain, one act / layer
            h1 = _lipswish(jnp.dot(x, Wx_c, preferred_element_type=jnp.float32)
                           + t * Wt_c + bias1)
            h2 = _lipswish(jnp.dot(h1, W2b, preferred_element_type=jnp.float32)
                           + b2_c)
            o = TSCALE * jnp.tanh(jnp.dot(h2, W3b,
                                          preferred_element_type=jnp.float32) + b3_c)
            # cols [0:H) = drift, cols [H + n*H, H + (n+1)*H) = diffusion noise n
            return o[:, :HIDDEN], o[:, HIDDEN:]

        def g_prod(gd, dwE):
            # dW pre-expanded host-side to match g's column grouping:
            # pure aligned elementwise multiply + (NOISE-1) adds.
            p = gd * dwE
            acc = p[:, 0:HIDDEN]
            for n in range(1, NOISE_SIZE):
                acc = acc + p[:, n * HIDDEN:(n + 1) * HIDDEN]
            return acc

        # ----------------------- SDE init (t = ts[0]) -----------------------
        # h0 = self._initial(cat([xT, c0]))  [DATA_SIZE == 1, n_conditions == 1]
        y = xT_ref[...] * Wi_x + c0 * Wi_c + bi                      # (B, HIDDEN)
        z = y
        f, g = fg(ts_ref[0], y)
        ys_scratch[0] = y

        # ---- unrolled reversible-Heun (Stratonovich) time loop ----
        # TODO(synk): for large `length` switch to lax.fori_loop(..., unroll=k)
        #             (or a time grid axis) to bound vreg live ranges; length
        #             here is tiny & static so full unroll is best.
        for i in range(1, length):
            dt = ts_ref[i] - ts_ref[i - 1]
            dwE = dWe_ref[i - 1]                                     # (B, NOISE*H)
            z1 = 2.0 * y - z + f * dt + g_prod(g, dwE)
            f1, g1 = fg(ts_ref[i], z1)
            y = y + 0.5 * dt * (f + f1) + 0.5 * g_prod(g + g1, dwE)
            z, f, g = z1, f1, g1
            ys_scratch[i] = y

        # ---- batched readout (hoisted) + single lane-dense store ----
        # ys[l, b] = sum_h y_l[b,h]*Wro_h[h] + c0[b]*Wro_c + bro
        ys_all = ys_scratch[...]                                     # (L, B, H)
        out_ref[...] = jnp.sum(ys_all * wro_h_row + ro_spread[None], axis=-1)

    return kernel


def generator_call(ts, dW_expanded, xT, Y0, dX0, dXT, slab, layout, path_len):
    length = ts.shape[0]
    B = xT.shape[0]
    kernel = make_generator_kernel(B, length, path_len, layout)

    def zero_map(ndim):
        return lambda i, _n=ndim: (0,) * _n

    data_in = [dW_expanded, xT, Y0, dX0, dXT, slab]
    in_specs = [pl.BlockSpec(memory_space=pltpu.MemorySpace.SMEM)]    # ts
    in_specs += [pl.BlockSpec(a.shape, zero_map(a.ndim)) for a in data_in]
    out_spec = pl.BlockSpec((length, B), lambda i: (0, 0))

    return pl.pallas_call(
        kernel,
        out_shape=jax.ShapeDtypeStruct((length, B), jnp.float32),
        grid_spec=pltpu.PrefetchScalarGridSpec(
            num_scalar_prefetch=0, grid=(1,),
            in_specs=in_specs, out_specs=out_spec,
            scratch_shapes=[pltpu.VMEM((length, B, HIDDEN), jnp.float32)]),
        compiler_params=pltpu.CompilerParams(
            dimension_semantics=("arbitrary",)),
    )(ts, dW_expanded, xT, Y0, dX0, dXT, slab)


# ----------------------------- parameter setup -------------------------------
def init_params(key):
    assert DATA_SIZE == 1
    keys = jax.random.split(key, 15)

    def linear(k, fin, fout):
        kw, kb = jax.random.split(k)
        bound = 1.0 / np.sqrt(fin)
        Wm = jax.random.uniform(kw, (fin, fout), jnp.float32, -bound, bound)
        bv = jax.random.uniform(kb, (1, fout), jnp.float32, -bound, bound)
        return np.asarray(Wm), np.asarray(bv)

    def blockdiag(A, Bm):
        r1, c1 = A.shape
        r2, c2 = Bm.shape
        out = np.zeros((r1 + r2, c1 + c2), np.float32)
        out[:r1, :c1] = A
        out[r1:, c1:] = Bm
        return out

    d_in = 2 + HIDDEN                      # cat([t, x, c0])

    # drift MLP: (1 + hidden + 1) -> hidden
    W1, b1 = linear(keys[0], d_in, MLP_SIZE)
    W2, b2 = linear(keys[1], MLP_SIZE, MLP_SIZE)
    W3, b3 = linear(keys[2], MLP_SIZE, HIDDEN)
    # diffusion MLP: (1 + hidden + 1) -> hidden * noise
    V1, c1 = linear(keys[3], d_in, MLP_SIZE)
    V2, c2 = linear(keys[4], MLP_SIZE, MLP_SIZE)
    V3, c3 = linear(keys[5], MLP_SIZE, HIDDEN * NOISE_SIZE)
    # regroup diffusion final layer so the columns of noise n are contiguous
    # (torch .view(B, hidden, noise): output col j -> h = j // noise, n = j % noise)
    V3g = np.concatenate([V3[:, n::NOISE_SIZE] for n in range(NOISE_SIZE)], axis=1)
    c3g = np.concatenate([c3[:, n::NOISE_SIZE] for n in range(NOISE_SIZE)], axis=1)

    # fuse drift || diffusion: layer 1 concatenated, layers 2/3 block-diagonal
    Wt_c = np.concatenate([W1[0:1], V1[0:1]], axis=1)                       # (1, 2M)
    Wx_c = np.concatenate([W1[1:1 + HIDDEN], V1[1:1 + HIDDEN]], axis=1)     # (H, 2M)
    Wc_c = np.concatenate([W1[1 + HIDDEN:2 + HIDDEN],
                           V1[1 + HIDDEN:2 + HIDDEN]], axis=1)              # (1, 2M)
    b1_c = np.concatenate([b1, c1], axis=1)                                 # (1, 2M)
    W2b = blockdiag(W2, V2)                                                 # (2M, 2M)
    b2_c = np.concatenate([b2, c2], axis=1)
    W3b = blockdiag(W3, V3g)                                                # (2M, H + H*NOISE)
    b3_c = np.concatenate([b3, c3g], axis=1)

    # self._initial: Linear(initial_noise_size(=1) + n_conditions(=1), hidden)
    Wi, bi = linear(keys[6], 2, HIDDEN)
    Wi_x, Wi_c = Wi[0:1], Wi[1:2]

    # self._readout: Linear(hidden + 1, data_size); kept as a row vector for
    # the batched VPU readout (DATA_SIZE == 1)
    Wro, bro = linear(keys[7], HIDDEN + 1, DATA_SIZE)
    wro_h_row = Wro[:HIDDEN].T                                              # (1, H)
    Wro_c = Wro[HIDDEN:HIDDEN + 1].T                                        # (1, 1)

    # NeuralCDE initial MLP: (1 + data_size) -> cde_hidden, tanh=False
    A1, a1 = linear(keys[8], DIM, CDE_MLP)
    A2, a2 = linear(keys[9], CDE_MLP, CDE_MLP)
    A3, a3 = linear(keys[10], CDE_MLP, CDE_HIDDEN)

    # NeuralCDE func MLP: (1 + cde_hidden) -> cde_hidden * (1 + data_size)
    F1, f1b = linear(keys[11], 1 + CDE_HIDDEN, CDE_MLP)
    F2, f2b = linear(keys[12], CDE_MLP, CDE_MLP)
    F3, f3b = linear(keys[13], CDE_MLP, CDE_HIDDEN * DIM)
    # regroup so the cde_hidden columns of path channel d are contiguous
    F3g = np.concatenate([F3[:, d::DIM] for d in range(DIM)], axis=1)
    f3g = np.concatenate([f3b[:, d::DIM] for d in range(DIM)], axis=1)
    Ft, Fh, fb1 = F1[0:1], F1[1:1 + CDE_HIDDEN], f1b

    # NeuralCDE readout: Linear(cde_hidden, data_size) as a row vector
    R, rb = linear(keys[14], CDE_HIDDEN, DATA_SIZE)
    R_row = R.T                                                             # (1, CH)

    entries = [
        ("A1", A1), ("a1", a1), ("A2", A2), ("a2", a2), ("A3", A3), ("a3", a3),
        ("Ft", Ft), ("Fh", Fh), ("fb1", fb1), ("F2", F2), ("f2b", f2b),
        ("F3g", F3g), ("f3g", f3g), ("R_row", R_row), ("rb", rb),
        ("Wt_c", Wt_c), ("Wx_c", Wx_c), ("Wc_c", Wc_c), ("b1_c", b1_c),
        ("W2b", W2b), ("b2_c", b2_c), ("W3b", W3b), ("b3_c", b3_c),
        ("Wi_x", Wi_x), ("Wi_c", Wi_c), ("bi", bi),
        ("wro_h_row", wro_h_row), ("Wro_c", Wro_c), ("bro", bro),
    ]
    return _pack_slab(entries)


# -------------------------------- forward ------------------------------------
def path_conditional_cde_generator_forward(ts, paths, emp_size, slab, layout,
                                           bm_key):
    batch_size, path_len, dim = paths.shape
    length = ts.shape[0]
    assert length >= 2 and dim == DIM
    B = batch_size * emp_size

    paths_rep = jnp.repeat(paths, emp_size, axis=0)              # repeat_interleave
    xT = paths_rep[:, -1, 1:]                                    # (B, data_size)
    Y0 = paths_rep[:, 0, :]                                      # (B, dim)
    # linear-interpolation derivatives of the control path at the interval ends
    dX0 = paths_rep[:, 1, :] - paths_rep[:, 0, :]
    dXT = paths_rep[:, -1, :] - paths_rep[:, -2, :]

    # Brownian increments over each [ts[i-1], ts[i]] (variance = dt), pre-
    # expanded so the in-kernel g.dW contraction is an aligned elementwise mul
    # (column n*HIDDEN + h of the expanded tensor == dW[..., n]).
    dts = jnp.diff(ts)
    eps = jax.random.normal(bm_key, (length - 1, B, NOISE_SIZE), jnp.float32)
    dW = eps * jnp.sqrt(dts)[:, None, None]
    dW_expanded = jnp.repeat(dW, HIDDEN, axis=2)                 # (L-1, B, NOISE*H)

    ys = generator_call(ts.astype(jnp.float32), dW_expanded, xT, Y0, dX0, dXT,
                        slab, layout, path_len)                  # (length, B)
    ys = jnp.transpose(ys, (1, 0))[:, :, None]                   # (B, length, 1)

    ts_exp = jnp.broadcast_to(ts[None, :, None], (B, length, 1))
    # torchcde.linear_interpolation_coeffs == identity for NaN-free input
    yhat = jnp.concatenate([ts_exp, ys], axis=2)                 # (B, length, dim)
    return yhat.reshape(batch_size, emp_size, length, DIM)


# ---------------------------------- main --------------------------------------
if __name__ == "__main__":
    key = jax.random.PRNGKey(0)
    k_path, k_param, k_bm = jax.random.split(key, 3)

    batch_size, emp_size = 2, 2
    path_len = 8            # length of the conditioning paths
    length = 8              # number of generated time points

    ts = jnp.linspace(0.0, 1.0, length).astype(jnp.float32)
    path_time = jnp.broadcast_to(jnp.linspace(0.0, 1.0, path_len)[None, :, None],
                                 (batch_size, path_len, 1)).astype(jnp.float32)
    path_data = 0.1 * jax.random.normal(k_path, (batch_size, path_len, DATA_SIZE),
                                        jnp.float32)
    paths = jnp.concatenate([path_time, path_data], axis=2)      # (batch, L, 1+data)

    slab, layout = init_params(k_param)

    out = path_conditional_cde_generator_forward(ts, paths, emp_size, slab,
                                                 layout, k_bm)
    out = jax.block_until_ready(out)

    assert out.shape == (batch_size, emp_size, length, DIM), out.shape
    assert bool(jnp.all(jnp.isfinite(out)))
    print("KERNEL_OK")
</pallas_src>

<mosaic_0001>
module attributes {stable_mosaic.version = 11 : i64} {
  func.func @kernel(%arg0: i32, %arg1: memref<8xf32, #tpu.memory_space<smem>>, %arg2: memref<7x4x48xf32, #tpu.memory_space<vmem>>, %arg3: memref<4x1xf32, #tpu.memory_space<vmem>>, %arg4: memref<4x2xf32, #tpu.memory_space<vmem>>, %arg5: memref<4x2xf32, #tpu.memory_space<vmem>>, %arg6: memref<4x2xf32, #tpu.memory_space<vmem>>, %arg7: memref<456x128xf32, #tpu.memory_space<vmem>>, %arg8: memref<8x4xf32, #tpu.memory_space<vmem>>, %arg9: memref<8x4x16xf32, #tpu.memory_space<vmem>>) attributes {dimension_semantics = [#tpu.dimension_semantics<arbitrary>], iteration_bounds = array<i64: 1>, scalar_prefetch = 0 : i64, scratch_operands = 1 : i64, tpu.core_type = #tpu.core_type<tc>, window_params = [{transform_indices = @transform_0, window_bounds = array<i64: 8>}, {pipeline_mode = #tpu.pipeline_mode<synchronous>, transform_indices = @transform_1, window_bounds = array<i64: 7, 4, 48>}, {pipeline_mode = #tpu.pipeline_mode<synchronous>, transform_indices = @transform_2, window_bounds = array<i64: 4, 1>}, {pipeline_mode = #tpu.pipeline_mode<synchronous>, transform_indices = @transform_3, window_bounds = array<i64: 4, 2>}, {pipeline_mode = #tpu.pipeline_mode<synchronous>, transform_indices = @transform_4, window_bounds = array<i64: 4, 2>}, {pipeline_mode = #tpu.pipeline_mode<synchronous>, transform_indices = @transform_5, window_bounds = array<i64: 4, 2>}, {pipeline_mode = #tpu.pipeline_mode<synchronous>, transform_indices = @transform_6, window_bounds = array<i64: 456, 128>}, {pipeline_mode = #tpu.pipeline_mode<synchronous>, transform_indices = @transform_7, window_bounds = array<i64: 8, 4>}]} {
    %c0 = arith.constant 0 : index
    %c0_0 = arith.constant 0 : index
    %0 = vector.load %arg7[%c0, %c0_0] : memref<456x128xf32, #tpu.memory_space<vmem>>, vector<2x32xf32>
    %c8 = arith.constant 8 : index
    %c0_1 = arith.constant 0 : index
    %1 = vector.load %arg7[%c8, %c0_1] : memref<456x128xf32, #tpu.memory_space<vmem>>, vector<1x32xf32>
    %c16 = arith.constant 16 : index
    %c0_2 = arith.constant 0 : index
    %2 = vector.load %arg7[%c16, %c0_2] : memref<456x128xf32, #tpu.memory_space<vmem>>, vector<32x32xf32>
    %c48 = arith.constant 48 : index
    %c0_3 = arith.constant 0 : index
    %3 = vector.load %arg7[%c48, %c0_3] : memref<456x128xf32, #tpu.memory_space<vmem>>, vector<1x32xf32>
    %c56 = arith.constant 56 : index
    %c0_4 = arith.constant 0 : index
    %4 = vector.load %arg7[%c56, %c0_4] : memref<456x128xf32, #tpu.memory_space<vmem>>, vector<32x16xf32>
    %c88 = arith.constant 88 : index
    %c0_5 = arith.constant 0 : index
    %5 = vector.load %arg7[%c88, %c0_5] : memref<456x128xf32, #tpu.memory_space<vmem>>, vector<1x16xf32>
    %c96 = arith.constant 96 : index
    %c0_6 = arith.constant 0 : index
    %6 = vector.load %arg7[%c96, %c0_6] : memref<456x128xf32, #tpu.memory_space<vmem>>, vector<1x32xf32>
    %c104 = arith.constant 104 : index
    %c0_7 = arith.constant 0 : index
    %7 = vector.load %arg7[%c104, %c0_7] : memref<456x128xf32, #tpu.memory_space<vmem>>, vector<16x32xf32>
    %c120 = arith.constant 120 : index
    %c0_8 = arith.constant 0 : index
    %8 = vector.load %arg7[%c120, %c0_8] : memref<456x128xf32, #tpu.memory_space<vmem>>, vector<1x32xf32>
    %c128 = arith.constant 128 : index
    %c0_9 = arith.constant 0 : index
    %9 = vector.load %arg7[%c128, %c0_9] : memref<456x128xf32, #tpu.memory_space<vmem>>, vector<32x32xf32>
    %c160 = arith.constant 160 : index
    %c0_10 = arith.constant 0 : index
    %10 = vector.load %arg7[%c160, %c0_10] : memref<456x128xf32, #tpu.memory_space<vmem>>, vector<1x32xf32>
    %c168 = arith.constant 168 : index
    %c0_11 = arith.constant 0 : index
    %11 = vector.load %arg7[%c168, %c0_11] : memref<456x128xf32, #tpu.memory_space<vmem>>, vector<32x32xf32>
    %c200 = arith.constant 200 : index
    %c0_12 = arith.constant 0 : index
    %12 = vector.load %arg7[%c200, %c0_12] : memref<456x128xf32, #tpu.memory_space<vmem>>, vector<1x32xf32>
    %c208 = arith.constant 208 : index
    %c0_13 = arith.constant 0 : index
    %13 = vector.load %arg7[%c208, %c0_13] : memref<456x128xf32, #tpu.memory_space<vmem>>, vector<1x16xf32>
    %c216 = arith.constant 216 : index
    %c0_14 = arith.constant 0 : index
    %14 = vector.load %arg7[%c216, %c0_14] : memref<456x128xf32, #tpu.memory_space<vmem>>, vector<1x1xf32>
    %c224 = arith.constant 224 : index
    %c0_15 = arith.constant 0 : index
    %15 = vector.load %arg7[%c224, %c0_15] : memref<456x128xf32, #tpu.memory_space<vmem>>, vector<1x64xf32>
    %c232 = arith.constant 232 : index
    %c0_16 = arith.constant 0 : index
    %16 = vector.load %arg7[%c232, %c0_16] : memref<456x128xf32, #tpu.memory_space<vmem>>, vector<16x64xf32>
    %c248 = arith.constant 248 : index
    %c0_17 = arith.constant 0 : index
    %17 = vector.load %arg7[%c248, %c0_17] : memref<456x128xf32, #tpu.memory_space<vmem>>, vector<1x64xf32>
    %c256 = arith.constant 256 : index
    %c0_18 = arith.constant 0 : index
    %18 = vector.load %arg7[%c256, %c0_18] : memref<456x128xf32, #tpu.memory_space<vmem>>, vector<1x64xf32>
    %c264 = arith.constant 264 : index
    %c0_19 = arith.constant 0 : index
    %19 = vector.load %arg7[%c264, %c0_19] : memref<456x128xf32, #tpu.memory_space<vmem>>, vector<64x64xf32>
    %c328 = arith.constant 328 : index
    %c0_20 = arith.constant 0 : index
    %20 = vector.load %arg7[%c328, %c0_20] : memref<456x128xf32, #tpu.memory_space<vmem>>, vector<1x64xf32>
    %c336 = arith.constant 336 : index
    %c0_21 = arith.constant 0 : index
    %21 = vector.load %arg7[%c336, %c0_21] : memref<456x128xf32, #tpu.memory_space<vmem>>, vector<64x64xf32>
    %c400 = arith.constant 400 : index
    %c0_22 = arith.constant 0 : index
    %22 = vector.load %arg7[%c400, %c0_22] : memref<456x128xf32, #tpu.memory_space<vmem>>, vector<1x64xf32>
    %c408 = arith.constant 408 : index
    %c0_23 = arith.constant 0 : index
    %23 = vector.load %arg7[%c408, %c0_23] : memref<456x128xf32, #tpu.memory_space<vmem>>, vector<1x16xf32>
    %c416 = arith.constant 416 : index
    %c0_24 = arith.constant 0 : index
    %24 = vector.load %arg7[%c416, %c0_24] : memref<456x128xf32, #tpu.memory_space<vmem>>, vector<1x16xf32>
    %c424 = arith.constant 424 : index
    %c0_25 = arith.constant 0 : index
    %25 = vector.load %arg7[%c424, %c0_25] : memref<456x128xf32, #tpu.memory_space<vmem>>, vector<1x16xf32>
    %c432 = arith.constant 432 : index
    %c0_26 = arith.constant 0 : index
    %26 = vector.load %arg7[%c432, %c0_26] : memref<456x128xf32, #tpu.memory_space<vmem>>, vector<1x16xf32>
    %c440 = arith.constant 440 : index
    %c0_27 = arith.constant 0 : index
    %27 = vector.load %arg7[%c440, %c0_27] : memref<456x128xf32, #tpu.memory_space<vmem>>, vector<1x1xf32>
    %c448 = arith.constant 448 : index
    %c0_28 = arith.constant 0 : index
    %28 = vector.load %arg7[%c448, %c0_28] : memref<456x128xf32, #tpu.memory_space<vmem>>, vector<1x1xf32>
    %c0_29 = arith.constant 0 : index
    %c0_30 = arith.constant 0 : index
    %29 = vector.load %arg4[%c0_29, %c0_30] : memref<4x2xf32, #tpu.memory_space<vmem>>, vector<4x2xf32>
    %30 = vector.extract_strided_slice %29 {offsets = [0, 0], sizes = [4, 1], strides = [1, 1]} : vector<4x2xf32> to vector<4x1xf32>
    %31 = vector.extract_strided_slice %0 {offsets = [0, 0], sizes = [1, 32], strides = [1, 1]} : vector<2x32xf32> to vector<1x32xf32>
    %32 = vector.broadcast %30 : vector<4x1xf32> to vector<4x32xf32>
    %33 = vector.broadcast %31 : vector<1x32xf32> to vector<4x32xf32>
    %34 = arith.mulf %32, %33 : vector<4x32xf32>
    %35 = vector.broadcast %1 : vector<1x32xf32> to vector<4x32xf32>
    %36 = arith.addf %35, %34 : vector<4x32xf32>
    %37 = vector.extract_strided_slice %29 {offsets = [0, 1], sizes = [4, 1], strides = [1, 1]} : vector<4x2xf32> to vector<4x1xf32>
    %38 = vector.extract_strided_slice %0 {offsets = [1, 0], sizes = [1, 32], strides = [1, 1]} : vector<2x32xf32> to vector<1x32xf32>
    %39 = vector.broadcast %37 : vector<4x1xf32> to vector<4x32xf32>
    %40 = vector.broadcast %38 : vector<1x32xf32> to vector<4x32xf32>
    %41 = arith.mulf %39, %40 : vector<4x32xf32>
    %42 = arith.addf %36, %41 : vector<4x32xf32>
    %cst = arith.constant 0.908999979 : f32
    %43 = vector.broadcast %cst : f32 to vector<4x32xf32>
    %44 = arith.mulf %43, %42 : vector<4x32xf32>
    %cst_31 = arith.constant 0.000000e+00 : f32
    %45 = vector.broadcast %cst_31 : f32 to vector<4x32xf32>
    %46 = arith.subf %45, %42 : vector<4x32xf32>
    %47 = math.exp %46 : vector<4x32xf32>
    %cst_32 = arith.constant 1.000000e+00 : f32
    %48 = vector.broadcast %cst_32 : f32 to vector<4x32xf32>
    %49 = arith.addf %48, %47 : vector<4x32xf32>
    %cst_33 = arith.constant 1.000000e+00 : f32
    %50 = vector.broadcast %cst_33 : f32 to vector<4x32xf32>
    %51 = arith.divf %50, %49 : vector<4x32xf32>
    %52 = arith.mulf %44, %51 : vector<4x32xf32>
    %cst_34 = arith.constant dense<0.000000e+00> : vector<4x32xf32>
    %53 = tpu.matmul %52, %2, %cst_34 {dimension_numbers = #tpu.dot_dimension_numbers<[1], [0], [0], [1], [0, 0, 1, 1], [], []>} : vector<4x32xf32>, vector<32x32xf32>, vector<4x32xf32> -> vector<4x32xf32>
    %54 = vector.broadcast %3 : vector<1x32xf32> to vector<4x32xf32>
    %55 = arith.addf %53, %54 : vector<4x32xf32>
    %cst_35 = arith.constant 0.908999979 : f32
    %56 = vector.broadcast %cst_35 : f32 to vector<4x32xf32>
    %57 = arith.mulf %56, %55 : vector<4x32xf32>
    %cst_36 = arith.constant 0.000000e+00 : f32
    %58 = vector.broadcast %cst_36 : f32 to vector<4x32xf32>
    %59 = arith.subf %58, %55 : vector<4x32xf32>
    %60 = math.exp %59 : vector<4x32xf32>
    %cst_37 = arith.constant 1.000000e+00 : f32
    %61 = vector.broadcast %cst_37 : f32 to vector<4x32xf32>
    %62 = arith.addf %61, %60 : vector<4x32xf32>
    %cst_38 = arith.constant 1.000000e+00 : f32
    %63 = vector.broadcast %cst_38 : f32 to vector<4x32xf32>
    %64 = arith.divf %63, %62 : vector<4x32xf32>
    %65 = arith.mulf %57, %64 : vector<4x32xf32>
    %cst_39 = arith.constant dense<0.000000e+00> : vector<4x16xf32>
    %66 = tpu.matmul %65, %4, %cst_39 {dimension_numbers = #tpu.dot_dimension_numbers<[1], [0], [0], [1], [0, 0, 1, 1], [], []>} : vector<4x32xf32>, vector<32x16xf32>, vector<4x16xf32> -> vector<4x16xf32>
    %67 = vector.broadcast %5 : vector<1x16xf32> to vector<4x16xf32>
    %68 = arith.addf %66, %67 : vector<4x16xf32>
    %c0_40 = arith.constant 0 : index
    %c0_41 = arith.constant 0 : index
    %69 = vector.load %arg5[%c0_40, %c0_41] : memref<4x2xf32, #tpu.memory_space<vmem>>, vector<4x2xf32>
    %cst_42 = arith.constant dense<0.000000e+00> : vector<4x32xf32>
    %70 = tpu.matmul %68, %7, %cst_42 {dimension_numbers = #tpu.dot_dimension_numbers<[1], [0], [0], [1], [0, 0, 1, 1], [], []>} : vector<4x16xf32>, vector<16x32xf32>, vector<4x32xf32> -> vector<4x32xf32>
    %cst_43 = arith.constant 0.000000e+00 : f32
    %71 = vector.broadcast %cst_43 : f32 to vector<1x32xf32>
    %72 = arith.mulf %71, %6 : vector<1x32xf32>
    %73 = vector.broadcast %72 : vector<1x32xf32> to vector<4x32xf32>
    %74 = arith.addf %70, %73 : vector<4x32xf32>
    %75 = vector.broadcast %8 : vector<1x32xf32> to vector<4x32xf32>
    %76 = arith.addf %74, %75 : vector<4x32xf32>
    %cst_44 = arith.constant 0.908999979 : f32
    %77 = vector.broadcast %cst_44 : f32 to vector<4x32xf32>
    %78 = arith.mulf %77, %76 : vector<4x32xf32>
    %cst_45 = arith.constant 0.000000e+00 : f32
    %79 = vector.broadcast %cst_45 : f32 to vector<4x32xf32>
    %80 = arith.subf %79, %76 : vector<4x32xf32>
    %81 = math.exp %80 : vector<4x32xf32>
    %cst_46 = arith.constant 1.000000e+00 : f32
    %82 = vector.broadcast %cst_46 : f32 to vector<4x32xf32>
    %83 = arith.addf %82, %81 : vector<4x32xf32>
    %cst_47 = arith.constant 1.000000e+00 : f32
    %84 = vector.broadcast %cst_47 : f32 to vector<4x32xf32>
    %85 = arith.divf %84, %83 : vector<4x32xf32>
    %86 = arith.mulf %78, %85 : vector<4x32xf32>
    %cst_48 = arith.constant dense<0.000000e+00> : vector<4x32xf32>
    %87 = tpu.matmul %86, %9, %cst_48 {dimension_numbers = #tpu.dot_dimension_numbers<[1], [0], [0], [1], [0, 0, 1, 1], [], []>} : vector<4x32xf32>, vector<32x32xf32>, vector<4x32xf32> -> vector<4x32xf32>
    %88 = vector.broadcast %10 : vector<1x32xf32> to vector<4x32xf32>
    %89 = arith.addf %87, %88 : vector<4x32xf32>
    %cst_49 = arith.constant 0.908999979 : f32
    %90 = vector.broadcast %cst_49 : f32 to vector<4x32xf32>
    %91 = arith.mulf %90, %89 : vector<4x32xf32>
    %cst_50 = arith.constant 0.000000e+00 : f32
    %92 = vector.broadcast %cst_50 : f32 to vector<4x32xf32>
    %93 = arith.subf %92, %89 : vector<4x32xf32>
    %94 = math.exp %93 : vector<4x32xf32>
    %cst_51 = arith.constant 1.000000e+00 : f32
    %95 = vector.broadcast %cst_51 : f32 to vector<4x32xf32>
    %96 = arith.addf %95, %94 : vector<4x32xf32>
    %cst_52 = arith.constant 1.000000e+00 : f32
    %97 = vector.broadcast %cst_52 : f32 to vector<4x32xf32>
    %98 = arith.divf %97, %96 : vector<4x32xf32>
    %99 = arith.mulf %91, %98 : vector<4x32xf32>
    %cst_53 = arith.constant dense<0.000000e+00> : vector<4x32xf32>
    %100 = tpu.matmul %99, %11, %cst_53 {dimension_numbers = #tpu.dot_dimension_numbers<[1], [0], [0], [1], [0, 0, 1, 1], [], []>} : vector<4x32xf32>, vector<32x32xf32>, vector<4x32xf32> -> vector<4x32xf32>
    %101 = vector.broadcast %12 : vector<1x32xf32> to vector<4x32xf32>
    %102 = arith.addf %100, %101 : vector<4x32xf32>
    %103 = math.tanh %102 : vector<4x32xf32>
    %104 = vector.extract_strided_slice %103 {offsets = [0, 0], sizes = [4, 16], strides = [1, 1]} : vector<4x32xf32> to vector<4x16xf32>
    %105 = vector.extract_strided_slice %69 {offsets = [0, 0], sizes = [4, 1], strides = [1, 1]} : vector<4x2xf32> to vector<4x1xf32>
    %106 = vector.broadcast %105 : vector<4x1xf32> to vector<4x16xf32>
    %107 = arith.mulf %104, %106 : vector<4x16xf32>
    %108 = vector.extract_strided_slice %103 {offsets = [0, 16], sizes = [4, 16], strides = [1, 1]} : vector<4x32xf32> to vector<4x16xf32>
    %109 = vector.extract_strided_slice %69 {offsets = [0, 1], sizes = [4, 1], strides = [1, 1]} : vector<4x2xf32> to vector<4x1xf32>
    %110 = vector.broadcast %109 : vector<4x1xf32> to vector<4x16xf32>
    %111 = arith.mulf %108, %110 : vector<4x16xf32>
    %112 = arith.addf %107, %111 : vector<4x16xf32>
    %cst_54 = arith.constant 7.000000e+00 : f32
    %113 = vector.broadcast %cst_54 : f32 to vector<4x16xf32>
    %114 = arith.mulf %112, %113 : vector<4x16xf32>
    %115 = arith.addf %68, %114 : vector<4x16xf32>
    %c0_55 = arith.constant 0 : index
    %c0_56 = arith.constant 0 : index
    %116 = vector.load %arg6[%c0_55, %c0_56] : memref<4x2xf32, #tpu.memory_space<vmem>>, vector<4x2xf32>
    %cst_57 = arith.constant dense<0.000000e+00> : vector<4x32xf32>
    %117 = tpu.matmul %115, %7, %cst_57 {dimension_numbers = #tpu.dot_dimension_numbers<[1], [0], [0], [1], [0, 0, 1, 1], [], []>} : vector<4x16xf32>, vector<16x32xf32>, vector<4x32xf32> -> vector<4x32xf32>
    %cst_58 = arith.constant 7.000000e+00 : f32
    %118 = vector.broadcast %cst_58 : f32 to vector<1x32xf32>
    %119 = arith.mulf %118, %6 : vector<1x32xf32>
    %120 = vector.broadcast %119 : vector<1x32xf32> to vector<4x32xf32>
    %121 = arith.addf %117, %120 : vector<4x32xf32>
    %122 = vector.broadcast %8 : vector<1x32xf32> to vector<4x32xf32>
    %123 = arith.addf %121, %122 : vector<4x32xf32>
    %cst_59 = arith.constant 0.908999979 : f32
    %124 = vector.broadcast %cst_59 : f32 to vector<4x32xf32>
    %125 = arith.mulf %124, %123 : vector<4x32xf32>
    %cst_60 = arith.constant 0.000000e+00 : f32
    %126 = vector.broadcast %cst_60 : f32 to vector<4x32xf32>
    %127 = arith.subf %126, %123 : vector<4x32xf32>
    %128 = math.exp %127 : vector<4x32xf32>
    %cst_61 = arith.constant 1.000000e+00 : f32
    %129 = vector.broadcast %cst_61 : f32 to vector<4x32xf32>
    %130 = arith.addf %129, %128 : vector<4x32xf32>
    %cst_62 = arith.constant 1.000000e+00 : f32
    %131 = vector.broadcast %cst_62 : f32 to vector<4x32xf32>
    %132 = arith.divf %131, %130 : vector<4x32xf32>
    %133 = arith.mulf %125, %132 : vector<4x32xf32>
    %cst_63 = arith.constant dense<0.000000e+00> : vector<4x32xf32>
    %134 = tpu.matmul %133, %9, %cst_63 {dimension_numbers = #tpu.dot_dimension_numbers<[1], [0], [0], [1], [0, 0, 1, 1], [], []>} : vector<4x32xf32>, vector<32x32xf32>, vector<4x32xf32> -> vector<4x32xf32>
    %135 = vector.broadcast %10 : vector<1x32xf32> to vector<4x32xf32>
    %136 = arith.addf %134, %135 : vector<4x32xf32>
    %cst_64 = arith.constant 0.908999979 : f32
    %137 = vector.broadcast %cst_64 : f32 to vector<4x32xf32>
    %138 = arith.mulf %137, %136 : vector<4x32xf32>
    %cst_65 = arith.constant 0.000000e+00 : f32
    %139 = vector.broadcast %cst_65 : f32 to vector<4x32xf32>
    %140 = arith.subf %139, %136 : vector<4x32xf32>
    %141 = math.exp %140 : vector<4x32xf32>
    %cst_66 = arith.constant 1.000000e+00 : f32
    %142 = vector.broadcast %cst_66 : f32 to vector<4x32xf32>
    %143 = arith.addf %142, %141 : vector<4x32xf32>
    %cst_67 = arith.constant 1.000000e+00 : f32
    %144 = vector.broadcast %cst_67 : f32 to vector<4x32xf32>
    %145 = arith.divf %144, %143 : vector<4x32xf32>
    %146 = arith.mulf %138, %145 : vector<4x32xf32>
    %cst_68 = arith.constant dense<0.000000e+00> : vector<4x32xf32>
    %147 = tpu.matmul %146, %11, %cst_68 {dimension_numbers = #tpu.dot_dimension_numbers<[1], [0], [0], [1], [0, 0, 1, 1], [], []>} : vector<4x32xf32>, vector<32x32xf32>, vector<4x32xf32> -> vector<4x32xf32>
    %148 = vector.broadcast %12 : vector<1x32xf32> to vector<4x32xf32>
    %149 = arith.addf %147, %148 : vector<4x32xf32>
    %150 = math.tanh %149 : vector<4x32xf32>
    %151 = vector.extract_strided_slice %150 {offsets = [0, 0], sizes = [4, 16], strides = [1, 1]} : vector<4x32xf32> to vector<4x16xf32>
    %152 = vector.extract_strided_slice %116 {offsets = [0, 0], sizes = [4, 1], strides = [1, 1]} : vector<4x2xf32> to vector<4x1xf32>
    %153 = vector.broadcast %152 : vector<4x1xf32> to vector<4x16xf32>
    %154 = arith.mulf %151, %153 : vector<4x16xf32>
    %155 = vector.extract_strided_slice %150 {offsets = [0, 16], sizes = [4, 16], strides = [1, 1]} : vector<4x32xf32> to vector<4x16xf32>
    %156 = vector.extract_strided_slice %116 {offsets = [0, 1], sizes = [4, 1], strides = [1, 1]} : vector<4x2xf32> to vector<4x1xf32>
    %157 = vector.broadcast %156 : vector<4x1xf32> to vector<4x16xf32>
    %158 = arith.mulf %155, %157 : vector<4x16xf32>
    %159 = arith.addf %154, %158 : vector<4x16xf32>
    %160 = arith.addf %112, %159 : vector<4x16xf32>
    %cst_69 = arith.constant 3.500000e+00 : f32
    %161 = vector.broadcast %cst_69 : f32 to vector<4x16xf32>
    %162 = arith.mulf %161, %160 : vector<4x16xf32>
    %163 = arith.addf %68, %162 : vector<4x16xf32>
    %164 = vector.broadcast %13 : vector<1x16xf32> to vector<4x16xf32>
    %165 = arith.mulf %163, %164 : vector<4x16xf32>
    %cst_70 = arith.constant dense<0.000000e+00> : vector<4xf32>
    %166 = vector.multi_reduction <add>, %165, %cst_70 [1] : vector<4x16xf32> to vector<4xf32>
    %167 = vector.shape_cast %166 : vector<4xf32> to vector<4x1xf32>
    %168 = vector.broadcast %14 : vector<1x1xf32> to vector<4x1xf32>
    %169 = arith.addf %167, %168 : vector<4x1xf32>
    %170 = vector.broadcast %169 : vector<4x1xf32> to vector<4x64xf32>
    %171 = vector.broadcast %17 : vector<1x64xf32> to vector<4x64xf32>
    %172 = arith.mulf %170, %171 : vector<4x64xf32>
    %173 = vector.broadcast %18 : vector<1x64xf32> to vector<4x64xf32>
    %174 = arith.addf %172, %173 : vector<4x64xf32>
    %175 = vector.broadcast %27 : vector<1x1xf32> to vector<4x1xf32>
    %176 = arith.mulf %169, %175 : vector<4x1xf32>
    %177 = vector.broadcast %28 : vector<1x1xf32> to vector<4x1xf32>
    %178 = arith.addf %176, %177 : vector<4x1xf32>
    %cst_71 = arith.constant 6.250000e-02 : f32
    %179 = vector.broadcast %cst_71 : f32 to vector<4x1xf32>
    %180 = arith.mulf %178, %179 : vector<4x1xf32>
    %c0_72 = arith.constant 0 : index
    %c0_73 = arith.constant 0 : index
    %181 = vector.load %arg3[%c0_72, %c0_73] : memref<4x1xf32, #tpu.memory_space<vmem>>, vector<4x1xf32>
    %182 = vector.broadcast %181 : vector<4x1xf32> to vector<4x16xf32>
    %183 = vector.broadcast %23 : vector<1x16xf32> to vector<4x16xf32>
    %184 = arith.mulf %182, %183 : vector<4x16xf32>
    %185 = vector.broadcast %169 : vector<4x1xf32> to vector<4x16xf32>
    %186 = vector.broadcast %24 : vector<1x16xf32> to vector<4x16xf32>
    %187 = arith.mulf %185, %186 : vector<4x16xf32>
    %188 = arith.addf %184, %187 : vector<4x16xf32>
    %189 = vector.broadcast %25 : vector<1x16xf32> to vector<4x16xf32>
    %190 = arith.addf %188, %189 : vector<4x16xf32>
    %c0_74 = arith.constant 0 : index
    %191 = memref.load %arg1[%c0_74] : memref<8xf32, #tpu.memory_space<smem>>
    %cst_75 = arith.constant dense<0.000000e+00> : vector<4x64xf32>
    %192 = tpu.matmul %190, %16, %cst_75 {dimension_numbers = #tpu.dot_dimension_numbers<[1], [0], [0], [1], [0, 0, 1, 1], [], []>} : vector<4x16xf32>, vector<16x64xf32>, vector<4x64xf32> -> vector<4x64xf32>
    %193 = vector.broadcast %191 : f32 to vector<1x64xf32>
    %194 = arith.mulf %193, %15 : vector<1x64xf32>
    %195 = vector.broadcast %194 : vector<1x64xf32> to vector<4x64xf32>
    %196 = arith.addf %192, %195 : vector<4x64xf32>
    %197 = arith.addf %196, %174 : vector<4x64xf32>
    %cst_76 = arith.constant 0.908999979 : f32
    %198 = vector.broadcast %cst_76 : f32 to vector<4x64xf32>
    %199 = arith.mulf %198, %197 : vector<4x64xf32>
    %cst_77 = arith.constant 0.000000e+00 : f32
    %200 = vector.broadcast %cst_77 : f32 to vector<4x64xf32>
    %201 = arith.subf %200, %197 : vector<4x64xf32>
    %202 = math.exp %201 : vector<4x64xf32>
    %cst_78 = arith.constant 1.000000e+00 : f32
    %203 = vector.broadcast %cst_78 : f32 to vector<4x64xf32>
    %204 = arith.addf %203, %202 : vector<4x64xf32>
    %cst_79 = arith.constant 1.000000e+00 : f32
    %205 = vector.broadcast %cst_79 : f32 to vector<4x64xf32>
    %206 = arith.divf %205, %204 : vector<4x64xf32>
    %207 = arith.mulf %199, %206 : vector<4x64xf32>
    %cst_80 = arith.constant dense<0.000000e+00> : vector<4x64xf32>
    %208 = tpu.matmul %207, %19, %cst_80 {dimension_numbers = #tpu.dot_dimension_numbers<[1], [0], [0], [1], [0, 0, 1, 1], [], []>} : vector<4x64xf32>, vector<64x64xf32>, vector<4x64xf32> -> vector<4x64xf32>
    %209 = vector.broadcast %20 : vector<1x64xf32> to vector<4x64xf32>
    %210 = arith.addf %208, %209 : vector<4x64xf32>
    %cst_81 = arith.constant 0.908999979 : f32
    %211 = vector.broadcast %cst_81 : f32 to vector<4x64xf32>
    %212 = arith.mulf %211, %210 : vector<4x64xf32>
    %cst_82 = arith.constant 0.000000e+00 : f32
    %213 = vector.broadcast %cst_82 : f32 to vector<4x64xf32>
    %214 = arith.subf %213, %210 : vector<4x64xf32>
    %215 = math.exp %214 : vector<4x64xf32>
    %cst_83 = arith.constant 1.000000e+00 : f32
    %216 = vector.broadcast %cst_83 : f32 to vector<4x64xf32>
    %217 = arith.addf %216, %215 : vector<4x64xf32>
    %cst_84 = arith.constant 1.000000e+00 : f32
    %218 = vector.broadcast %cst_84 : f32 to vector<4x64xf32>
    %219 = arith.divf %218, %217 : vector<4x64xf32>
    %220 = arith.mulf %212, %219 : vector<4x64xf32>
    %cst_85 = arith.constant dense<0.000000e+00> : vector<4x64xf32>
    %221 = tpu.matmul %220, %21, %cst_85 {dimension_numbers = #tpu.dot_dimension_numbers<[1], [0], [0], [1], [0, 0, 1, 1], [], []>} : vector<4x64xf32>, vector<64x64xf32>, vector<4x64xf32> -> vector<4x64xf32>
    %222 = vector.broadcast %22 : vector<1x64xf32> to vector<4x64xf32>
    %223 = arith.addf %221, %222 : vector<4x64xf32>
    %224 = math.tanh %223 : vector<4x64xf32>
    %cst_86 = arith.constant 1.000000e+00 : f32
    %225 = vector.broadcast %cst_86 : f32 to vector<4x64xf32>
    %226 = arith.mulf %225, %224 : vector<4x64xf32>
    %227 = vector.extract_strided_slice %226 {offsets = [0, 0], sizes = [4, 16], strides = [1, 1]} : vector<4x64xf32> to vector<4x16xf32>
    %228 = vector.extract_strided_slice %226 {offsets = [0, 16], sizes = [4, 48], strides = [1, 1]} : vector<4x64xf32> to vector<4x48xf32>
    %c0_87 = arith.constant 0 : index
    %c0_88 = arith.constant 0 : index
    %c0_89 = arith.constant 0 : index
    %229 = vector.load %arg9[%c0_87, %c0_88, %c0_89] : memref<8x4x16xf32, #tpu.memory_space<vmem>>, vector<1x4x16xf32>
    %230 = vector.shape_cast %229 : vector<1x4x16xf32> to vector<4x16xf32>
    %231 = vector.shape_cast %190 : vector<4x16xf32> to vector<1x4x16xf32>
    tpu.vector_store %arg9[%c0_87, %c0_88, %c0_89], %231 {strides = array<i32>} : memref<8x4x16xf32, #tpu.memory_space<vmem>>, vector<1x4x16xf32>,
    %c1 = arith.constant 1 : index
    %232 = memref.load %arg1[%c1] : memref<8xf32, #tpu.memory_space<smem>>
    %c0_90 = arith.constant 0 : index
    %233 = memref.load %arg1[%c0_90] : memref<8xf32, #tpu.memory_space<smem>>
    %234 = arith.subf %232, %233 : f32
    %c0_91 = arith.constant 0 : index
    %c0_92 = arith.constant 0 : index
    %c0_93 = arith.constant 0 : index
    %235 = vector.load %arg2[%c0_91, %c0_92, %c0_93] : memref<7x4x48xf32, #tpu.memory_space<vmem>>, vector<1x4x48xf32>
    %236 = vector.shape_cast %235 : vector<1x4x48xf32> to vector<4x48xf32>
    %cst_94 = arith.constant 2.000000e+00 : f32
    %237 = vector.broadcast %cst_94 : f32 to vector<4x16xf32>
    %238 = arith.mulf %237, %190 : vector<4x16xf32>
    %239 = arith.subf %238, %190 : vector<4x16xf32>
    %240 = vector.broadcast %234 : f32 to vector<4x16xf32>
    %241 = arith.mulf %227, %240 : vector<4x16xf32>
    %242 = arith.addf %239, %241 : vector<4x16xf32>
    %243 = arith.mulf %228, %236 : vector<4x48xf32>
    %244 = vector.extract_strided_slice %243 {offsets = [0, 0], sizes = [4, 16], strides = [1, 1]} : vector<4x48xf32> to vector<4x16xf32>
    %245 = vector.extract_strided_slice %243 {offsets = [0, 16], sizes = [4, 16], strides = [1, 1]} : vector<4x48xf32> to vector<4x16xf32>
    %246 = arith.addf %244, %245 : vector<4x16xf32>
    %247 = vector.extract_strided_slice %243 {offsets = [0, 32], sizes = [4, 16], strides = [1, 1]} : vector<4x48xf32> to vector<4x16xf32>
    %248 = arith.addf %246, %247 : vector<4x16xf32>
    %249 = arith.addf %242, %248 : vector<4x16xf32>
    %c1_95 = arith.constant 1 : index
    %250 = memref.load %arg1[%c1_95] : memref<8xf32, #tpu.memory_space<smem>>
    %cst_96 = arith.constant dense<0.000000e+00> : vector<4x64xf32>
    %251 = tpu.matmul %249, %16, %cst_96 {dimension_numbers = #tpu.dot_dimension_numbers<[1], [0], [0], [1], [0, 0, 1, 1], [], []>} : vector<4x16xf32>, vector<16x64xf32>, vector<4x64xf32> -> vector<4x64xf32>
    %252 = vector.broadcast %250 : f32 to vector<1x64xf32>
    %253 = arith.mulf %252, %15 : vector<1x64xf32>
    %254 = vector.broadcast %253 : vector<1x64xf32> to vector<4x64xf32>
    %255 = arith.addf %251, %254 : vector<4x64xf32>
    %256 = arith.addf %255, %174 : vector<4x64xf32>
    %cst_97 = arith.constant 0.908999979 : f32
    %257 = vector.broadcast %cst_97 : f32 to vector<4x64xf32>
    %258 = arith.mulf %257, %256 : vector<4x64xf32>
    %cst_98 = arith.constant 0.000000e+00 : f32
    %259 = vector.broadcast %cst_98 : f32 to vector<4x64xf32>
    %260 = arith.subf %259, %256 : vector<4x64xf32>
    %261 = math.exp %260 : vector<4x64xf32>
    %cst_99 = arith.constant 1.000000e+00 : f32
    %262 = vector.broadcast %cst_99 : f32 to vector<4x64xf32>
    %263 = arith.addf %262, %261 : vector<4x64xf32>
    %cst_100 = arith.constant 1.000000e+00 : f32
    %264 = vector.broadcast %cst_100 : f32 to vector<4x64xf32>
    %265 = arith.divf %264, %263 : vector<4x64xf32>
    %266 = arith.mulf %258, %265 : vector<4x64xf32>
    %cst_101 = arith.constant dense<0.000000e+00> : vector<4x64xf32>
    %267 = tpu.matmul %266, %19, %cst_101 {dimension_numbers = #tpu.dot_dimension_numbers<[1], [0], [0], [1], [0, 0, 1, 1], [], []>} : vector<4x64xf32>, vector<64x64xf32>, vector<4x64xf32> -> vector<4x64xf32>
    %268 = vector.broadcast %20 : vector<1x64xf32> to vector<4x64xf32>
    %269 = arith.addf %267, %268 : vector<4x64xf32>
    %cst_102 = arith.constant 0.908999979 : f32
    %270 = vector.broadcast %cst_102 : f32 to vector<4x64xf32>
    %271 = arith.mulf %270, %269 : vector<4x64xf32>
    %cst_103 = arith.constant 0.000000e+00 : f32
    %272 = vector.broadcast %cst_103 : f32 to vector<4x64xf32>
    %273 = arith.subf %272, %269 : vector<4x64xf32>
    %274 = math.exp %273 : vector<4x64xf32>
    %cst_104 = arith.constant 1.000000e+00 : f32
    %275 = vector.broadcast %cst_104 : f32 to vector<4x64xf32>
    %276 = arith.addf %275, %274 : vector<4x64xf32>
    %cst_105 = arith.constant 1.000000e+00 : f32
    %277 = vector.broadcast %cst_105 : f32 to vector<4x64xf32>
    %278 = arith.divf %277, %276 : vector<4x64xf32>
    %279 = arith.mulf %271, %278 : vector<4x64xf32>
    %cst_106 = arith.constant dense<0.000000e+00> : vector<4x64xf32>
    %280 = tpu.matmul %279, %21, %cst_106 {dimension_numbers = #tpu.dot_dimension_numbers<[1], [0], [0], [1], [0, 0, 1, 1], [], []>} : vector<4x64xf32>, vector<64x64xf32>, vector<4x64xf32> -> vector<4x64xf32>
    %281 = vector.broadcast %22 : vector<1x64xf32> to vector<4x64xf32>
    %282 = arith.addf %280, %281 : vector<4x64xf32>
    %283 = math.tanh %282 : vector<4x64xf32>
    %cst_107 = arith.constant 1.000000e+00 : f32
    %284 = vector.broadcast %cst_107 : f32 to vector<4x64xf32>
    %285 = arith.mulf %284, %283 : vector<4x64xf32>
    %286 = vector.extract_strided_slice %285 {offsets = [0, 0], sizes = [4, 16], strides = [1, 1]} : vector<4x64xf32> to vector<4x16xf32>
    %287 = vector.extract_strided_slice %285 {offsets = [0, 16], sizes = [4, 48], strides = [1, 1]} : vector<4x64xf32> to vector<4x48xf32>
    %cst_108 = arith.constant 5.000000e-01 : f32
    %288 = arith.mulf %cst_108, %234 : f32
    %289 = arith.addf %227, %286 : vector<4x16xf32>
    %290 = vector.broadcast %288 : f32 to vector<4x16xf32>
    %291 = arith.mulf %290, %289 : vector<4x16xf32>
    %292 = arith.addf %190, %291 : vector<4x16xf32>
    %293 = arith.addf %228, %287 : vector<4x48xf32>
    %294 = arith.mulf %293, %236 : vector<4x48xf32>
    %295 = vector.extract_strided_slice %294 {offsets = [0, 0], sizes = [4, 16], strides = [1, 1]} : vector<4x48xf32> to vector<4x16xf32>
    %296 = vector.extract_strided_slice %294 {offsets = [0, 16], sizes = [4, 16], strides = [1, 1]} : vector<4x48xf32> to vector<4x16xf32>
    %297 = arith.addf %295, %296 : vector<4x16xf32>
    %298 = vector.extract_strided_slice %294 {offsets = [0, 32], sizes = [4, 16], strides = [1, 1]} : vector<4x48xf32> to vector<4x16xf32>
    %299 = arith.addf %297, %298 : vector<4x16xf32>
    %cst_109 = arith.constant 5.000000e-01 : f32
    %300 = vector.broadcast %cst_109 : f32 to vector<4x16xf32>
    %301 = arith.mulf %300, %299 : vector<4x16xf32>
    %302 = arith.addf %292, %301 : vector<4x16xf32>
    %c1_110 = arith.constant 1 : index
    %c0_111 = arith.constant 0 : index
    %c0_112 = arith.constant 0 : index
    %303 = vector.load %arg9[%c1_110, %c0_111, %c0_112] : memref<8x4x16xf32, #tpu.memory_space<vmem>>, vector<1x4x16xf32>
    %304 = vector.shape_cast %303 : vector<1x4x16xf32> to vector<4x16xf32>
    %305 = vector.shape_cast %302 : vector<4x16xf32> to vector<1x4x16xf32>
    tpu.vector_store %arg9[%c1_110, %c0_111, %c0_112], %305 {strides = array<i32>} : memref<8x4x16xf32, #tpu.memory_space<vmem>>, vector<1x4x16xf32>,
    %c2 = arith.constant 2 : index
    %306 = memref.load %arg1[%c2] : memref<8xf32, #tpu.memory_space<smem>>
    %c1_113 = arith.constant 1 : index
    %307 = memref.load %arg1[%c1_113] : memref<8xf32, #tpu.memory_space<smem>>
    %308 = arith.subf %306, %307 : f32
    %c1_114 = arith.constant 1 : index
    %c0_115 = arith.constant 0 : index
    %c0_116 = arith.constant 0 : index
    %309 = vector.load %arg2[%c1_114, %c0_115, %c0_116] : memref<7x4x48xf32, #tpu.memory_space<vmem>>, vector<1x4x48xf32>
    %310 = vector.shape_cast %309 : vector<1x4x48xf32> to vector<4x48xf32>
    %cst_117 = arith.constant 2.000000e+00 : f32
    %311 = vector.broadcast %cst_117 : f32 to vector<4x16xf32>
    %312 = arith.mulf %311, %302 : vector<4x16xf32>
    %313 = arith.subf %312, %249 : vector<4x16xf32>
    %314 = vector.broadcast %308 : f32 to vector<4x16xf32>
    %315 = arith.mulf %286, %314 : vector<4x16xf32>
    %316 = arith.addf %313, %315 : vector<4x16xf32>
    %317 = arith.mulf %287, %310 : vector<4x48xf32>
    %318 = vector.extract_strided_slice %317 {offsets = [0, 0], sizes = [4, 16], strides = [1, 1]} : vector<4x48xf32> to vector<4x16xf32>
    %319 = vector.extract_strided_slice %317 {offsets = [0, 16], sizes = [4, 16], strides = [1, 1]} : vector<4x48xf32> to vector<4x16xf32>
    %320 = arith.addf %318, %319 : vector<4x16xf32>
    %321 = vector.extract_strided_slice %317 {offsets = [0, 32], sizes = [4, 16], strides = [1, 1]} : vector<4x48xf32> to vector<4x16xf32>
    %322 = arith.addf %320, %321 : vector<4x16xf32>
    %323 = arith.addf %316, %322 : vector<4x16xf32>
    %c2_118 = arith.constant 2 : index
    %324 = memref.load %arg1[%c2_118] : memref<8xf32, #tpu.memory_space<smem>>
    %cst_119 = arith.constant dense<0.000000e+00> : vector<4x64xf32>
    %325 = tpu.matmul %323, %16, %cst_119 {dimension_numbers = #tpu.dot_dimension_numbers<[1], [0], [0], [1], [0, 0, 1, 1], [], []>} : vector<4x16xf32>, vector<16x64xf32>, vector<4x64xf32> -> vector<4x64xf32>
    %326 = vector.broadcast %324 : f32 to vector<1x64xf32>
    %327 = arith.mulf %326, %15 : vector<1x64xf32>
    %328 = vector.broadcast %327 : vector<1x64xf32> to vector<4x64xf32>
    %329 = arith.addf %325, %328 : vector<4x64xf32>
    %330 = arith.addf %329, %174 : vector<4x64xf32>
    %cst_120 = arith.constant 0.908999979 : f32
    %331 = vector.broadcast %cst_120 : f32 to vector<4x64xf32>
    %332 = arith.mulf %331, %330 : vector<4x64xf32>
    %cst_121 = arith.constant 0.000000e+00 : f32
    %333 = vector.broadcast %cst_121 : f32 to vector<4x64xf32>
    %334 = arith.subf %333, %330 : vector<4x64xf32>
    %335 = math.exp %334 : vector<4x64xf32>
    %cst_122 = arith.constant 1.000000e+00 : f32
    %336 = vector.broadcast %cst_122 : f32 to vector<4x64xf32>
    %337 = arith.addf %336, %335 : vector<4x64xf32>
    %cst_123 = arith.constant 1.000000e+00 : f32
    %338 = vector.broadcast %cst_123 : f32 to vector<4x64xf32>
    %339 = arith.divf %338, %337 : vector<4x64xf32>
    %340 = arith.mulf %332, %339 : vector<4x64xf32>
    %cst_124 = arith.constant dense<0.000000e+00> : vector<4x64xf32>
    %341 = tpu.matmul %340, %19, %cst_124 {dimension_numbers = #tpu.dot_dimension_numbers<[1], [0], [0], [1], [0, 0, 1, 1], [], []>} : vector<4x64xf32>, vector<64x64xf32>, vector<4x64xf32> -> vector<4x64xf32>
    %342 = vector.broadcast %20 : vector<1x64xf32> to vector<4x64xf32>
    %343 = arith.addf %341, %342 : vector<4x64xf32>
    %cst_125 = arith.constant 0.908999979 : f32
    %344 = vector.broadcast %cst_125 : f32 to vector<4x64xf32>
    %345 = arith.mulf %344, %343 : vector<4x64xf32>
    %cst_126 = arith.constant 0.000000e+00 : f32
    %346 = vector.broadcast %cst_126 : f32 to vector<4x64xf32>
    %347 = arith.subf %346, %343 : vector<4x64xf32>
    %348 = math.exp %347 : vector<4x64xf32>
    %cst_127 = arith.constant 1.000000e+00 : f32
    %349 = vector.broadcast %cst_127 : f32 to vector<4x64xf32>
    %350 = arith.addf %349, %348 : vector<4x64xf32>
    %cst_128 = arith.constant 1.000000e+00 : f32
    %351 = vector.broadcast %cst_128 : f32 to vector<4x64xf32>
    %352 = arith.divf %351, %350 : vector<4x64xf32>
    %353 = arith.mulf %345, %352 : vector<4x64xf32>
    %cst_129 = arith.constant dense<0.000000e+00> : vector<4x64xf32>
    %354 = tpu.matmul %353, %21, %cst_129 {dimension_numbers = #tpu.dot_dimension_numbers<[1], [0], [0], [1], [0, 0, 1, 1], [], []>} : vector<4x64xf32>, vector<64x64xf32>, vector<4x64xf32> -> vector<4x64xf32>
    %355 = vector.broadcast %22 : vector<1x64xf32> to vector<4x64xf32>
    %356 = arith.addf %354, %355 : vector<4x64xf32>
    %357 = math.tanh %356 : vector<4x64xf32>
    %cst_130 = arith.constant 1.000000e+00 : f32
    %358 = vector.broadcast %cst_130 : f32 to vector<4x64xf32>
    %359 = arith.mulf %358, %357 : vector<4x64xf32>
    %360 = vector.extract_strided_slice %359 {offsets = [0, 0], sizes = [4, 16], strides = [1, 1]} : vector<4x64xf32> to vector<4x16xf32>
    %361 = vector.extract_strided_slice %359 {offsets = [0, 16], sizes = [4, 48], strides = [1, 1]} : vector<4x64xf32> to vector<4x48xf32>
    %cst_131 = arith.constant 5.000000e-01 : f32
    %362 = arith.mulf %cst_131, %308 : f32
    %363 = arith.addf %286, %360 : vector<4x16xf32>
    %364 = vector.broadcast %362 : f32 to vector<4x16xf32>
    %365 = arith.mulf %364, %363 : vector<4x16xf32>
    %366 = arith.addf %302, %365 : vector<4x16xf32>
    %367 = arith.addf %287, %361 : vector<4x48xf32>
    %368 = arith.mulf %367, %310 : vector<4x48xf32>
    %369 = vector.extract_strided_slice %368 {offsets = [0, 0], sizes = [4, 16], strides = [1, 1]} : vector<4x48xf32> to vector<4x16xf32>
    %370 = vector.extract_strided_slice %368 {offsets = [0, 16], sizes = [4, 16], strides = [1, 1]} : vector<4x48xf32> to vector<4x16xf32>
    %371 = arith.addf %369, %370 : vector<4x16xf32>
    %372 = vector.extract_strided_slice %368 {offsets = [0, 32], sizes = [4, 16], strides = [1, 1]} : vector<4x48xf32> to vector<4x16xf32>
    %373 = arith.addf %371, %372 : vector<4x16xf32>
    %cst_132 = arith.constant 5.000000e-01 : f32
    %374 = vector.broadcast %cst_132 : f32 to vector<4x16xf32>
    %375 = arith.mulf %374, %373 : vector<4x16xf32>
    %376 = arith.addf %366, %375 : vector<4x16xf32>
    %c2_133 = arith.constant 2 : index
    %c0_134 = arith.constant 0 : index
    %c0_135 = arith.constant 0 : index
    %377 = vector.load %arg9[%c2_133, %c0_134, %c0_135] : memref<8x4x16xf32, #tpu.memory_space<vmem>>, vector<1x4x16xf32>
    %378 = vector.shape_cast %377 : vector<1x4x16xf32> to vector<4x16xf32>
    %379 = vector.shape_cast %376 : vector<4x16xf32> to vector<1x4x16xf32>
    tpu.vector_store %arg9[%c2_133, %c0_134, %c0_135], %379 {strides = array<i32>} : memref<8x4x16xf32, #tpu.memory_space<vmem>>, vector<1x4x16xf32>,
    %c3 = arith.constant 3 : index
    %380 = memref.load %arg1[%c3] : memref<8xf32, #tpu.memory_space<smem>>
    %c2_136 = arith.constant 2 : index
    %381 = memref.load %arg1[%c2_136] : memref<8xf32, #tpu.memory_space<smem>>
    %382 = arith.subf %380, %381 : f32
    %c2_137 = arith.constant 2 : index
    %c0_138 = arith.constant 0 : index
    %c0_139 = arith.constant 0 : index
    %383 = vector.load %arg2[%c2_137, %c0_138, %c0_139] : memref<7x4x48xf32, #tpu.memory_space<vmem>>, vector<1x4x48xf32>
    %384 = vector.shape_cast %383 : vector<1x4x48xf32> to vector<4x48xf32>
    %cst_140 = arith.constant 2.000000e+00 : f32
    %385 = vector.broadcast %cst_140 : f32 to vector<4x16xf32>
    %386 = arith.mulf %385, %376 : vector<4x16xf32>
    %387 = arith.subf %386, %323 : vector<4x16xf32>
    %388 = vector.broadcast %382 : f32 to vector<4x16xf32>
    %389 = arith.mulf %360, %388 : vector<4x16xf32>
    %390 = arith.addf %387, %389 : vector<4x16xf32>
    %391 = arith.mulf %361, %384 : vector<4x48xf32>
    %392 = vector.extract_strided_slice %391 {offsets = [0, 0], sizes = [4, 16], strides = [1, 1]} : vector<4x48xf32> to vector<4x16xf32>
    %393 = vector.extract_strided_slice %391 {offsets = [0, 16], sizes = [4, 16], strides = [1, 1]} : vector<4x48xf32> to vector<4x16xf32>
    %394 = arith.addf %392, %393 : vector<4x16xf32>
    %395 = vector.extract_strided_slice %391 {offsets = [0, 32], sizes = [4, 16], strides = [1, 1]} : vector<4x48xf32> to vector<4x16xf32>
    %396 = arith.addf %394, %395 : vector<4x16xf32>
    %397 = arith.addf %390, %396 : vector<4x16xf32>
    %c3_141 = arith.constant 3 : index
    %398 = memref.load %arg1[%c3_141] : memref<8xf32, #tpu.memory_space<smem>>
    %cst_142 = arith.constant dense<0.000000e+00> : vector<4x64xf32>
    %399 = tpu.matmul %397, %16, %cst_142 {dimension_numbers = #tpu.dot_dimension_numbers<[1], [0], [0], [1], [0, 0, 1, 1], [], []>} : vector<4x16xf32>, vector<16x64xf32>, vector<4x64xf32> -> vector<4x64xf32>
    %400 = vector.broadcast %398 : f32 to vector<1x64xf32>
    %401 = arith.mulf %400, %15 : vector<1x64xf32>
    %402 = vector.broadcast %401 : vector<1x64xf32> to vector<4x64xf32>
    %403 = arith.addf %399, %402 : vector<4x64xf32>
    %404 = arith.addf %403, %174 : vector<4x64xf32>
    %cst_143 = arith.constant 0.908999979 : f32
    %405 = vector.broadcast %cst_143 : f32 to vector<4x64xf32>
    %406 = arith.mulf %405, %404 : vector<4x64xf32>
    %cst_144 = arith.constant 0.000000e+00 : f32
    %407 = vector.broadcast %cst_144 : f32 to vector<4x64xf32>
    %408 = arith.subf %407, %404 : vector<4x64xf32>
    %409 = math.exp %408 : vector<4x64xf32>
    %cst_145 = arith.constant 1.000000e+00 : f32
    %410 = vector.broadcast %cst_145 : f32 to vector<4x64xf32>
    %411 = arith.addf %410, %409 : vector<4x64xf32>
    %cst_146 = arith.constant 1.000000e+00 : f32
    %412 = vector.broadcast %cst_146 : f32 to vector<4x64xf32>
    %413 = arith.divf %412, %411 : vector<4x64xf32>
    %414 = arith.mulf %406, %413 : vector<4x64xf32>
    %cst_147 = arith.constant dense<0.000000e+00> : vector<4x64xf32>
    %415 = tpu.matmul %414, %19, %cst_147 {dimension_numbers = #tpu.dot_dimension_numbers<[1], [0], [0], [1], [0, 0, 1, 1], [], []>} : vector<4x64xf32>, vector<64x64xf32>, vector<4x64xf32> -> vector<4x64xf32>
    %416 = vector.broadcast %20 : vector<1x64xf32> to vector<4x64xf32>
    %417 = arith.addf %415, %416 : vector<4x64xf32>
    %cst_148 = arith.constant 0.908999979 : f32
    %418 = vector.broadcast %cst_148 : f32 to vector<4x64xf32>
    %419 = arith.mulf %418, %417 : vector<4x64xf32>
    %cst_149 = arith.constant 0.000000e+00 : f32
    %420 = vector.broadcast %cst_149 : f32 to vector<4x64xf32>
    %421 = arith.subf %420, %417 : vector<4x64xf32>
    %422 = math.exp %421 : vector<4x64xf32>
    %cst_150 = arith.constant 1.000000e+00 : f32
    %423 = vector.broadcast %cst_150 : f32 to vector<4x64xf32>
    %424 = arith.addf %423, %422 : vector<4x64xf32>
    %cst_151 = arith.constant 1.000000e+00 : f32
    %425 = vector.broadcast %cst_151 : f32 to vector<4x64xf32>
    %426 = arith.divf %425, %424 : vector<4x64xf32>
    %427 = arith.mulf %419, %426 : vector<4x64xf32>
    %cst_152 = arith.constant dense<0.000000e+00> : vector<4x64xf32>
    %428 = tpu.matmul %427, %21, %cst_152 {dimension_numbers = #tpu.dot_dimension_numbers<[1], [0], [0], [1], [0, 0, 1, 1], [], []>} : vector<4x64xf32>, vector<64x64xf32>, vector<4x64xf32> -> vector<4x64xf32>
    %429 = vector.broadcast %22 : vector<1x64xf32> to vector<4x64xf32>
    %430 = arith.addf %428, %429 : vector<4x64xf32>
    %431 = math.tanh %430 : vector<4x64xf32>
    %cst_153 = arith.constant 1.000000e+00 : f32
    %432 = vector.broadcast %cst_153 : f32 to vector<4x64xf32>
    %433 = arith.mulf %432, %431 : vector<4x64xf32>
    %434 = vector.extract_strided_slice %433 {offsets = [0, 0], sizes = [4, 16], strides = [1, 1]} : vector<4x64xf32> to vector<4x16xf32>
    %435 = vector.extract_strided_slice %433 {offsets = [0, 16], sizes = [4, 48], strides = [1, 1]} : vector<4x64xf32> to vector<4x48xf32>
    %cst_154 = arith.constant 5.000000e-01 : f32
    %436 = arith.mulf %cst_154, %382 : f32
    %437 = arith.addf %360, %434 : vector<4x16xf32>
    %438 = vector.broadcast %436 : f32 to vector<4x16xf32>
    %439 = arith.mulf %438, %437 : vector<4x16xf32>
    %440 = arith.addf %376, %439 : vector<4x16xf32>
    %441 = arith.addf %361, %435 : vector<4x48xf32>
    %442 = arith.mulf %441, %384 : vector<4x48xf32>
    %443 = vector.extract_strided_slice %442 {offsets = [0, 0], sizes = [4, 16], strides = [1, 1]} : vector<4x48xf32> to vector<4x16xf32>
    %444 = vector.extract_strided_slice %442 {offsets = [0, 16], sizes = [4, 16], strides = [1, 1]} : vector<4x48xf32> to vector<4x16xf32>
    %445 = arith.addf %443, %444 : vector<4x16xf32>
    %446 = vector.extract_strided_slice %442 {offsets = [0, 32], sizes = [4, 16], strides = [1, 1]} : vector<4x48xf32> to vector<4x16xf32>
    %447 = arith.addf %445, %446 : vector<4x16xf32>
    %cst_155 = arith.constant 5.000000e-01 : f32
    %448 = vector.broadcast %cst_155 : f32 to vector<4x16xf32>
    %449 = arith.mulf %448, %447 : vector<4x16xf32>
    %450 = arith.addf %440, %449 : vector<4x16xf32>
    %c3_156 = arith.constant 3 : index
    %c0_157 = arith.constant 0 : index
    %c0_158 = arith.constant 0 : index
    %451 = vector.load %arg9[%c3_156, %c0_157, %c0_158] : memref<8x4x16xf32, #tpu.memory_space<vmem>>, vector<1x4x16xf32>
    %452 = vector.shape_cast %451 : vector<1x4x16xf32> to vector<4x16xf32>
    %453 = vector.shape_cast %450 : vector<4x16xf32> to vector<1x4x16xf32>
    tpu.vector_store %arg9[%c3_156, %c0_157, %c0_158], %453 {strides = array<i32>} : memref<8x4x16xf32, #tpu.memory_space<vmem>>, vector<1x4x16xf32>,
    %c4 = arith.constant 4 : index
    %454 = memref.load %arg1[%c4] : memref<8xf32, #tpu.memory_space<smem>>
    %c3_159 = arith.constant 3 : index
    %455 = memref.load %arg1[%c3_159] : memref<8xf32, #tpu.memory_space<smem>>
    %456 = arith.subf %454, %455 : f32
    %c3_160 = arith.constant 3 : index
    %c0_161 = arith.constant 0 : index
    %c0_162 = arith.constant 0 : index
    %457 = vector.load %arg2[%c3_160, %c0_161, %c0_162] : memref<7x4x48xf32, #tpu.memory_space<vmem>>, vector<1x4x48xf32>
    %458 = vector.shape_cast %457 : vector<1x4x48xf32> to vector<4x48xf32>
    %cst_163 = arith.constant 2.000000e+00 : f32
    %459 = vector.broadcast %cst_163 : f32 to vector<4x16xf32>
    %460 = arith.mulf %459, %450 : vector<4x16xf32>
    %461 = arith.subf %460, %397 : vector<4x16xf32>
    %462 = vector.broadcast %456 : f32 to vector<4x16xf32>
    %463 = arith.mulf %434, %462 : vector<4x16xf32>
    %464 = arith.addf %461, %463 : vector<4x16xf32>
    %465 = arith.mulf %435, %458 : vector<4x48xf32>
    %466 = vector.extract_strided_slice %465 {offsets = [0, 0], sizes = [4, 16], strides = [1, 1]} : vector<4x48xf32> to vector<4x16xf32>
    %467 = vector.extract_strided_slice %465 {offsets = [0, 16], sizes = [4, 16], strides = [1, 1]} : vector<4x48xf32> to vector<4x16xf32>
    %468 = arith.addf %466, %467 : vector<4x16xf32>
    %469 = vector.extract_strided_slice %465 {offsets = [0, 32], sizes = [4, 16], strides = [1, 1]} : vector<4x48xf32> to vector<4x16xf32>
    %470 = arith.addf %468, %469 : vector<4x16xf32>
    %471 = arith.addf %464, %470 : vector<4x16xf32>
    %c4_164 = arith.constant 4 : index
    %472 = memref.load %arg1[%c4_164] : memref<8xf32, #tpu.memory_space<smem>>
    %cst_165 = arith.constant dense<0.000000e+00> : vector<4x64xf32>
    %473 = tpu.matmul %471, %16, %cst_165 {dimension_numbers = #tpu.dot_dimension_numbers<[1], [0], [0], [1], [0, 0, 1, 1], [], []>} : vector<4x16xf32>, vector<16x64xf32>, vector<4x64xf32> -> vector<4x64xf32>
    %474 = vector.broadcast %472 : f32 to vector<1x64xf32>
    %475 = arith.mulf %474, %15 : vector<1x64xf32>
    %476 = vector.broadcast %475 : vector<1x64xf32> to vector<4x64xf32>
    %477 = arith.addf %473, %476 : vector<4x64xf32>
    %478 = arith.addf %477, %174 : vector<4x64xf32>
    %cst_166 = arith.constant 0.908999979 : f32
    %479 = vector.broadcast %cst_166 : f32 to vector<4x64xf32>
    %480 = arith.mulf %479, %478 : vector<4x64xf32>
    %cst_167 = arith.constant 0.000000e+00 : f32
    %481 = vector.broadcast %cst_167 : f32 to vector<4x64xf32>
    %482 = arith.subf %481, %478 : vector<4x64xf32>
    %483 = math.exp %482 : vector<4x64xf32>
    %cst_168 = arith.constant 1.000000e+00 : f32
    %484 = vector.broadcast %cst_168 : f32 to vector<4x64xf32>
    %485 = arith.addf %484, %483 : vector<4x64xf32>
    %cst_169 = arith.constant 1.000000e+00 : f32
    %486 = vector.broadcast %cst_169 : f32 to vector<4x64xf32>
    %487 = arith.divf %486, %485 : vector<4x64xf32>
    %488 = arith.mulf %480, %487 : vector<4x64xf32>
    %cst_170 = arith.constant dense<0.000000e+00> : vector<4x64xf32>
    %489 = tpu.matmul %488, %19, %cst_170 {dimension_numbers = #tpu.dot_dimension_numbers<[1], [0], [0], [1], [0, 0, 1, 1], [], []>} : vector<4x64xf32>, vector<64x64xf32>, vector<4x64xf32> -> vector<4x64xf32>
    %490 = vector.broadcast %20 : vector<1x64xf32> to vector<4x64xf32>
    %491 = arith.addf %489, %490 : vector<4x64xf32>
    %cst_171 = arith.constant 0.908999979 : f32
    %492 = vector.broadcast %cst_171 : f32 to vector<4x64xf32>
    %493 = arith.mulf %492, %491 : vector<4x64xf32>
    %cst_172 = arith.constant 0.000000e+00 : f32
    %494 = vector.broadcast %cst_172 : f32 to vector<4x64xf32>
    %495 = arith.subf %494, %491 : vector<4x64xf32>
    %496 = math.exp %495 : vector<4x64xf32>
    %cst_173 = arith.constant 1.000000e+00 : f32
    %497 = vector.broadcast %cst_173 : f32 to vector<4x64xf32>
    %498 = arith.addf %497, %496 : vector<4x64xf32>
    %cst_174 = arith.constant 1.000000e+00 : f32
    %499 = vector.broadcast %cst_174 : f32 to vector<4x64xf32>
    %500 = arith.divf %499, %498 : vector<4x64xf32>
    %501 = arith.mulf %493, %500 : vector<4x64xf32>
    %cst_175 = arith.constant dense<0.000000e+00> : vector<4x64xf32>
    %502 = tpu.matmul %501, %21, %cst_175 {dimension_numbers = #tpu.dot_dimension_numbers<[1], [0], [0], [1], [0, 0, 1, 1], [], []>} : vector<4x64xf32>, vector<64x64xf32>, vector<4x64xf32> -> vector<4x64xf32>
    %503 = vector.broadcast %22 : vector<1x64xf32> to vector<4x64xf32>
    %504 = arith.addf %502, %503 : vector<4x64xf32>
    %505 = math.tanh %504 : vector<4x64xf32>
    %cst_176 = arith.constant 1.000000e+00 : f32
    %506 = vector.broadcast %cst_176 : f32 to vector<4x64xf32>
    %507 = arith.mulf %506, %505 : vector<4x64xf32>
    %508 = vector.extract_strided_slice %507 {offsets = [0, 0], sizes = [4, 16], strides = [1, 1]} : vector<4x64xf32> to vector<4x16xf32>
    %509 = vector.extract_strided_slice %507 {offsets = [0, 16], sizes = [4, 48], strides = [1, 1]} : vector<4x64xf32> to vector<4x48xf32>
    %cst_177 = arith.constant 5.000000e-01 : f32
    %510 = arith.mulf %cst_177, %456 : f32
    %511 = arith.addf %434, %508 : vector<4x16xf32>
    %512 = vector.broadcast %510 : f32 to vector<4x16xf32>
    %513 = arith.mulf %512, %511 : vector<4x16xf32>
    %514 = arith.addf %450, %513 : vector<4x16xf32>
    %515 = arith.addf %435, %509 : vector<4x48xf32>
    %516 = arith.mulf %515, %458 : vector<4x48xf32>
    %517 = vector.extract_strided_slice %516 {offsets = [0, 0], sizes = [4, 16], strides = [1, 1]} : vector<4x48xf32> to vector<4x16xf32>
    %518 = vector.extract_strided_slice %516 {offsets = [0, 16], sizes = [4, 16], strides = [1, 1]} : vector<4x48xf32> to vector<4x16xf32>
    %519 = arith.addf %517, %518 : vector<4x16xf32>
    %520 = vector.extract_strided_slice %516 {offsets = [0, 32], sizes = [4, 16], strides = [1, 1]} : vector<4x48xf32> to vector<4x16xf32>
    %521 = arith.addf %519, %520 : vector<4x16xf32>
    %cst_178 = arith.constant 5.000000e-01 : f32
    %522 = vector.broadcast %cst_178 : f32 to vector<4x16xf32>
    %523 = arith.mulf %522, %521 : vector<4x16xf32>
    %524 = arith.addf %514, %523 : vector<4x16xf32>
    %c4_179 = arith.constant 4 : index
    %c0_180 = arith.constant 0 : index
    %c0_181 = arith.constant 0 : index
    %525 = vector.load %arg9[%c4_179, %c0_180, %c0_181] : memref<8x4x16xf32, #tpu.memory_space<vmem>>, vector<1x4x16xf32>
    %526 = vector.shape_cast %525 : vector<1x4x16xf32> to vector<4x16xf32>
    %527 = vector.shape_cast %524 : vector<4x16xf32> to vector<1x4x16xf32>
    tpu.vector_store %arg9[%c4_179, %c0_180, %c0_181], %527 {strides = array<i32>} : memref<8x4x16xf32, #tpu.memory_space<vmem>>, vector<1x4x16xf32>,
    %c5 = arith.constant 5 : index
    %528 = memref.load %arg1[%c5] : memref<8xf32, #tpu.memory_space<smem>>
    %c4_182 = arith.constant 4 : index
    %529 = memref.load %arg1[%c4_182] : memref<8xf32, #tpu.memory_space<smem>>
    %530 = arith.subf %528, %529 : f32
    %c4_183 = arith.constant 4 : index
    %c0_184 = arith.constant 0 : index
    %c0_185 = arith.constant 0 : index
    %531 = vector.load %arg2[%c4_183, %c0_184, %c0_185] : memref<7x4x48xf32, #tpu.memory_space<vmem>>, vector<1x4x48xf32>
    %532 = vector.shape_cast %531 : vector<1x4x48xf32> to vector<4x48xf32>
    %cst_186 = arith.constant 2.000000e+00 : f32
    %533 = vector.broadcast %cst_186 : f32 to vector<4x16xf32>
    %534 = arith.mulf %533, %524 : vector<4x16xf32>
    %535 = arith.subf %534, %471 : vector<4x16xf32>
    %536 = vector.broadcast %530 : f32 to vector<4x16xf32>
    %537 = arith.mulf %508, %536 : vector<4x16xf32>
    %538 = arith.addf %535, %537 : vector<4x16xf32>
    %539 = arith.mulf %509, %532 : vector<4x48xf32>
    %540 = vector.extract_strided_slice %539 {offsets = [0, 0], sizes = [4, 16], strides = [1, 1]} : vector<4x48xf32> to vector<4x16xf32>
    %541 = vector.extract_strided_slice %539 {offsets = [0, 16], sizes = [4, 16], strides = [1, 1]} : vector<4x48xf32> to vector<4x16xf32>
    %542 = arith.addf %540, %541 : vector<4x16xf32>
    %543 = vector.extract_strided_slice %539 {offsets = [0, 32], sizes = [4, 16], strides = [1, 1]} : vector<4x48xf32> to vector<4x16xf32>
    %544 = arith.addf %542, %543 : vector<4x16xf32>
    %545 = arith.addf %538, %544 : vector<4x16xf32>
    %c5_187 = arith.constant 5 : index
    %546 = memref.load %arg1[%c5_187] : memref<8xf32, #tpu.memory_space<smem>>
    %cst_188 = arith.constant dense<0.000000e+00> : vector<4x64xf32>
    %547 = tpu.matmul %545, %16, %cst_188 {dimension_numbers = #tpu.dot_dimension_numbers<[1], [0], [0], [1], [0, 0, 1, 1], [], []>} : vector<4x16xf32>, vector<16x64xf32>, vector<4x64xf32> -> vector<4x64xf32>
    %548 = vector.broadcast %546 : f32 to vector<1x64xf32>
    %549 = arith.mulf %548, %15 : vector<1x64xf32>
    %550 = vector.broadcast %549 : vector<1x64xf32> to vector<4x64xf32>
    %551 = arith.addf %547, %550 : vector<4x64xf32>
    %552 = arith.addf %551, %174 : vector<4x64xf32>
    %cst_189 = arith.constant 0.908999979 : f32
    %553 = vector.broadcast %cst_189 : f32 to vector<4x64xf32>
    %554 = arith.mulf %553, %552 : vector<4x64xf32>
    %cst_190 = arith.constant 0.000000e+00 : f32
    %555 = vector.broadcast %cst_190 : f32 to vector<4x64xf32>
    %556 = arith.subf %555, %552 : vector<4x64xf32>
    %557 = math.exp %556 : vector<4x64xf32>
    %cst_191 = arith.constant 1.000000e+00 : f32
    %558 = vector.broadcast %cst_191 : f32 to vector<4x64xf32>
    %559 = arith.addf %558, %557 : vector<4x64xf32>
    %cst_192 = arith.constant 1.000000e+00 : f32
    %560 = vector.broadcast %cst_192 : f32 to vector<4x64xf32>
    %561 = arith.divf %560, %559 : vector<4x64xf32>
    %562 = arith.mulf %554, %561 : vector<4x64xf32>
    %cst_193 = arith.constant dense<0.000000e+00> : vector<4x64xf32>
    %563 = tpu.matmul %562, %19, %cst_193 {dimension_numbers = #tpu.dot_dimension_numbers<[1], [0], [0], [1], [0, 0, 1, 1], [], []>} : vector<4x64xf32>, vector<64x64xf32>, vector<4x64xf32> -> vector<4x64xf32>
    %564 = vector.broadcast %20 : vector<1x64xf32> to vector<4x64xf32>
    %565 = arith.addf %563, %564 : vector<4x64xf32>
    %cst_194 = arith.constant 0.908999979 : f32
    %566 = vector.broadcast %cst_194 : f32 to vector<4x64xf32>
    %567 = arith.mulf %566, %565 : vector<4x64xf32>
    %cst_195 = arith.constant 0.000000e+00 : f32
    %568 = vector.broadcast %cst_195 : f32 to vector<4x64xf32>
    %569 = arith.subf %568, %565 : vector<4x64xf32>
    %570 = math.exp %569 : vector<4x64xf32>
    %cst_196 = arith.constant 1.000000e+00 : f32
    %571 = vector.broadcast %cst_196 : f32 to vector<4x64xf32>
    %572 = arith.addf %571, %570 : vector<4x64xf32>
    %cst_197 = arith.constant 1.000000e+00 : f32
    %573 = vector.broadcast %cst_197 : f32 to vector<4x64xf32>
    %574 = arith.divf %573, %572 : vector<4x64xf32>
    %575 = arith.mulf %567, %574 : vector<4x64xf32>
    %cst_198 = arith.constant dense<0.000000e+00> : vector<4x64xf32>
    %576 = tpu.matmul %575, %21, %cst_198 {dimension_numbers = #tpu.dot_dimension_numbers<[1], [0], [0], [1], [0, 0, 1, 1], [], []>} : vector<4x64xf32>, vector<64x64xf32>, vector<4x64xf32> -> vector<4x64xf32>
    %577 = vector.broadcast %22 : vector<1x64xf32> to vector<4x64xf32>
    %578 = arith.addf %576, %577 : vector<4x64xf32>
    %579 = math.tanh %578 : vector<4x64xf32>
    %cst_199 = arith.constant 1.000000e+00 : f32
    %580 = vector.broadcast %cst_199 : f32 to vector<4x64xf32>
    %581 = arith.mulf %580, %579 : vector<4x64xf32>
    %582 = vector.extract_strided_slice %581 {offsets = [0, 0], sizes = [4, 16], strides = [1, 1]} : vector<4x64xf32> to vector<4x16xf32>
    %583 = vector.extract_strided_slice %581 {offsets = [0, 16], sizes = [4, 48], strides = [1, 1]} : vector<4x64xf32> to vector<4x48xf32>
    %cst_200 = arith.constant 5.000000e-01 : f32
    %584 = arith.mulf %cst_200, %530 : f32
    %585 = arith.addf %508, %582 : vector<4x16xf32>
    %586 = vector.broadcast %584 : f32 to vector<4x16xf32>
    %587 = arith.mulf %586, %585 : vector<4x16xf32>
    %588 = arith.addf %524, %587 : vector<4x16xf32>
    %589 = arith.addf %509, %583 : vector<4x48xf32>
    %590 = arith.mulf %589, %532 : vector<4x48xf32>
    %591 = vector.extract_strided_slice %590 {offsets = [0, 0], sizes = [4, 16], strides = [1, 1]} : vector<4x48xf32> to vector<4x16xf32>
    %592 = vector.extract_strided_slice %590 {offsets = [0, 16], sizes = [4, 16], strides = [1, 1]} : vector<4x48xf32> to vector<4x16xf32>
    %593 = arith.addf %591, %592 : vector<4x16xf32>
    %594 = vector.extract_strided_slice %590 {offsets = [0, 32], sizes = [4, 16], strides = [1, 1]} : vector<4x48xf32> to vector<4x16xf32>
    %595 = arith.addf %593, %594 : vector<4x16xf32>
    %cst_201 = arith.constant 5.000000e-01 : f32
    %596 = vector.broadcast %cst_201 : f32 to vector<4x16xf32>
    %597 = arith.mulf %596, %595 : vector<4x16xf32>
    %598 = arith.addf %588, %597 : vector<4x16xf32>
    %c5_202 = arith.constant 5 : index
    %c0_203 = arith.constant 0 : index
    %c0_204 = arith.constant 0 : index
    %599 = vector.load %arg9[%c5_202, %c0_203, %c0_204] : memref<8x4x16xf32, #tpu.memory_space<vmem>>, vector<1x4x16xf32>
    %600 = vector.shape_cast %599 : vector<1x4x16xf32> to vector<4x16xf32>
    %601 = vector.shape_cast %598 : vector<4x16xf32> to vector<1x4x16xf32>
    tpu.vector_store %arg9[%c5_202, %c0_203, %c0_204], %601 {strides = array<i32>} : memref<8x4x16xf32, #tpu.memory_space<vmem>>, vector<1x4x16xf32>,
    %c6 = arith.constant 6 : index
    %602 = memref.load %arg1[%c6] : memref<8xf32, #tpu.memory_space<smem>>
    %c5_205 = arith.constant 5 : index
    %603 = memref.load %arg1[%c5_205] : memref<8xf32, #tpu.memory_space<smem>>
    %604 = arith.subf %602, %603 : f32
    %c5_206 = arith.constant 5 : index
    %c0_207 = arith.constant 0 : index
    %c0_208 = arith.constant 0 : index
    %605 = vector.load %arg2[%c5_206, %c0_207, %c0_208] : memref<7x4x48xf32, #tpu.memory_space<vmem>>, vector<1x4x48xf32>
    %606 = vector.shape_cast %605 : vector<1x4x48xf32> to vector<4x48xf32>
    %cst_209 = arith.constant 2.000000e+00 : f32
    %607 = vector.broadcast %cst_209 : f32 to vector<4x16xf32>
    %608 = arith.mulf %607, %598 : vector<4x16xf32>
    %609 = arith.subf %608, %545 : vector<4x16xf32>
    %610 = vector.broadcast %604 : f32 to vector<4x16xf32>
    %611 = arith.mulf %582, %610 : vector<4x16xf32>
    %612 = arith.addf %609, %611 : vector<4x16xf32>
    %613 = arith.mulf %583, %606 : vector<4x48xf32>
    %614 = vector.extract_strided_slice %613 {offsets = [0, 0], sizes = [4, 16], strides = [1, 1]} : vector<4x48xf32> to vector<4x16xf32>
    %615 = vector.extract_strided_slice %613 {offsets = [0, 16], sizes = [4, 16], strides = [1, 1]} : vector<4x48xf32> to vector<4x16xf32>
    %616 = arith.addf %614, %615 : vector<4x16xf32>
    %617 = vector.extract_strided_slice %613 {offsets = [0, 32], sizes = [4, 16], strides = [1, 1]} : vector<4x48xf32> to vector<4x16xf32>
    %618 = arith.addf %616, %617 : vector<4x16xf32>
    %619 = arith.addf %612, %618 : vector<4x16xf32>
    %c6_210 = arith.constant 6 : index
    %620 = memref.load %arg1[%c6_210] : memref<8xf32, #tpu.memory_space<smem>>
    %cst_211 = arith.constant dense<0.000000e+00> : vector<4x64xf32>
    %621 = tpu.matmul %619, %16, %cst_211 {dimension_numbers = #tpu.dot_dimension_numbers<[1], [0], [0], [1], [0, 0, 1, 1], [], []>} : vector<4x16xf32>, vector<16x64xf32>, vector<4x64xf32> -> vector<4x64xf32>
    %622 = vector.broadcast %620 : f32 to vector<1x64xf32>
    %623 = arith.mulf %622, %15 : vector<1x64xf32>
    %624 = vector.broadcast %623 : vector<1x64xf32> to vector<4x64xf32>
    %625 = arith.addf %621, %624 : vector<4x64xf32>
    %626 = arith.addf %625, %174 : vector<4x64xf32>
    %cst_212 = arith.constant 0.908999979 : f32
    %627 = vector.broadcast %cst_212 : f32 to vector<4x64xf32>
    %628 = arith.mulf %627, %626 : vector<4x64xf32>
    %cst_213 = arith.constant 0.000000e+00 : f32
    %629 = vector.broadcast %cst_213 : f32 to vector<4x64xf32>
    %630 = arith.subf %629, %626 : vector<4x64xf32>
    %631 = math.exp %630 : vector<4x64xf32>
    %cst_214 = arith.constant 1.000000e+00 : f32
    %632 = vector.broadcast %cst_214 : f32 to vector<4x64xf32>
    %633 = arith.addf %632, %631 : vector<4x64xf32>
    %cst_215 = arith.constant 1.000000e+00 : f32
    %634 = vector.broadcast %cst_215 : f32 to vector<4x64xf32>
    %635 = arith.divf %634, %633 : vector<4x64xf32>
    %636 = arith.mulf %628, %635 : vector<4x64xf32>
    %cst_216 = arith.constant dense<0.000000e+00> : vector<4x64xf32>
    %637 = tpu.matmul %636, %19, %cst_216 {dimension_numbers = #tpu.dot_dimension_numbers<[1], [0], [0], [1], [0, 0, 1, 1], [], []>} : vector<4x64xf32>, vector<64x64xf32>, vector<4x64xf32> -> vector<4x64xf32>
    %638 = vector.broadcast %20 : vector<1x64xf32> to vector<4x64xf32>
    %639 = arith.addf %637, %638 : vector<4x64xf32>
    %cst_217 = arith.constant 0.908999979 : f32
    %640 = vector.broadcast %cst_217 : f32 to vector<4x64xf32>
    %641 = arith.mulf %640, %639 : vector<4x64xf32>
    %cst_218 = arith.constant 0.000000e+00 : f32
    %642 = vector.broadcast %cst_218 : f32 to vector<4x64xf32>
    %643 = arith.subf %642, %639 : vector<4x64xf32>
    %644 = math.exp %643 : vector<4x64xf32>
    %cst_219 = arith.constant 1.000000e+00 : f32
    %645 = vector.broadcast %cst_219 : f32 to vector<4x64xf32>
    %646 = arith.addf %645, %644 : vector<4x64xf32>
    %cst_220 = arith.constant 1.000000e+00 : f32
    %647 = vector.broadcast %cst_220 : f32 to vector<4x64xf32>
    %648 = arith.divf %647, %646 : vector<4x64xf32>
    %649 = arith.mulf %641, %648 : vector<4x64xf32>
    %cst_221 = arith.constant dense<0.000000e+00> : vector<4x64xf32>
    %650 = tpu.matmul %649, %21, %cst_221 {dimension_numbers = #tpu.dot_dimension_numbers<[1], [0], [0], [1], [0, 0, 1, 1], [], []>} : vector<4x64xf32>, vector<64x64xf32>, vector<4x64xf32> -> vector<4x64xf32>
    %651 = vector.broadcast %22 : vector<1x64xf32> to vector<4x64xf32>
    %652 = arith.addf %650, %651 : vector<4x64xf32>
    %653 = math.tanh %652 : vector<4x64xf32>
    %cst_222 = arith.constant 1.000000e+00 : f32
    %654 = vector.broadcast %cst_222 : f32 to vector<4x64xf32>
    %655 = arith.mulf %654, %653 : vector<4x64xf32>
    %656 = vector.extract_strided_slice %655 {offsets = [0, 0], sizes = [4, 16], strides = [1, 1]} : vector<4x64xf32> to vector<4x16xf32>
    %657 = vector.extract_strided_slice %655 {offsets = [0, 16], sizes = [4, 48], strides = [1, 1]} : vector<4x64xf32> to vector<4x48xf32>
    %cst_223 = arith.constant 5.000000e-01 : f32
    %658 = arith.mulf %cst_223, %604 : f32
    %659 = arith.addf %582, %656 : vector<4x16xf32>
    %660 = vector.broadcast %658 : f32 to vector<4x16xf32>
    %661 = arith.mulf %660, %659 : vector<4x16xf32>
    %662 = arith.addf %598, %661 : vector<4x16xf32>
    %663 = arith.addf %583, %657 : vector<4x48xf32>
    %664 = arith.mulf %663, %606 : vector<4x48xf32>
    %665 = vector.extract_strided_slice %664 {offsets = [0, 0], sizes = [4, 16], strides = [1, 1]} : vector<4x48xf32> to vector<4x16xf32>
    %666 = vector.extract_strided_slice %664 {offsets = [0, 16], sizes = [4, 16], strides = [1, 1]} : vector<4x48xf32> to vector<4x16xf32>
    %667 = arith.addf %665, %666 : vector<4x16xf32>
    %668 = vector.extract_strided_slice %664 {offsets = [0, 32], sizes = [4, 16], strides = [1, 1]} : vector<4x48xf32> to vector<4x16xf32>
    %669 = arith.addf %667, %668 : vector<4x16xf32>
    %cst_224 = arith.constant 5.000000e-01 : f32
    %670 = vector.broadcast %cst_224 : f32 to vector<4x16xf32>
    %671 = arith.mulf %670, %669 : vector<4x16xf32>
    %672 = arith.addf %662, %671 : vector<4x16xf32>
    %c6_225 = arith.constant 6 : index
    %c0_226 = arith.constant 0 : index
    %c0_227 = arith.constant 0 : index
    %673 = vector.load %arg9[%c6_225, %c0_226, %c0_227] : memref<8x4x16xf32, #tpu.memory_space<vmem>>, vector<1x4x16xf32>
    %674 = vector.shape_cast %673 : vector<1x4x16xf32> to vector<4x16xf32>
    %675 = vector.shape_cast %672 : vector<4x16xf32> to vector<1x4x16xf32>
    tpu.vector_store %arg9[%c6_225, %c0_226, %c0_227], %675 {strides = array<i32>} : memref<8x4x16xf32, #tpu.memory_space<vmem>>, vector<1x4x16xf32>,
    %c7 = arith.constant 7 : index
    %676 = memref.load %arg1[%c7] : memref<8xf32, #tpu.memory_space<smem>>
    %c6_228 = arith.constant 6 : index
    %677 = memref.load %arg1[%c6_228] : memref<8xf32, #tpu.memory_space<smem>>
    %678 = arith.subf %676, %677 : f32
    %c6_229 = arith.constant 6 : index
    %c0_230 = arith.constant 0 : index
    %c0_231 = arith.constant 0 : index
    %679 = vector.load %arg2[%c6_229, %c0_230, %c0_231] : memref<7x4x48xf32, #tpu.memory_space<vmem>>, vector<1x4x48xf32>
    %680 = vector.shape_cast %679 : vector<1x4x48xf32> to vector<4x48xf32>
    %cst_232 = arith.constant 2.000000e+00 : f32
    %681 = vector.broadcast %cst_232 : f32 to vector<4x16xf32>
    %682 = arith.mulf %681, %672 : vector<4x16xf32>
    %683 = arith.subf %682, %619 : vector<4x16xf32>
    %684 = vector.broadcast %678 : f32 to vector<4x16xf32>
    %685 = arith.mulf %656, %684 : vector<4x16xf32>
    %686 = arith.addf %683, %685 : vector<4x16xf32>
    %687 = arith.mulf %657, %680 : vector<4x48xf32>
    %688 = vector.extract_strided_slice %687 {offsets = [0, 0], sizes = [4, 16], strides = [1, 1]} : vector<4x48xf32> to vector<4x16xf32>
    %689 = vector.extract_strided_slice %687 {offsets = [0, 16], sizes = [4, 16], strides = [1, 1]} : vector<4x48xf32> to vector<4x16xf32>
    %690 = arith.addf %688, %689 : vector<4x16xf32>
    %691 = vector.extract_strided_slice %687 {offsets = [0, 32], sizes = [4, 16], strides = [1, 1]} : vector<4x48xf32> to vector<4x16xf32>
    %692 = arith.addf %690, %691 : vector<4x16xf32>
    %693 = arith.addf %686, %692 : vector<4x16xf32>
    %c7_233 = arith.constant 7 : index
    %694 = memref.load %arg1[%c7_233] : memref<8xf32, #tpu.memory_space<smem>>
    %cst_234 = arith.constant dense<0.000000e+00> : vector<4x64xf32>
    %695 = tpu.matmul %693, %16, %cst_234 {dimension_numbers = #tpu.dot_dimension_numbers<[1], [0], [0], [1], [0, 0, 1, 1], [], []>} : vector<4x16xf32>, vector<16x64xf32>, vector<4x64xf32> -> vector<4x64xf32>
    %696 = vector.broadcast %694 : f32 to vector<1x64xf32>
    %697 = arith.mulf %696, %15 : vector<1x64xf32>
    %698 = vector.broadcast %697 : vector<1x64xf32> to vector<4x64xf32>
    %699 = arith.addf %695, %698 : vector<4x64xf32>
    %700 = arith.addf %699, %174 : vector<4x64xf32>
    %cst_235 = arith.constant 0.908999979 : f32
    %701 = vector.broadcast %cst_235 : f32 to vector<4x64xf32>
    %702 = arith.mulf %701, %700 : vector<4x64xf32>
    %cst_236 = arith.constant 0.000000e+00 : f32
    %703 = vector.broadcast %cst_236 : f32 to vector<4x64xf32>
    %704 = arith.subf %703, %700 : vector<4x64xf32>
    %705 = math.exp %704 : vector<4x64xf32>
    %cst_237 = arith.constant 1.000000e+00 : f32
    %706 = vector.broadcast %cst_237 : f32 to vector<4x64xf32>
    %707 = arith.addf %706, %705 : vector<4x64xf32>
    %cst_238 = arith.constant 1.000000e+00 : f32
    %708 = vector.broadcast %cst_238 : f32 to vector<4x64xf32>
    %709 = arith.divf %708, %707 : vector<4x64xf32>
    %710 = arith.mulf %702, %709 : vector<4x64xf32>
    %cst_239 = arith.constant dense<0.000000e+00> : vector<4x64xf32>
    %711 = tpu.matmul %710, %19, %cst_239 {dimension_numbers = #tpu.dot_dimension_numbers<[1], [0], [0], [1], [0, 0, 1, 1], [], []>} : vector<4x64xf32>, vector<64x64xf32>, vector<4x64xf32> -> vector<4x64xf32>
    %712 = vector.broadcast %20 : vector<1x64xf32> to vector<4x64xf32>
    %713 = arith.addf %711, %712 : vector<4x64xf32>
    %cst_240 = arith.constant 0.908999979 : f32
    %714 = vector.broadcast %cst_240 : f32 to vector<4x64xf32>
    %715 = arith.mulf %714, %713 : vector<4x64xf32>
    %cst_241 = arith.constant 0.000000e+00 : f32
    %716 = vector.broadcast %cst_241 : f32 to vector<4x64xf32>
    %717 = arith.subf %716, %713 : vector<4x64xf32>
    %718 = math.exp %717 : vector<4x64xf32>
    %cst_242 = arith.constant 1.000000e+00 : f32
    %719 = vector.broadcast %cst_242 : f32 to vector<4x64xf32>
    %720 = arith.addf %719, %718 : vector<4x64xf32>
    %cst_243 = arith.constant 1.000000e+00 : f32
    %721 = vector.broadcast %cst_243 : f32 to vector<4x64xf32>
    %722 = arith.divf %721, %720 : vector<4x64xf32>
    %723 = arith.mulf %715, %722 : vector<4x64xf32>
    %cst_244 = arith.constant dense<0.000000e+00> : vector<4x64xf32>
    %724 = tpu.matmul %723, %21, %cst_244 {dimension_numbers = #tpu.dot_dimension_numbers<[1], [0], [0], [1], [0, 0, 1, 1], [], []>} : vector<4x64xf32>, vector<64x64xf32>, vector<4x64xf32> -> vector<4x64xf32>
    %725 = vector.broadcast %22 : vector<1x64xf32> to vector<4x64xf32>
    %726 = arith.addf %724, %725 : vector<4x64xf32>
    %727 = math.tanh %726 : vector<4x64xf32>
    %cst_245 = arith.constant 1.000000e+00 : f32
    %728 = vector.broadcast %cst_245 : f32 to vector<4x64xf32>
    %729 = arith.mulf %728, %727 : vector<4x64xf32>
    %730 = vector.extract_strided_slice %729 {offsets = [0, 0], sizes = [4, 16], strides = [1, 1]} : vector<4x64xf32> to vector<4x16xf32>
    %731 = vector.extract_strided_slice %729 {offsets = [0, 16], sizes = [4, 48], strides = [1, 1]} : vector<4x64xf32> to vector<4x48xf32>
    %cst_246 = arith.constant 5.000000e-01 : f32
    %732 = arith.mulf %cst_246, %678 : f32
    %733 = arith.addf %656, %730 : vector<4x16xf32>
    %734 = vector.broadcast %732 : f32 to vector<4x16xf32>
    %735 = arith.mulf %734, %733 : vector<4x16xf32>
    %736 = arith.addf %672, %735 : vector<4x16xf32>
    %737 = arith.addf %657, %731 : vector<4x48xf32>
    %738 = arith.mulf %737, %680 : vector<4x48xf32>
    %739 = vector.extract_strided_slice %738 {offsets = [0, 0], sizes = [4, 16], strides = [1, 1]} : vector<4x48xf32> to vector<4x16xf32>
    %740 = vector.extract_strided_slice %738 {offsets = [0, 16], sizes = [4, 16], strides = [1, 1]} : vector<4x48xf32> to vector<4x16xf32>
    %741 = arith.addf %739, %740 : vector<4x16xf32>
    %742 = vector.extract_strided_slice %738 {offsets = [0, 32], sizes = [4, 16], strides = [1, 1]} : vector<4x48xf32> to vector<4x16xf32>
    %743 = arith.addf %741, %742 : vector<4x16xf32>
    %cst_247 = arith.constant 5.000000e-01 : f32
    %744 = vector.broadcast %cst_247 : f32 to vector<4x16xf32>
    %745 = arith.mulf %744, %743 : vector<4x16xf32>
    %746 = arith.addf %736, %745 : vector<4x16xf32>
    %c7_248 = arith.constant 7 : index
    %c0_249 = arith.constant 0 : index
    %c0_250 = arith.constant 0 : index
    %747 = vector.load %arg9[%c7_248, %c0_249, %c0_250] : memref<8x4x16xf32, #tpu.memory_space<vmem>>, vector<1x4x16xf32>
    %748 = vector.shape_cast %747 : vector<1x4x16xf32> to vector<4x16xf32>
    %749 = vector.shape_cast %746 : vector<4x16xf32> to vector<1x4x16xf32>
    tpu.vector_store %arg9[%c7_248, %c0_249, %c0_250], %749 {strides = array<i32>} : memref<8x4x16xf32, #tpu.memory_space<vmem>>, vector<1x4x16xf32>,
    %c0_251 = arith.constant 0 : index
    %c0_252 = arith.constant 0 : index
    %c0_253 = arith.constant 0 : index
    %750 = vector.load %arg9[%c0_251, %c0_252, %c0_253] : memref<8x4x16xf32, #tpu.memory_space<vmem>>, vector<8x4x16xf32>
    %751 = vector.shape_cast %26 : vector<1x16xf32> to vector<1x1x16xf32>
    %752 = vector.broadcast %751 : vector<1x1x16xf32> to vector<8x4x16xf32>
    %753 = arith.mulf %750, %752 : vector<8x4x16xf32>
    %754 = vector.shape_cast %180 : vector<4x1xf32> to vector<1x4x1xf32>
    %755 = vector.broadcast %754 : vector<1x4x1xf32> to vector<8x4x16xf32>
    %756 = arith.addf %753, %755 : vector<8x4x16xf32>
    %cst_254 = arith.constant dense<0.000000e+00> : vector<8x4xf32>
    %757 = vector.multi_reduction <add>, %756, %cst_254 [2] : vector<8x4x16xf32> to vector<8x4xf32>
    %c0_255 = arith.constant 0 : index
    %c0_256 = arith.constant 0 : index
    %758 = vector.load %arg8[%c0_255, %c0_256] : memref<8x4xf32, #tpu.memory_space<vmem>>, vector<8x4xf32>
    tpu.vector_store %arg8[%c0_255, %c0_256], %757 {strides = array<i32>} : memref<8x4xf32, #tpu.memory_space<vmem>>, vector<8x4xf32>,
    return
  }
  func.func @transform_0(%arg0: i32) -> i32 {
    %c0_i32 = arith.constant 0 : i32
    %c0_i32_0 = arith.constant 0 : i32
    return %c0_i32 : i32
  }
  func.func @transform_1(%arg0: i32) -> (i32, i32, i32) {
    %c0_i32 = arith.constant 0 : i32
    %c0_i32_0 = arith.constant 0 : i32
    %c0_i32_1 = arith.constant 0 : i32
    %c0_i32_2 = arith.constant 0 : i32
    return %c0_i32, %c0_i32_0, %c0_i32_1 : i32, i32, i32
  }
  func.func @transform_2(%arg0: i32) -> (i32, i32) {
    %c0_i32 = arith.constant 0 : i32
    %c0_i32_0 = arith.constant 0 : i32
    %c0_i32_1 = arith.constant 0 : i32
    return %c0_i32, %c0_i32_0 : i32, i32
  }
  func.func @transform_3(%arg0: i32) -> (i32, i32) {
    %c0_i32 = arith.constant 0 : i32
    %c0_i32_0 = arith.constant 0 : i32
    %c0_i32_1 = arith.constant 0 : i32
    return %c0_i32, %c0_i32_0 : i32, i32
  }
  func.func @transform_4(%arg0: i32) -> (i32, i32) {
    %c0_i32 = arith.constant 0 : i32
    %c0_i32_0 = arith.constant 0 : i32
    %c0_i32_1 = arith.constant 0 : i32
    return %c0_i32, %c0_i32_0 : i32, i32
  }
  func.func @transform_5(%arg0: i32) -> (i32, i32) {
    %c0_i32 = arith.constant 0 : i32
    %c0_i32_0 = arith.constant 0 : i32
    %c0_i32_1 = arith.constant 0 : i32
    return %c0_i32, %c0_i32_0 : i32, i32
  }
  func.func @transform_6(%arg0: i32) -> (i32, i32) {
    %c0_i32 = arith.constant 0 : i32
    %c0_i32_0 = arith.constant 0 : i32
    %c0_i32_1 = arith.constant 0 : i32
    return %c0_i32, %c0_i32_0 : i32, i32
  }
  func.func @transform_7(%arg0: i32) -> (i32, i32) {
    %c0_i32 = arith.constant 0 : i32
    %c0_i32_0 = arith.constant 0 : i32
    %c0_i32_1 = arith.constant 0 : i32
    return %c0_i32, %c0_i32_0 : i32, i32
  }
}

</mosaic_0001>

<llo_original>
// kernel: tpu_custom_call.1
$region0: #{tpu_custom_call.1}
  #allocation0 [shape = 'u32[]', space=smem, size = 0x4, offset = 0x4, fixed_abs, tag = 'smem constant byte address 0x4 - core index']
  #allocation1 [shape = 'u32[144,128]{1,0:T(1,128)}', space=vmem, size = 0x12000, scoped, tag = 'internal scratch']
  #allocation2 [shape = 'f32[8,4,16]{2,1,0:T(4,128)}', space=vmem, size = 0x4000, scoped, tag = 'scratch operand']
  %s0 = inlined_call_operand.vmem [shape: f32[8], index: 0, kind: input, shape index: {}]
  %s1 = inlined_call_operand.hbm [shape: f32[7,4,48], index: 1, kind: input, shape index: {}]
  %s2 = inlined_call_operand.vmem [shape: f32[4,1], index: 2, kind: input, shape index: {}]
  %s3 = inlined_call_operand.vmem [shape: f32[4,2], index: 3, kind: input, shape index: {}]
  %s4 = inlined_call_operand.vmem [shape: f32[4,2], index: 4, kind: input, shape index: {}]
  %s5 = inlined_call_operand.vmem [shape: f32[4,2], index: 5, kind: input, shape index: {}]
  %s6 = inlined_call_operand.hbm [shape: f32[456,128], index: 6, kind: input, shape index: {}]
  %s7 = inlined_call_operand.vmem [shape: f32[8,4], index: 7, kind: output, shape index: {}]
  %s8 = sld [smem:[#allocation0]]
  $region50: #{tpu_custom_call.1} parent=0
    _
  %s10 = ssub.s32 1, %s8
  %s11 = scalar_select 0, %s10, %s8
  $region1: #{tpu_custom_call.1} parent=0
    #allocation3 [shape = 'u8[512]{0}', space=smem, size = 0x200, scoped, tag = 'input window, operand 0, single buffered']
    #allocation4 [shape = 's32[1]{0}', space=sflag, size = 0x4, scoped, tag = 'scoped memory for tpu_custom_call.1']
    #allocation5 [shape = 's32[1]{0}', space=sflag, size = 0x4, scoped, tag = 'scoped memory for tpu_custom_call.1']
    #allocation6 [shape = 'u8[14336]{0}', space=vmem, size = 0x3800, scoped, tag = 'input window, operand 1, single buffered']
    #allocation7 [shape = 'u8[233472]{0}', space=vmem, size = 0x39000, scoped, tag = 'input window, operand 6, single buffered']
    #allocation8 [shape = 's32[1]{0}', space=sflag, size = 0x4, scoped, tag = 'scoped memory for tpu_custom_call.1']
    %12 = vsyncpa [#allocation5], 0
    %13 = vsyncpa [#allocation4], 0
    %14 = vsyncpa [#allocation8], 0
    // Predicated region
    $region2: #{tpu_custom_call.1} parent=1 // pred_check
      _
    $region3: #{tpu_custom_call.1} parent=1 // pred_check_branch
      %16 = sbr.rel (0) target = $region5
    $region4: #{tpu_custom_call.1} parent=1 // pred_region
      %s18 = ssub.s32 16, 16
      %19 = vsyncadd [#allocation5], %s18
      %s21 = sshll.u32 %s0, 4
      %s22 = int_to_ptr.vmem [resolvable:$true] %s21
      %24 = dma.vmem_to_smem %s22, 16, [#allocation3], [#allocation5]
    $region5: #{tpu_custom_call.1} parent=1 // pred_fallthru
      _
    // Predicated region
    $region6: #{tpu_custom_call.1} parent=1 // pred_check
      _
    $region7: #{tpu_custom_call.1} parent=1 // pred_check_branch
      %26 = sbr.rel (0) target = $region9
    $region8: #{tpu_custom_call.1} parent=1 // pred_region
      %s28 = ssub.s32 448, 448
      %29 = vsyncadd [#allocation4], %s28
      %s30 = sshll.u32 [#allocation6], 4
      %s31 = int_to_ptr.vmem [resolvable:$true] %s30
      %36 = dma.hbm_to_vmem [thread:$0]  %s1, 448, %s31, [#allocation4], 64, 64, 4
    $region9: #{tpu_custom_call.1} parent=1 // pred_fallthru
      _
    // Predicated region
    $region10: #{tpu_custom_call.1} parent=1 // pred_check
      _
    $region11: #{tpu_custom_call.1} parent=1 // pred_check_branch
      %38 = sbr.rel (0) target = $region13
    $region12: #{tpu_custom_call.1} parent=1 // pred_region
      _
    $region13: #{tpu_custom_call.1} parent=1 // pred_fallthru
      _
    // Predicated region
    $region14: #{tpu_custom_call.1} parent=1 // pred_check
      _
    $region15: #{tpu_custom_call.1} parent=1 // pred_check_branch
      %40 = sbr.rel (0) target = $region17
    $region16: #{tpu_custom_call.1} parent=1 // pred_region
      _
    $region17: #{tpu_custom_call.1} parent=1 // pred_fallthru
      _
    // Predicated region
    $region18: #{tpu_custom_call.1} parent=1 // pred_check
      _
    $region19: #{tpu_custom_call.1} parent=1 // pred_check_branch
      %42 = sbr.rel (0) target = $region21
    $region20: #{tpu_custom_call.1} parent=1 // pred_region
      _
    $region21: #{tpu_custom_call.1} parent=1 // pred_fallthru
      _
    // Predicated region
    $region22: #{tpu_custom_call.1} parent=1 // pred_check
      _
    $region23: #{tpu_custom_call.1} parent=1 // pred_check_branch
      %44 = sbr.rel (0) target = $region25
    $region24: #{tpu_custom_call.1} parent=1 // pred_region
      _
    $region25: #{tpu_custom_call.1} parent=1 // pred_fallthru
      _
    // Predicated region
    $region26: #{tpu_custom_call.1} parent=1 // pred_check
      _
    $region27: #{tpu_custom_call.1} parent=1 // pred_check_branch
      %46 = sbr.rel (0) target = $region29
    $region28: #{tpu_custom_call.1} parent=1 // pred_region
      %s48 = ssub.s32 7296, 7296
      %49 = vsyncadd [#allocation8], %s48
      %s50 = sshll.u32 [#allocation7], 4
      %s51 = int_to_ptr.vmem [resolvable:$true] %s50
      %56 = dma.hbm_to_vmem [thread:$0]  %s6, 7296, %s51, [#allocation8], 128, 128, 8
    $region29: #{tpu_custom_call.1} parent=1 // pred_fallthru
      _
    // Predicated region
    $region30: #{tpu_custom_call.1} parent=1 // pred_check
      _
    $region31: #{tpu_custom_call.1} parent=1 // pred_check_branch
      %58 = sbr.rel (0) target = $region33
    $region32: #{tpu_custom_call.1} parent=1 // pred_region
      %59 = dma.done [#allocation5], 16
    $region33: #{tpu_custom_call.1} parent=1 // pred_fallthru
      _
    // Predicated region
    $region34: #{tpu_custom_call.1} parent=1 // pred_check
      _
    $region35: #{tpu_custom_call.1} parent=1 // pred_check_branch
      %61 = sbr.rel (0) target = $region37
    $region36: #{tpu_custom_call.1} parent=1 // pred_region
      %62 = dma.done [#allocation4], 448
    $region37: #{tpu_custom_call.1} parent=1 // pred_fallthru
      _
    // Predicated region
    $region38: #{tpu_custom_call.1} parent=1 // pred_check
      _
    $region39: #{tpu_custom_call.1} parent=1 // pred_check_branch
      %64 = sbr.rel (0) target = $region41
    $region40: #{tpu_custom_call.1} parent=1 // pred_region
      %65 = dma.done [#allocation8], 7296
    $region41: #{tpu_custom_call.1} parent=1 // pred_fallthru
      _
    %66 = sfence
    %v67 = vld [vmem:[#allocation7] sm:$0x3]
    %v68 = vld [vmem:[#allocation7 + $0x8] sm:$0x1]
    %v69 = vld [vmem:[#allocation7 + $0x10] sm:$0xff]
    %v70 = vld [vmem:[#allocation7 + $0x18] sm:$0xff]
    %v71 = vld [vmem:[#allocation7 + $0x20] sm:$0xff]
    %v72 = vld [vmem:[#allocation7 + $0x28] sm:$0xff]
    %v73 = vld [vmem:[#allocation7 + $0x30] sm:$0x1]
    %v74 = vld [vmem:[#allocation7 + $0x38] sm:$0xff]
    %v75 = vld [vmem:[#allocation7 + $0x40] sm:$0xff]
    %v76 = vld [vmem:[#allocation7 + $0x48] sm:$0xff]
    %v77 = vld [vmem:[#allocation7 + $0x50] sm:$0xff]
    %v78 = vld [vmem:[#allocation7 + $0x58] sm:$0x1]
    %v79 = vld [vmem:[#allocation7 + $0x60] sm:$0x1]
    %v80 = vld [vmem:[#allocation7 + $0x68] sm:$0xff]
    %v81 = vld [vmem:[#allocation7 + $0x70] sm:$0xff]
    %v82 = vld [vmem:[#allocation7 + $0x78] sm:$0x1]
    %v83 = vld [vmem:[#allocation7 + $0x80] sm:$0xff]
    %v84 = vld [vmem:[#allocation7 + $0x88] sm:$0xff]
    %v85 = vld [vmem:[#allocation7 + $0x90] sm:$0xff]
    %v86 = vld [vmem:[#allocation7 + $0x98] sm:$0xff]
    %v87 = vld [vmem:[#allocation7 + $0xa0] sm:$0x1]
    %v88 = vld [vmem:[#allocation7 + $0xa8] sm:$0xff]
    %v89 = vld [vmem:[#allocation7 + $0xb0] sm:$0xff]
    %v90 = vld [vmem:[#allocation7 + $0xb8] sm:$0xff]
    %v91 = vld [vmem:[#allocation7 + $0xc0] sm:$0xff]
    %v92 = vld [vmem:[#allocation7 + $0xc8] sm:$0x1]
    %v93 = vld [vmem:[#allocation7 + $0xd0] sm:$0x1]
    %v94 = vld [vmem:[#allocation7 + $0xd8] sm:$0x1]
    %v95 = vld [vmem:[#allocation7 + $0xe0] sm:$0x1]
    %v96 = vld [vmem:[#allocation7 + $0xe8] sm:$0xff]
    %v97 = vld [vmem:[#allocation7 + $0xf0] sm:$0xff]
    %v98 = vld [vmem:[#allocation7 + $0xf8] sm:$0x1]
    %v99 = vld [vmem:[#allocation7 + $0x100] sm:$0x1]
    %v100 = vld [vmem:[#allocation7 + $0x108] sm:$0xff]
    %v101 = vld [vmem:[#allocation7 + $0x110] sm:$0xff]
    %v102 = vld [vmem:[#allocation7 + $0x118] sm:$0xff]
    %v103 = vld [vmem:[#allocation7 + $0x120] sm:$0xff]
    %v104 = vld [vmem:[#allocation7 + $0x128] sm:$0xff]
    %v105 = vld [vmem:[#allocation7 + $0x130] sm:$0xff]
    %v106 = vld [vmem:[#allocation7 + $0x138] sm:$0xff]
    %v107 = vld [vmem:[#allocation7 + $0x140] sm:$0xff]
    %v108 = vld [vmem:[#allocation7 + $0x148] sm:$0x1]
    %v109 = vld [vmem:[#allocation7 + $0x150] sm:$0xff]
    %v110 = vld [vmem:[#allocation7 + $0x158] sm:$0xff]
    %v111 = vld [vmem:[#allocation7 + $0x160] sm:$0xff]
    %v112 = vld [vmem:[#allocation7 + $0x168] sm:$0xff]
    %v113 = vld [vmem:[#allocation7 + $0x170] sm:$0xff]
    %v114 = vld [vmem:[#allocation7 + $0x178] sm:$0xff]
    %v115 = vld [vmem:[#allocation7 + $0x180] sm:$0xff]
    %v116 = vld [vmem:[#allocation7 + $0x188] sm:$0xff]
    %v117 = vld [vmem:[#allocation7 + $0x190] sm:$0x1]
    %v118 = vld [vmem:[#allocation7 + $0x198] sm:$0x1]
    %v119 = vld [vmem:[#allocation7 + $0x1a0] sm:$0x1]
    %v120 = vld [vmem:[#allocation7 + $0x1a8] sm:$0x1]
    %v121 = vld [vmem:[#allocation7 + $0x1b0] sm:$0x1]
    %v122 = vld [vmem:[#allocation7 + $0x1b8] sm:$0x1]
    %v123 = vld [vmem:[#allocation7 + $0x1c0] sm:$0x1]
    %v124 = vld [vmem:[%s3] sm:$0xf]
    %126 = vset.pattern.permute.xlu0 0
    %127 = vperm.xlu0 %126, %v124
    %v128 = vpop.permute.xlu0 %127
    %v130 = vlaneseq
    %v131 = vshrl.u32 %v130, 7
    %v132 = vsub.s32 0, %v131
    %v133 = vrot.slane %v67, %v132
    %v134 = vmul.f32 %v128, %v133
    %v135 = vlaneseq
    %v136 = vshrl.u32 %v135, 7
    %v137 = vsub.s32 0, %v136
    %v138 = vrot.slane %v68, %v137
    %v139 = vadd.f32 %v138, %v134
    %140 = vset.pattern.permute.xlu0 1
    %141 = vperm.xlu0 %140, %v124
    %v142 = vpop.permute.xlu0 %141
    %v144 = vlaneseq
    %v145 = vshrl.u32 %v144, 7
    %v146 = vsub.s32 1, %v145
    %v147 = vrot.slane %v67, %v146
    %v148 = vmul.f32 %v142, %v147
    %v149 = vadd.f32 %v139, %v148
    %v150 = vmul.f32 %v149, 0.909
    %v151 = vsub.f32 0.0, %v149
    %v152 = vmul.f32 %v151, 1.442695
    %v153 = vpow.pop %v152
    %v154 = vadd.f32 %v153, 1.0
    %v155 = vrcp.pop %v154
    %v156 = vmul.f32 1.0, %v155
    %v157 = vmul.f32 %v150, %v156
    %v158 = vlaneseq
    %v159 = vshrl.u32 %v158, 7
    %v160 = vsub.s32 0, %v159
    %v161 = vrot.slane %v73, %v160
    %vm162 = vcmask 261120
    %v164 = vsel %vm162, %v157, 0
    %166 = vmatprep.subr.mxu0 0.0
    %167 = vmatpush1.msra.mxu0 %v69
    %168 = vmatprep.subr.mxu0 0.0
    %169 = vmatpush1.msra.mxu0 %v70
    %170 = vmatprep.subr.mxu0 0.0
    %171 = vmatpush1.msra.mxu0 %v71
    %172 = vmatprep.subr.mxu0 0.0
    %173 = vmatpush1.msra.mxu0 %v72
    %174 = vmatprep.subr.mxu0 0.0
    %175 = vmatpush1.msra.mxu0 0.0
    %176 = vmatprep.subr.mxu0 0.0
    %177 = vmatpush1.msra.mxu0 0.0
    %178 = vmatprep.subr.mxu0 0.0
    %179 = vmatpush1.msra.mxu0 0.0
    %180 = vmatprep.subr.mxu0 0.0
    %181 = vmatpush1.msra.mxu0 0.0
    %182 = vmatprep.subr.mxu0 0.0
    %183 = vmatpush1.msra.mxu0 0.0
    %184 = vmatprep.subr.mxu0 0.0
    %185 = vmatpush1.msra.mxu0 0.0
    %186 = vmatprep.subr.mxu0 0.0
    %187 = vmatpush1.msra.mxu0 0.0
    %188 = vmatprep.subr.mxu0 0.0
    %189 = vmatpush1.msra.mxu0 0.0
    %190 = vmatprep.subr.mxu0 0.0
    %191 = vmatpush1.msra.mxu0 0.0
    %192 = vmatprep.subr.mxu0 0.0
    %193 = vmatpush1.msra.mxu0 0.0
    %194 = vmatprep.subr.mxu0 0.0
    %195 = vmatpush1.msra.mxu0 0.0
    %196 = vmatprep.subr.mxu0 0.0
    %197 = vmatpush1.msra.mxu0 0.0
    %198 = vmatprep.subr.mxu0 0.0
    %199 = vmatpush1.msra.mxu0 0.0
    %200 = vmatprep.subr.mxu0 0.0
    %201 = vmatpush1.msra.mxu0 0.0
    %202 = vmatprep.subr.mxu0 0.0
    %203 = vmatpush1.msra.mxu0 0.0
    %204 = vmatprep.subr.mxu0 0.0
    %205 = vmatpush1.msra.mxu0 0.0
    %206 = vmatprep.subr.mxu0 0.0
    %207 = vmatpush1.msra.mxu0 0.0
    %208 = vmatprep.subr.mxu0 0.0
    %209 = vmatpush1.msra.mxu0 0.0
    %210 = vmatprep.subr.mxu0 0.0
    %211 = vmatpush1.msra.mxu0 0.0
    %212 = vmatprep.subr.mxu0 0.0
    %213 = vmatpush1.msra.mxu0 0.0
    %214 = vmatprep.subr.mxu0 0.0
    %215 = vmatpush1.msra.mxu0 0.0
    %216 = vmatprep.subr.mxu0 0.0
    %217 = vmatpush1.msra.mxu0 0.0
    %218 = vmatprep.subr.mxu0 0.0
    %219 = vmatpush1.msra.mxu0 0.0
    %220 = vmatprep.subr.mxu0 0.0
    %221 = vmatpush1.msra.mxu0 0.0
    %222 = vmatprep.subr.mxu0 0.0
    %223 = vmatpush1.msra.mxu0 0.0
    %224 = vmatprep.subr.mxu0 0.0
    %225 = vmatpush1.msra.mxu0 0.0
    %226 = vmatprep.subr.mxu0 0.0
    %227 = vmatpush1.msra.mxu0 0.0
    %228 = vmatprep.subr.mxu0 0.0
    %229 = vmatpush1.msra.mxu0 0.0
    %230 = vmatprep.mubr.f32.mxu0 0.0
    %231 = vmatmul.mubr.f32.gmra.mrb[0].mxu0 %v164
    %v232 = vpop.f32.mrb[0].mxu0
    %v233 = vadd.f32 %v161, %v232
    %v234 = vpop.f32.mrb[0].mxu0
    %235 = vdwg.mxu0
    %v236 = vmul.f32 %v233, 0.909
    %v237 = vsub.f32 0.0, %v233
    %v238 = vmul.f32 %v237, 1.442695
    %v239 = vpow.pop %v238
    %v240 = vadd.f32 %v239, 1.0
    %v241 = vrcp.pop %v240
    %v242 = vmul.f32 1.0, %v241
    %v243 = vmul.f32 %v236, %v242
    %v244 = vlaneseq
    %v245 = vshrl.u32 %v244, 7
    %v246 = vsub.s32 0, %v245
    %v247 = vrot.slane %v78, %v246
    %v249 = vsel %vm162, %v243, 0
    %251 = vmatprep.subr.mxu0 0.0
    %252 = vmatpush1.msra.mxu0 %v74
    %253 = vmatprep.subr.mxu0 0.0
    %254 = vmatpush1.msra.mxu0 %v75
    %255 = vmatprep.subr.mxu0 0.0
    %256 = vmatpush1.msra.mxu0 %v76
    %257 = vmatprep.subr.mxu0 0.0
    %258 = vmatpush1.msra.mxu0 %v77
    %259 = vmatprep.subr.mxu0 0.0
    %260 = vmatpush1.msra.mxu0 0.0
    %261 = vmatprep.subr.mxu0 0.0
    %262 = vmatpush1.msra.mxu0 0.0
    %263 = vmatprep.subr.mxu0 0.0
    %264 = vmatpush1.msra.mxu0 0.0
    %265 = vmatprep.subr.mxu0 0.0
    %266 = vmatpush1.msra.mxu0 0.0
    %267 = vmatprep.subr.mxu0 0.0
    %268 = vmatpush1.msra.mxu0 0.0
    %269 = vmatprep.subr.mxu0 0.0
    %270 = vmatpush1.msra.mxu0 0.0
    %271 = vmatprep.subr.mxu0 0.0
    %272 = vmatpush1.msra.mxu0 0.0
    %273 = vmatprep.subr.mxu0 0.0
    %274 = vmatpush1.msra.mxu0 0.0
    %275 = vmatprep.subr.mxu0 0.0
    %276 = vmatpush1.msra.mxu0 0.0
    %277 = vmatprep.subr.mxu0 0.0
    %278 = vmatpush1.msra.mxu0 0.0
    %279 = vmatprep.subr.mxu0 0.0
    %280 = vmatpush1.msra.mxu0 0.0
    %281 = vmatprep.subr.mxu0 0.0
    %282 = vmatpush1.msra.mxu0 0.0
    %283 = vmatprep.subr.mxu0 0.0
    %284 = vmatpush1.msra.mxu0 0.0
    %285 = vmatprep.subr.mxu0 0.0
    %286 = vmatpush1.msra.mxu0 0.0
    %287 = vmatprep.subr.mxu0 0.0
    %288 = vmatpush1.msra.mxu0 0.0
    %289 = vmatprep.subr.mxu0 0.0
    %290 = vmatpush1.msra.mxu0 0.0
    %291 = vmatprep.subr.mxu0 0.0
    %292 = vmatpush1.msra.mxu0 0.0
    %293 = vmatprep.subr.mxu0 0.0
    %294 = vmatpush1.msra.mxu0 0.0
    %295 = vmatprep.subr.mxu0 0.0
    %296 = vmatpush1.msra.mxu0 0.0
    %297 = vmatprep.subr.mxu0 0.0
    %298 = vmatpush1.msra.mxu0 0.0
    %299 = vmatprep.subr.mxu0 0.0
    %300 = vmatpush1.msra.mxu0 0.0
    %301 = vmatprep.subr.mxu0 0.0
    %302 = vmatpush1.msra.mxu0 0.0
    %303 = vmatprep.subr.mxu0 0.0
    %304 = vmatpush1.msra.mxu0 0.0
    %305 = vmatprep.subr.mxu0 0.0
    %306 = vmatpush1.msra.mxu0 0.0
    %307 = vmatprep.subr.mxu0 0.0
    %308 = vmatpush1.msra.mxu0 0.0
    %309 = vmatprep.subr.mxu0 0.0
    %310 = vmatpush1.msra.mxu0 0.0
    %311 = vmatprep.subr.mxu0 0.0
    %312 = vmatpush1.msra.mxu0 0.0
    %313 = vmatprep.subr.mxu0 0.0
    %314 = vmatpush1.msra.mxu0 0.0
    %315 = vmatprep.mubr.f32.mxu0 0.0
    %316 = vmatmul.mubr.f32.gmra.mrb[0].mxu0 %v249
    %v317 = vpop.f32.mrb[0].mxu0
    %v318 = vadd.f32 %v247, %v317
    %v319 = vpop.f32.mrb[0].mxu0
    %320 = vdwg.mxu0
    %v321 = vld [vmem:[%s4] sm:$0xf]
    %v322 = vmul.f32 %v79, 0.0
    %v323 = vlaneseq
    %v324 = vshrl.u32 %v323, 7
    %v325 = vsub.s32 0, %v324
    %v326 = vrot.slane %v322, %v325
    %vm327 = vcmask 130048
    %v329 = vsel %vm327, %v318, 0
    %331 = vmatprep.subr.mxu0 0.0
    %332 = vmatpush1.msra.mxu0 %v80
    %333 = vmatprep.subr.mxu0 0.0
    %334 = vmatpush1.msra.mxu0 %v81
    %335 = vmatprep.subr.mxu0 0.0
    %336 = vmatpush1.msra.mxu0 0.0
    %337 = vmatprep.subr.mxu0 0.0
    %338 = vmatpush1.msra.mxu0 0.0
    %339 = vmatprep.subr.mxu0 0.0
    %340 = vmatpush1.msra.mxu0 0.0
    %341 = vmatprep.subr.mxu0 0.0
    %342 = vmatpush1.msra.mxu0 0.0
    %343 = vmatprep.subr.mxu0 0.0
    %344 = vmatpush1.msra.mxu0 0.0
    %345 = vmatprep.subr.mxu0 0.0
    %346 = vmatpush1.msra.mxu0 0.0
    %347 = vmatprep.subr.mxu0 0.0
    %348 = vmatpush1.msra.mxu0 0.0
    %349 = vmatprep.subr.mxu0 0.0
    %350 = vmatpush1.msra.mxu0 0.0
    %351 = vmatprep.subr.mxu0 0.0
    %352 = vmatpush1.msra.mxu0 0.0
    %353 = vmatprep.subr.mxu0 0.0
    %354 = vmatpush1.msra.mxu0 0.0
    %355 = vmatprep.subr.mxu0 0.0
    %356 = vmatpush1.msra.mxu0 0.0
    %357 = vmatprep.subr.mxu0 0.0
    %358 = vmatpush1.msra.mxu0 0.0
    %359 = vmatprep.subr.mxu0 0.0
    %360 = vmatpush1.msra.mxu0 0.0
    %361 = vmatprep.subr.mxu0 0.0
    %362 = vmatpush1.msra.mxu0 0.0
    %363 = vmatprep.subr.mxu0 0.0
    %364 = vmatpush1.msra.mxu0 0.0
    %365 = vmatprep.subr.mxu0 0.0
    %366 = vmatpush1.msra.mxu0 0.0
    %367 = vmatprep.subr.mxu0 0.0
    %368 = vmatpush1.msra.mxu0 0.0
    %369 = vmatprep.subr.mxu0 0.0
    %370 = vmatpush1.msra.mxu0 0.0
    %371 = vmatprep.subr.mxu0 0.0
    %372 = vmatpush1.msra.mxu0 0.0
    %373 = vmatprep.subr.mxu0 0.0
    %374 = vmatpush1.msra.mxu0 0.0
    %375 = vmatprep.subr.mxu0 0.0
    %376 = vmatpush1.msra.mxu0 0.0
    %377 = vmatprep.subr.mxu0 0.0
    %378 = vmatpush1.msra.mxu0 0.0
    %379 = vmatprep.subr.mxu0 0.0
    %380 = vmatpush1.msra.mxu0 0.0
    %381 = vmatprep.subr.mxu0 0.0
    %382 = vmatpush1.msra.mxu0 0.0
    %383 = vmatprep.subr.mxu0 0.0
    %384 = vmatpush1.msra.mxu0 0.0
    %385 = vmatprep.subr.mxu0 0.0
    %386 = vmatpush1.msra.mxu0 0.0
    %387 = vmatprep.subr.mxu0 0.0
    %388 = vmatpush1.msra.mxu0 0.0
    %389 = vmatprep.subr.mxu0 0.0
    %390 = vmatpush1.msra.mxu0 0.0
    %391 = vmatprep.subr.mxu0 0.0
    %392 = vmatpush1.msra.mxu0 0.0
    %393 = vmatprep.subr.mxu0 0.0
    %394 = vmatpush1.msra.mxu0 0.0
    %395 = vmatprep.mubr.f32.mxu0 0.0
    %396 = vmatmul.mubr.f32.gmra.mrb[0].mxu0 %v329
    %v397 = vpop.f32.mrb[0].mxu0
    %v398 = vadd.f32 %v326, %v397
    %v399 = vpop.f32.mrb[0].mxu0
    %400 = vdwg.mxu0
    %v401 = vlaneseq
    %v402 = vshrl.u32 %v401, 7
    %v403 = vsub.s32 0, %v402
    %v404 = vrot.slane %v82, %v403
    %v405 = vadd.f32 %v398, %v404
    %v406 = vmul.f32 %v405, 0.909
    %v407 = vsub.f32 0.0, %v405
    %v408 = vmul.f32 %v407, 1.442695
    %v409 = vpow.pop %v408
    %v410 = vadd.f32 %v409, 1.0
    %v411 = vrcp.pop %v410
    %v412 = vmul.f32 1.0, %v411
    %v413 = vmul.f32 %v406, %v412
    %v414 = vlaneseq
    %v415 = vshrl.u32 %v414, 7
    %v416 = vsub.s32 0, %v415
    %v417 = vrot.slane %v87, %v416
    %v419 = vsel %vm162, %v413, 0
    %421 = vmatprep.subr.mxu0 0.0
    %422 = vmatpush1.msra.mxu0 %v83
    %423 = vmatprep.subr.mxu0 0.0
    %424 = vmatpush1.msra.mxu0 %v84
    %425 = vmatprep.subr.mxu0 0.0
    %426 = vmatpush1.msra.mxu0 %v85
    %427 = vmatprep.subr.mxu0 0.0
    %428 = vmatpush1.msra.mxu0 %v86
    %429 = vmatprep.subr.mxu0 0.0
    %430 = vmatpush1.msra.mxu0 0.0
    %431 = vmatprep.subr.mxu0 0.0
    %432 = vmatpush1.msra.mxu0 0.0
    %433 = vmatprep.subr.mxu0 0.0
    %434 = vmatpush1.msra.mxu0 0.0
    %435 = vmatprep.subr.mxu0 0.0
    %436 = vmatpush1.msra.mxu0 0.0
    %437 = vmatprep.subr.mxu0 0.0
    %438 = vmatpush1.msra.mxu0 0.0
    %439 = vmatprep.subr.mxu0 0.0
    %440 = vmatpush1.msra.mxu0 0.0
    %441 = vmatprep.subr.mxu0 0.0
    %442 = vmatpush1.msra.mxu0 0.0
    %443 = vmatprep.subr.mxu0 0.0
    %444 = vmatpush1.msra.mxu0 0.0
    %445 = vmatprep.subr.mxu0 0.0
    %446 = vmatpush1.msra.mxu0 0.0
    %447 = vmatprep.subr.mxu0 0.0
    %448 = vmatpush1.msra.mxu0 0.0
    %449 = vmatprep.subr.mxu0 0.0
    %450 = vmatpush1.msra.mxu0 0.0
    %451 = vmatprep.subr.mxu0 0.0
    %452 = vmatpush1.msra.mxu0 0.0
    %453 = vmatprep.subr.mxu0 0.0
    %454 = vmatpush1.msra.mxu0 0.0
    %455 = vmatprep.subr.mxu0 0.0
    %456 = vmatpush1.msra.mxu0 0.0
    %457 = vmatprep.subr.mxu0 0.0
    %458 = vmatpush1.msra.mxu0 0.0
    %459 = vmatprep.subr.mxu0 0.0
    %460 = vmatpush1.msra.mxu0 0.0
    %461 = vmatprep.subr.mxu0 0.0
    %462 = vmatpush1.msra.mxu0 0.0
    %463 = vmatprep.subr.mxu0 0.0
    %464 = vmatpush1.msra.mxu0 0.0
    %465 = vmatprep.subr.mxu0 0.0
    %466 = vmatpush1.msra.mxu0 0.0
    %467 = vmatprep.subr.mxu0 0.0
    %468 = vmatpush1.msra.mxu0 0.0
    %469 = vmatprep.subr.mxu0 0.0
    %470 = vmatpush1.msra.mxu0 0.0
    %471 = vmatprep.subr.mxu0 0.0
    %472 = vmatpush1.msra.mxu0 0.0
    %473 = vmatprep.subr.mxu0 0.0
    %474 = vmatpush1.msra.mxu0 0.0
    %475 = vmatprep.subr.mxu0 0.0
    %476 = vmatpush1.msra.mxu0 0.0
    %477 = vmatprep.subr.mxu0 0.0
    %478 = vmatpush1.msra.mxu0 0.0
    %479 = vmatprep.subr.mxu0 0.0
    %480 = vmatpush1.msra.mxu0 0.0
    %481 = vmatprep.subr.mxu0 0.0
    %482 = vmatpush1.msra.mxu0 0.0
    %483 = vmatprep.subr.mxu0 0.0
    %484 = vmatpush1.msra.mxu0 0.0
    %485 = vmatprep.mubr.f32.mxu0 0.0
    %486 = vmatmul.mubr.f32.gmra.mrb[0].mxu0 %v419
    %v487 = vpop.f32.mrb[0].mxu0
    %v488 = vadd.f32 %v417, %v487
    %v489 = vpop.f32.mrb[0].mxu0
    %490 = vdwg.mxu0
    %v491 = vmul.f32 %v488, 0.909
    %v492 = vsub.f32 0.0, %v488
    %v493 = vmul.f32 %v492, 1.442695
    %v494 = vpow.pop %v493
    %v495 = vadd.f32 %v494, 1.0
    %v496 = vrcp.pop %v495
    %v497 = vmul.f32 1.0, %v496
    %v498 = vmul.f32 %v491, %v497
    %v499 = vlaneseq
    %v500 = vshrl.u32 %v499, 7
    %v501 = vsub.s32 0, %v500
    %v502 = vrot.slane %v92, %v501
    %v504 = vsel %vm162, %v498, 0
    %506 = vmatprep.subr.mxu0 0.0
    %507 = vmatpush1.msra.mxu0 %v88
    %508 = vmatprep.subr.mxu0 0.0
    %509 = vmatpush1.msra.mxu0 %v89
    %510 = vmatprep.subr.mxu0 0.0
    %511 = vmatpush1.msra.mxu0 %v90
    %512 = vmatprep.subr.mxu0 0.0
    %513 = vmatpush1.msra.mxu0 %v91
    %514 = vmatprep.subr.mxu0 0.0
    %515 = vmatpush1.msra.mxu0 0.0
    %516 = vmatprep.subr.mxu0 0.0
    %517 = vmatpush1.msra.mxu0 0.0
    %518 = vmatprep.subr.mxu0 0.0
    %519 = vmatpush1.msra.mxu0 0.0
    %520 = vmatprep.subr.mxu0 0.0
    %521 = vmatpush1.msra.mxu0 0.0
    %522 = vmatprep.subr.mxu0 0.0
    %523 = vmatpush1.msra.mxu0 0.0
    %524 = vmatprep.subr.mxu0 0.0
    %525 = vmatpush1.msra.mxu0 0.0
    %526 = vmatprep.subr.mxu0 0.0
    %527 = vmatpush1.msra.mxu0 0.0
    %528 = vmatprep.subr.mxu0 0.0
    %529 = vmatpush1.msra.mxu0 0.0
    %530 = vmatprep.subr.mxu0 0.0
    %531 = vmatpush1.msra.mxu0 0.0
    %532 = vmatprep.subr.mxu0 0.0
    %533 = vmatpush1.msra.mxu0 0.0
    %534 = vmatprep.subr.mxu0 0.0
    %535 = vmatpush1.msra.mxu0 0.0
    %536 = vmatprep.subr.mxu0 0.0
    %537 = vmatpush1.msra.mxu0 0.0
    %538 = vmatprep.subr.mxu0 0.0
    %539 = vmatpush1.msra.mxu0 0.0
    %540 = vmatprep.subr.mxu0 0.0
    %541 = vmatpush1.msra.mxu0 0.0
    %542 = vmatprep.subr.mxu0 0.0
    %543 = vmatpush1.msra.mxu0 0.0
    %544 = vmatprep.subr.mxu0 0.0
    %545 = vmatpush1.msra.mxu0 0.0
    %546 = vmatprep.subr.mxu0 0.0
    %547 = vmatpush1.msra.mxu0 0.0
    %548 = vmatprep.subr.mxu0 0.0
    %549 = vmatpush1.msra.mxu0 0.0
    %550 = vmatprep.subr.mxu0 0.0
    %551 = vmatpush1.msra.mxu0 0.0
    %552 = vmatprep.subr.mxu0 0.0
    %553 = vmatpush1.msra.mxu0 0.0
    %554 = vmatprep.subr.mxu0 0.0
    %555 = vmatpush1.msra.mxu0 0.0
    %556 = vmatprep.subr.mxu0 0.0
    %557 = vmatpush1.msra.mxu0 0.0
    %558 = vmatprep.subr.mxu0 0.0
    %559 = vmatpush1.msra.mxu0 0.0
    %560 = vmatprep.subr.mxu0 0.0
    %561 = vmatpush1.msra.mxu0 0.0
    %562 = vmatprep.subr.mxu0 0.0
    %563 = vmatpush1.msra.mxu0 0.0
    %564 = vmatprep.subr.mxu0 0.0
    %565 = vmatpush1.msra.mxu0 0.0
    %566 = vmatprep.subr.mxu0 0.0
    %567 = vmatpush1.msra.mxu0 0.0
    %568 = vmatprep.subr.mxu0 0.0
    %569 = vmatpush1.msra.mxu0 0.0
    %570 = vmatprep.mubr.f32.mxu0 0.0
    %571 = vmatmul.mubr.f32.gmra.mrb[0].mxu0 %v504
    %v572 = vpop.f32.mrb[0].mxu0
    %v573 = vadd.f32 %v502, %v572
    %v574 = vpop.f32.mrb[0].mxu0
    %575 = vdwg.mxu0
    %v576 = vtanh.pop %v573
    %578 = vset.pattern.permute.xlu0 0
    %579 = vperm.xlu0 %578, %v321
    %v580 = vpop.permute.xlu0 %579
    %v582 = vmul.f32 %v576, %v580
    %583 = vset.pattern.permute.xlu0 1
    %584 = vperm.xlu0 %583, %v321
    %v585 = vpop.permute.xlu0 %584
    %v587 = vmul.f32 %v576, %v585
    %589 = vrot.lane.b32.xlu0 %v587, 112
    %v590 = vpop.permute.xlu0 %589
    %v592 = vadd.f32 %v582, %v590
    %v593 = vmul.f32 %v592, 7.0
    %v594 = vadd.f32 %v318, %v593
    %v595 = vld [vmem:[%s5] sm:$0xf]
    %v596 = vmul.f32 %v79, 7.0
    %v597 = vlaneseq
    %v598 = vshrl.u32 %v597, 7
    %v599 = vsub.s32 0, %v598
    %v600 = vrot.slane %v596, %v599
    %v602 = vsel %vm327, %v594, 0
    %604 = vmatprep.subr.mxu0 0.0
    %605 = vmatpush1.msra.mxu0 %v80
    %606 = vmatprep.subr.mxu0 0.0
    %607 = vmatpush1.msra.mxu0 %v81
    %608 = vmatprep.subr.mxu0 0.0
    %609 = vmatpush1.msra.mxu0 0.0
    %610 = vmatprep.subr.mxu0 0.0
    %611 = vmatpush1.msra.mxu0 0.0
    %612 = vmatprep.subr.mxu0 0.0
    %613 = vmatpush1.msra.mxu0 0.0
    %614 = vmatprep.subr.mxu0 0.0
    %615 = vmatpush1.msra.mxu0 0.0
    %616 = vmatprep.subr.mxu0 0.0
    %617 = vmatpush1.msra.mxu0 0.0
    %618 = vmatprep.subr.mxu0 0.0
    %619 = vmatpush1.msra.mxu0 0.0
    %620 = vmatprep.subr.mxu0 0.0
    %621 = vmatpush1.msra.mxu0 0.0
    %622 = vmatprep.subr.mxu0 0.0
    %623 = vmatpush1.msra.mxu0 0.0
    %624 = vmatprep.subr.mxu0 0.0
    %625 = vmatpush1.msra.mxu0 0.0
    %626 = vmatprep.subr.mxu0 0.0
    %627 = vmatpush1.msra.mxu0 0.0
    %628 = vmatprep.subr.mxu0 0.0
    %629 = vmatpush1.msra.mxu0 0.0
    %630 = vmatprep.subr.mxu0 0.0
    %631 = vmatpush1.msra.mxu0 0.0
    %632 = vmatprep.subr.mxu0 0.0
    %633 = vmatpush1.msra.mxu0 0.0
    %634 = vmatprep.subr.mxu0 0.0
    %635 = vmatpush1.msra.mxu0 0.0
    %636 = vmatprep.subr.mxu0 0.0
    %637 = vmatpush1.msra.mxu0 0.0
    %638 = vmatprep.subr.mxu0 0.0
    %639 = vmatpush1.msra.mxu0 0.0
    %640 = vmatprep.subr.mxu0 0.0
    %641 = vmatpush1.msra.mxu0 0.0
    %642 = vmatprep.subr.mxu0 0.0
    %643 = vmatpush1.msra.mxu0 0.0
    %644 = vmatprep.subr.mxu0 0.0
    %645 = vmatpush1.msra.mxu0 0.0
    %646 = vmatprep.subr.mxu0 0.0
    %647 = vmatpush1.msra.mxu0 0.0
    %648 = vmatprep.subr.mxu0 0.0
    %649 = vmatpush1.msra.mxu0 0.0
    %650 = vmatprep.subr.mxu0 0.0
    %651 = vmatpush1.msra.mxu0 0.0
    %652 = vmatprep.subr.mxu0 0.0
    %653 = vmatpush1.msra.mxu0 0.0
    %654 = vmatprep.subr.mxu0 0.0
    %655 = vmatpush1.msra.mxu0 0.0
    %656 = vmatprep.subr.mxu0 0.0
    %657 = vmatpush1.msra.mxu0 0.0
    %658 = vmatprep.subr.mxu0 0.0
    %659 = vmatpush1.msra.mxu0 0.0
    %660 = vmatprep.subr.mxu0 0.0
    %661 = vmatpush1.msra.mxu0 0.0
    %662 = vmatprep.subr.mxu0 0.0
    %663 = vmatpush1.msra.mxu0 0.0
    %664 = vmatprep.subr.mxu0 0.0
    %665 = vmatpush1.msra.mxu0 0.0
    %666 = vmatprep.subr.mxu0 0.0
    %667 = vmatpush1.msra.mxu0 0.0
    %668 = vmatprep.mubr.f32.mxu0 0.0
    %669 = vmatmul.mubr.f32.gmra.mrb[0].mxu0 %v602
    %v670 = vpop.f32.mrb[0].mxu0
    %v671 = vadd.f32 %v600, %v670
    %v672 = vpop.f32.mrb[0].mxu0
    %673 = vdwg.mxu0
    %v674 = vadd.f32 %v671, %v404
    %v675 = vmul.f32 %v674, 0.909
    %v676 = vsub.f32 0.0, %v674
    %v677 = vmul.f32 %v676, 1.442695
    %v678 = vpow.pop %v677
    %v679 = vadd.f32 %v678, 1.0
    %v680 = vrcp.pop %v679
    %v681 = vmul.f32 1.0, %v680
    %v682 = vmul.f32 %v675, %v681
    %v684 = vsel %vm162, %v682, 0
    %686 = vmatprep.subr.mxu0 0.0
    %687 = vmatpush1.msra.mxu0 %v83
    %688 = vmatprep.subr.mxu0 0.0
    %689 = vmatpush1.msra.mxu0 %v84
    %690 = vmatprep.subr.mxu0 0.0
    %691 = vmatpush1.msra.mxu0 %v85
    %692 = vmatprep.subr.mxu0 0.0
    %693 = vmatpush1.msra.mxu0 %v86
    %694 = vmatprep.subr.mxu0 0.0
    %695 = vmatpush1.msra.mxu0 0.0
    %696 = vmatprep.subr.mxu0 0.0
    %697 = vmatpush1.msra.mxu0 0.0
    %698 = vmatprep.subr.mxu0 0.0
    %699 = vmatpush1.msra.mxu0 0.0
    %700 = vmatprep.subr.mxu0 0.0
    %701 = vmatpush1.msra.mxu0 0.0
    %702 = vmatprep.subr.mxu0 0.0
    %703 = vmatpush1.msra.mxu0 0.0
    %704 = vmatprep.subr.mxu0 0.0
    %705 = vmatpush1.msra.mxu0 0.0
    %706 = vmatprep.subr.mxu0 0.0
    %707 = vmatpush1.msra.mxu0 0.0
    %708 = vmatprep.subr.mxu0 0.0
    %709 = vmatpush1.msra.mxu0 0.0
    %710 = vmatprep.subr.mxu0 0.0
    %711 = vmatpush1.msra.mxu0 0.0
    %712 = vmatprep.subr.mxu0 0.0
    %713 = vmatpush1.msra.mxu0 0.0
    %714 = vmatprep.subr.mxu0 0.0
    %715 = vmatpush1.msra.mxu0 0.0
    %716 = vmatprep.subr.mxu0 0.0
    %717 = vmatpush1.msra.mxu0 0.0
    %718 = vmatprep.subr.mxu0 0.0
    %719 = vmatpush1.msra.mxu0 0.0
    %720 = vmatprep.subr.mxu0 0.0
    %721 = vmatpush1.msra.mxu0 0.0
    %722 = vmatprep.subr.mxu0 0.0
    %723 = vmatpush1.msra.mxu0 0.0
    %724 = vmatprep.subr.mxu0 0.0
    %725 = vmatpush1.msra.mxu0 0.0
    %726 = vmatprep.subr.mxu0 0.0
    %727 = vmatpush1.msra.mxu0 0.0
    %728 = vmatprep.subr.mxu0 0.0
    %729 = vmatpush1.msra.mxu0 0.0
    %730 = vmatprep.subr.mxu0 0.0
    %731 = vmatpush1.msra.mxu0 0.0
    %732 = vmatprep.subr.mxu0 0.0
    %733 = vmatpush1.msra.mxu0 0.0
    %734 = vmatprep.subr.mxu0 0.0
    %735 = vmatpush1.msra.mxu0 0.0
    %736 = vmatprep.subr.mxu0 0.0
    %737 = vmatpush1.msra.mxu0 0.0
    %738 = vmatprep.subr.mxu0 0.0
    %739 = vmatpush1.msra.mxu0 0.0
    %740 = vmatprep.subr.mxu0 0.0
    %741 = vmatpush1.msra.mxu0 0.0
    %742 = vmatprep.subr.mxu0 0.0
    %743 = vmatpush1.msra.mxu0 0.0
    %744 = vmatprep.subr.mxu0 0.0
    %745 = vmatpush1.msra.mxu0 0.0
    %746 = vmatprep.subr.mxu0 0.0
    %747 = vmatpush1.msra.mxu0 0.0
    %748 = vmatprep.subr.mxu0 0.0
    %749 = vmatpush1.msra.mxu0 0.0
    %750 = vmatprep.mubr.f32.mxu0 0.0
    %751 = vmatmul.mubr.f32.gmra.mrb[0].mxu0 %v684
    %v752 = vpop.f32.mrb[0].mxu0
    %v753 = vadd.f32 %v417, %v752
    %v754 = vpop.f32.mrb[0].mxu0
    %755 = vdwg.mxu0
    %v756 = vmul.f32 %v753, 0.909
    %v757 = vsub.f32 0.0, %v753
    %v758 = vmul.f32 %v757, 1.442695
    %v759 = vpow.pop %v758
    %v760 = vadd.f32 %v759, 1.0
    %v761 = vrcp.pop %v760
    %v762 = vmul.f32 1.0, %v761
    %v763 = vmul.f32 %v756, %v762
    %v765 = vsel %vm162, %v763, 0
    %767 = vmatprep.subr.mxu0 0.0
    %768 = vmatpush1.msra.mxu0 %v88
    %769 = vmatprep.subr.mxu0 0.0
    %770 = vmatpush1.msra.mxu0 %v89
    %771 = vmatprep.subr.mxu0 0.0
    %772 = vmatpush1.msra.mxu0 %v90
    %773 = vmatprep.subr.mxu0 0.0
    %774 = vmatpush1.msra.mxu0 %v91
    %775 = vmatprep.subr.mxu0 0.0
    %776 = vmatpush1.msra.mxu0 0.0
    %777 = vmatprep.subr.mxu0 0.0
    %778 = vmatpush1.msra.mxu0 0.0
    %779 = vmatprep.subr.mxu0 0.0
    %780 = vmatpush1.msra.mxu0 0.0
    %781 = vmatprep.subr.mxu0 0.0
    %782 = vmatpush1.msra.mxu0 0.0
    %783 = vmatprep.subr.mxu0 0.0
    %784 = vmatpush1.msra.mxu0 0.0
    %785 = vmatprep.subr.mxu0 0.0
    %786 = vmatpush1.msra.mxu0 0.0
    %787 = vmatprep.subr.mxu0 0.0
    %788 = vmatpush1.msra.mxu0 0.0
    %789 = vmatprep.subr.mxu0 0.0
    %790 = vmatpush1.msra.mxu0 0.0
    %791 = vmatprep.subr.mxu0 0.0
    %792 = vmatpush1.msra.mxu0 0.0
    %793 = vmatprep.subr.mxu0 0.0
    %794 = vmatpush1.msra.mxu0 0.0
    %795 = vmatprep.subr.mxu0 0.0
    %796 = vmatpush1.msra.mxu0 0.0
    %797 = vmatprep.subr.mxu0 0.0
    %798 = vmatpush1.msra.mxu0 0.0
    %799 = vmatprep.subr.mxu0 0.0
    %800 = vmatpush1.msra.mxu0 0.0
    %801 = vmatprep.subr.mxu0 0.0
    %802 = vmatpush1.msra.mxu0 0.0
    %803 = vmatprep.subr.mxu0 0.0
    %804 = vmatpush1.msra.mxu0 0.0
    %805 = vmatprep.subr.mxu0 0.0
    %806 = vmatpush1.msra.mxu0 0.0
    %807 = vmatprep.subr.mxu0 0.0
    %808 = vmatpush1.msra.mxu0 0.0
    %809 = vmatprep.subr.mxu0 0.0
    %810 = vmatpush1.msra.mxu0 0.0
    %811 = vmatprep.subr.mxu0 0.0
    %812 = vmatpush1.msra.mxu0 0.0
    %813 = vmatprep.subr.mxu0 0.0
    %814 = vmatpush1.msra.mxu0 0.0
    %815 = vmatprep.subr.mxu0 0.0
    %816 = vmatpush1.msra.mxu0 0.0
    %817 = vmatprep.subr.mxu0 0.0
    %818 = vmatpush1.msra.mxu0 0.0
    %819 = vmatprep.subr.mxu0 0.0
    %820 = vmatpush1.msra.mxu0 0.0
    %821 = vmatprep.subr.mxu0 0.0
    %822 = vmatpush1.msra.mxu0 0.0
    %823 = vmatprep.subr.mxu0 0.0
    %824 = vmatpush1.msra.mxu0 0.0
    %825 = vmatprep.subr.mxu0 0.0
    %826 = vmatpush1.msra.mxu0 0.0
    %827 = vmatprep.subr.mxu0 0.0
    %828 = vmatpush1.msra.mxu0 0.0
    %829 = vmatprep.subr.mxu0 0.0
    %830 = vmatpush1.msra.mxu0 0.0
    %831 = vmatprep.mubr.f32.mxu0 0.0
    %832 = vmatmul.mubr.f32.gmra.mrb[0].mxu0 %v765
    %v833 = vpop.f32.mrb[0].mxu0
    %v834 = vadd.f32 %v502, %v833
    %v835 = vpop.f32.mrb[0].mxu0
    %836 = vdwg.mxu0
    %v837 = vtanh.pop %v834
    %839 = vset.pattern.permute.xlu0 0
    %840 = vperm.xlu0 %839, %v595
    %v841 = vpop.permute.xlu0 %840
    %v843 = vmul.f32 %v837, %v841
    %844 = vset.pattern.permute.xlu0 1
    %845 = vperm.xlu0 %844, %v595
    %v846 = vpop.permute.xlu0 %845
    %v848 = vmul.f32 %v837, %v846
    %850 = vrot.lane.b32.xlu0 %v848, 112
    %v851 = vpop.permute.xlu0 %850
    %v853 = vadd.f32 %v843, %v851
    %v854 = vadd.f32 %v592, %v853
    %v855 = vmul.f32 %v854, 3.5
    %v856 = vadd.f32 %v318, %v855
    %v857 = vlaneseq
    %v858 = vshrl.u32 %v857, 7
    %v859 = vsub.s32 0, %v858
    %v860 = vrot.slane %v93, %v859
    %v861 = vmul.f32 %v856, %v860
    %vm862 = vcmask 125952
    %v863 = vsel %vm862, %v861, 0.0
    %864 = vadd.xlane.f32.xlu0 %v863
    %v865 = vpop.xlane.xlu0 %864
    %v866 = vlaneseq
    %v867 = vshrl.u32 %v866, 7
    %v868 = vsub.s32 0, %v867
    %v869 = vrot.slane %v94, %v868
    %v870 = vadd.f32 %v865, %v869
    %872 = vset.pattern.permute.xlu0 0
    %873 = vperm.xlu0 %872, %v870
    %v874 = vpop.permute.xlu0 %873
    %v876 = vlaneseq
    %v877 = vshrl.u32 %v876, 7
    %v878 = vsub.s32 0, %v877
    %v879 = vrot.slane %v98, %v878
    %v880 = vmul.f32 %v874, %v879
    %v881 = vlaneseq
    %v882 = vshrl.u32 %v881, 7
    %v883 = vsub.s32 0, %v882
    %v884 = vrot.slane %v99, %v883
    %v885 = vadd.f32 %v880, %v884
    %v886 = vlaneseq
    %v887 = vshrl.u32 %v886, 7
    %v888 = vsub.s32 0, %v887
    %v889 = vrot.slane %v122, %v888
    %v890 = vmul.f32 %v870, %v889
    %v891 = vlaneseq
    %v892 = vshrl.u32 %v891, 7
    %v893 = vsub.s32 0, %v892
    %v894 = vrot.slane %v123, %v893
    %v895 = vadd.f32 %v890, %v894
    %v896 = vmul.f32 %v895, 0.0625
    %v897 = vld [vmem:[%s2] sm:$0xf]
    %899 = vset.pattern.permute.xlu0 0
    %900 = vperm.xlu0 %899, %v897
    %v901 = vpop.permute.xlu0 %900
    %v903 = vlaneseq
    %v904 = vshrl.u32 %v903, 7
    %v905 = vsub.s32 0, %v904
    %v906 = vrot.slane %v118, %v905
    %v907 = vmul.f32 %v901, %v906
    %v908 = vlaneseq
    %v909 = vshrl.u32 %v908, 7
    %v910 = vsub.s32 0, %v909
    %v911 = vrot.slane %v119, %v910
    %v912 = vmul.f32 %v874, %v911
    %v913 = vadd.f32 %v907, %v912
    %v914 = vlaneseq
    %v915 = vshrl.u32 %v914, 7
    %v916 = vsub.s32 0, %v915
    %v917 = vrot.slane %v120, %v916
    %v918 = vadd.f32 %v913, %v917
    %s919 = sld [smem:[#allocation3]]
    %v920 = vstv %s919
    %v921 = vmul.f32 %v920, %v95
    %v922 = vlaneseq
    %v923 = vshrl.u32 %v922, 7
    %v924 = vsub.s32 0, %v923
    %v925 = vrot.slane %v921, %v924
    %v927 = vsel %vm327, %v918, 0
    %929 = vmatprep.subr.mxu0 0.0
    %930 = vmatpush1.msra.mxu0 %v96
    %931 = vmatprep.subr.mxu0 0.0
    %932 = vmatpush1.msra.mxu0 %v97
    %933 = vmatprep.subr.mxu0 0.0
    %934 = vmatpush1.msra.mxu0 0.0
    %935 = vmatprep.subr.mxu0 0.0
    %936 = vmatpush1.msra.mxu0 0.0
    %937 = vmatprep.subr.mxu0 0.0
    %938 = vmatpush1.msra.mxu0 0.0
    %939 = vmatprep.subr.mxu0 0.0
    %940 = vmatpush1.msra.mxu0 0.0
    %941 = vmatprep.subr.mxu0 0.0
    %942 = vmatpush1.msra.mxu0 0.0
    %943 = vmatprep.subr.mxu0 0.0
    %944 = vmatpush1.msra.mxu0 0.0
    %945 = vmatprep.subr.mxu0 0.0
    %946 = vmatpush1.msra.mxu0 0.0
    %947 = vmatprep.subr.mxu0 0.0
    %948 = vmatpush1.msra.mxu0 0.0
    %949 = vmatprep.subr.mxu0 0.0
    %950 = vmatpush1.msra.mxu0 0.0
    %951 = vmatprep.subr.mxu0 0.0
    %952 = vmatpush1.msra.mxu0 0.0
    %953 = vmatprep.subr.mxu0 0.0
    %954 = vmatpush1.msra.mxu0 0.0
    %955 = vmatprep.subr.mxu0 0.0
    %956 = vmatpush1.msra.mxu0 0.0
    %957 = vmatprep.subr.mxu0 0.0
    %958 = vmatpush1.msra.mxu0 0.0
    %959 = vmatprep.subr.mxu0 0.0
    %960 = vmatpush1.msra.mxu0 0.0
    %961 = vmatprep.subr.mxu0 0.0
    %962 = vmatpush1.msra.mxu0 0.0
    %963 = vmatprep.subr.mxu0 0.0
    %964 = vmatpush1.msra.mxu0 0.0
    %965 = vmatprep.subr.mxu0 0.0
    %966 = vmatpush1.msra.mxu0 0.0
    %967 = vmatprep.subr.mxu0 0.0
    %968 = vmatpush1.msra.mxu0 0.0
    %969 = vmatprep.subr.mxu0 0.0
    %970 = vmatpush1.msra.mxu0 0.0
    %971 = vmatprep.subr.mxu0 0.0
    %972 = vmatpush1.msra.mxu0 0.0
    %973 = vmatprep.subr.mxu0 0.0
    %974 = vmatpush1.msra.mxu0 0.0
    %975 = vmatprep.subr.mxu0 0.0
    %976 = vmatpush1.msra.mxu0 0.0
    %977 = vmatprep.subr.mxu0 0.0
    %978 = vmatpush1.msra.mxu0 0.0
    %979 = vmatprep.subr.mxu0 0.0
    %980 = vmatpush1.msra.mxu0 0.0
    %981 = vmatprep.subr.mxu0 0.0
    %982 = vmatpush1.msra.mxu0 0.0
    %983 = vmatprep.subr.mxu0 0.0
    %984 = vmatpush1.msra.mxu0 0.0
    %985 = vmatprep.subr.mxu0 0.0
    %986 = vmatpush1.msra.mxu0 0.0
    %987 = vmatprep.subr.mxu0 0.0
    %988 = vmatpush1.msra.mxu0 0.0
    %989 = vmatprep.subr.mxu0 0.0
    %990 = vmatpush1.msra.mxu0 0.0
    %991 = vmatprep.subr.mxu0 0.0
    %992 = vmatpush1.msra.mxu0 0.0
    %993 = vmatprep.mubr.f32.mxu0 0.0
    %994 = vmatmul.mubr.f32.gmra.mrb[0].mxu0 %v927
    %v995 = vpop.f32.mrb[0].mxu0
    %v996 = vadd.f32 %v925, %v995
    %v997 = vpop.f32.mrb[0].mxu0
    %998 = vdwg.mxu0
    %v999 = vadd.f32 %v996, %v885
    %v1000 = vmul.f32 %v999, 0.909
    %v1001 = vsub.f32 0.0, %v999
    %v1002 = vmul.f32 %v1001, 1.442695
    %v1003 = vpow.pop %v1002
    %v1004 = vadd.f32 %v1003, 1.0
    %v1005 = vrcp.pop %v1004
    %v1006 = vmul.f32 1.0, %v1005
    %v1007 = vmul.f32 %v1000, %v1006
    %v1008 = vlaneseq
    %v1009 = vshrl.u32 %v1008, 7
    %v1010 = vsub.s32 0, %v1009
    %v1011 = vrot.slane %v108, %v1010
    %vm1012 = vcmask 523264
    %v1014 = vsel %vm1012, %v1007, 0
    %1016 = vmatprep.subr.mxu0 0.0
    %1017 = vmatpush1.msra.mxu0 %v100
    %1018 = vmatprep.subr.mxu0 0.0
    %1019 = vmatpush1.msra.mxu0 %v101
    %1020 = vmatprep.subr.mxu0 0.0
    %1021 = vmatpush1.msra.mxu0 %v102
    %1022 = vmatprep.subr.mxu0 0.0
    %1023 = vmatpush1.msra.mxu0 %v103
    %1024 = vmatprep.subr.mxu0 0.0
    %1025 = vmatpush1.msra.mxu0 %v104
    %1026 = vmatprep.subr.mxu0 0.0
    %1027 = vmatpush1.msra.mxu0 %v105
    %1028 = vmatprep.subr.mxu0 0.0
    %1029 = vmatpush1.msra.mxu0 %v106
    %1030 = vmatprep.subr.mxu0 0.0
    %1031 = vmatpush1.msra.mxu0 %v107
    %1032 = vmatprep.subr.mxu0 0.0
    %1033 = vmatpush1.msra.mxu0 0.0
    %1034 = vmatprep.subr.mxu0 0.0
    %1035 = vmatpush1.msra.mxu0 0.0
    %1036 = vmatprep.subr.mxu0 0.0
    %1037 = vmatpush1.msra.mxu0 0.0
    %1038 = vmatprep.subr.mxu0 0.0
    %1039 = vmatpush1.msra.mxu0 0.0
    %1040 = vmatprep.subr.mxu0 0.0
    %1041 = vmatpush1.msra.mxu0 0.0
    %1042 = vmatprep.subr.mxu0 0.0
    %1043 = vmatpush1.msra.mxu0 0.0
    %1044 = vmatprep.subr.mxu0 0.0
    %1045 = vmatpush1.msra.mxu0 0.0
    %1046 = vmatprep.subr.mxu0 0.0
    %1047 = vmatpush1.msra.mxu0 0.0
    %1048 = vmatprep.subr.mxu0 0.0
    %1049 = vmatpush1.msra.mxu0 0.0
    %1050 = vmatprep.subr.mxu0 0.0
    %1051 = vmatpush1.msra.mxu0 0.0
    %1052 = vmatprep.subr.mxu0 0.0
    %1053 = vmatpush1.msra.mxu0 0.0
    %1054 = vmatprep.subr.mxu0 0.0
    %1055 = vmatpush1.msra.mxu0 0.0
    %1056 = vmatprep.subr.mxu0 0.0
    %1057 = vmatpush1.msra.mxu0 0.0
    %1058 = vmatprep.subr.mxu0 0.0
    %1059 = vmatpush1.msra.mxu0 0.0
    %1060 = vmatprep.subr.mxu0 0.0
    %1061 = vmatpush1.msra.mxu0 0.0
    %1062 = vmatprep.subr.mxu0 0.0
    %1063 = vmatpush1.msra.mxu0 0.0
    %1064 = vmatprep.subr.mxu0 0.0
    %1065 = vmatpush1.msra.mxu0 0.0
    %1066 = vmatprep.subr.mxu0 0.0
    %1067 = vmatpush1.msra.mxu0 0.0
    %1068 = vmatprep.subr.mxu0 0.0
    %1069 = vmatpush1.msra.mxu0 0.0
    %1070 = vmatprep.subr.mxu0 0.0
    %1071 = vmatpush1.msra.mxu0 0.0
    %1072 = vmatprep.subr.mxu0 0.0
    %1073 = vmatpush1.msra.mxu0 0.0
    %1074 = vmatprep.subr.mxu0 0.0
    %1075 = vmatpush1.msra.mxu0 0.0
    %1076 = vmatprep.subr.mxu0 0.0
    %1077 = vmatpush1.msra.mxu0 0.0
    %1078 = vmatprep.subr.mxu0 0.0
    %1079 = vmatpush1.msra.mxu0 0.0
    %1080 = vmatprep.mubr.f32.mxu0 0.0
    %1081 = vmatmul.mubr.f32.gmra.mrb[0].mxu0 %v1014
    %v1082 = vpop.f32.mrb[0].mxu0
    %v1083 = vadd.f32 %v1011, %v1082
    %v1084 = vpop.f32.mrb[0].mxu0
    %1085 = vdwg.mxu0
    %v1086 = vmul.f32 %v1083, 0.909
    %v1087 = vsub.f32 0.0, %v1083
    %v1088 = vmul.f32 %v1087, 1.442695
    %v1089 = vpow.pop %v1088
    %v1090 = vadd.f32 %v1089, 1.0
    %v1091 = vrcp.pop %v1090
    %v1092 = vmul.f32 1.0, %v1091
    %v1093 = vmul.f32 %v1086, %v1092
    %v1094 = vlaneseq
    %v1095 = vshrl.u32 %v1094, 7
    %v1096 = vsub.s32 0, %v1095
    %v1097 = vrot.slane %v117, %v1096
    %v1099 = vsel %vm1012, %v1093, 0
    %1101 = vmatprep.subr.mxu0 0.0
    %1102 = vmatpush1.msra.mxu0 %v109
    %1103 = vmatprep.subr.mxu0 0.0
    %1104 = vmatpush1.msra.mxu0 %v110
    %1105 = vmatprep.subr.mxu0 0.0
    %1106 = vmatpush1.msra.mxu0 %v111
    %1107 = vmatprep.subr.mxu0 0.0
    %1108 = vmatpush1.msra.mxu0 %v112
    %1109 = vmatprep.subr.mxu0 0.0
    %1110 = vmatpush1.msra.mxu0 %v113
    %1111 = vmatprep.subr.mxu0 0.0
    %1112 = vmatpush1.msra.mxu0 %v114
    %1113 = vmatprep.subr.mxu0 0.0
    %1114 = vmatpush1.msra.mxu0 %v115
    %1115 = vmatprep.subr.mxu0 0.0
    %1116 = vmatpush1.msra.mxu0 %v116
    %1117 = vmatprep.subr.mxu0 0.0
    %1118 = vmatpush1.msra.mxu0 0.0
    %1119 = vmatprep.subr.mxu0 0.0
    %1120 = vmatpush1.msra.mxu0 0.0
    %1121 = vmatprep.subr.mxu0 0.0
    %1122 = vmatpush1.msra.mxu0 0.0
    %1123 = vmatprep.subr.mxu0 0.0
    %1124 = vmatpush1.msra.mxu0 0.0
    %1125 = vmatprep.subr.mxu0 0.0
    %1126 = vmatpush1.msra.mxu0 0.0
    %1127 = vmatprep.subr.mxu0 0.0
    %1128 = vmatpush1.msra.mxu0 0.0
    %1129 = vmatprep.subr.mxu0 0.0
    %1130 = vmatpush1.msra.mxu0 0.0
    %1131 = vmatprep.subr.mxu0 0.0
    %1132 = vmatpush1.msra.mxu0 0.0
    %1133 = vmatprep.subr.mxu0 0.0
    %1134 = vmatpush1.msra.mxu0 0.0
    %1135 = vmatprep.subr.mxu0 0.0
    %1136 = vmatpush1.msra.mxu0 0.0
    %1137 = vmatprep.subr.mxu0 0.0
    %1138 = vmatpush1.msra.mxu0 0.0
    %1139 = vmatprep.subr.mxu0 0.0
    %1140 = vmatpush1.msra.mxu0 0.0
    %1141 = vmatprep.subr.mxu0 0.0
    %1142 = vmatpush1.msra.mxu0 0.0
    %1143 = vmatprep.subr.mxu0 0.0
    %1144 = vmatpush1.msra.mxu0 0.0
    %1145 = vmatprep.subr.mxu0 0.0
    %1146 = vmatpush1.msra.mxu0 0.0
    %1147 = vmatprep.subr.mxu0 0.0
    %1148 = vmatpush1.msra.mxu0 0.0
    %1149 = vmatprep.subr.mxu0 0.0
    %1150 = vmatpush1.msra.mxu0 0.0
    %1151 = vmatprep.subr.mxu0 0.0
    %1152 = vmatpush1.msra.mxu0 0.0
    %1153 = vmatprep.subr.mxu0 0.0
    %1154 = vmatpush1.msra.mxu0 0.0
    %1155 = vmatprep.subr.mxu0 0.0
    %1156 = vmatpush1.msra.mxu0 0.0
    %1157 = vmatprep.subr.mxu0 0.0
    %1158 = vmatpush1.msra.mxu0 0.0
    %1159 = vmatprep.subr.mxu0 0.0
    %1160 = vmatpush1.msra.mxu0 0.0
    %1161 = vmatprep.subr.mxu0 0.0
    %1162 = vmatpush1.msra.mxu0 0.0
    %1163 = vmatprep.subr.mxu0 0.0
    %1164 = vmatpush1.msra.mxu0 0.0
    %1165 = vmatprep.mubr.f32.mxu0 0.0
    %1166 = vmatmul.mubr.f32.gmra.mrb[0].mxu0 %v1099
    %v1167 = vpop.f32.mrb[0].mxu0
    %v1168 = vadd.f32 %v1097, %v1167
    %v1169 = vpop.f32.mrb[0].mxu0
    %1170 = vdwg.mxu0
    %v1171 = vtanh.pop %v1168
    %1172 = vst.msk [vmem:[#allocation2] sm:$0xf] %vm862, %v918
    %s1173 = sld [smem:[#allocation3 + $0x1]]
    %s1174 = sld [smem:[#allocation3]]
    %s1175 = ssub.f32 %s1173, %s1174
    %v1176 = vld [vmem:[#allocation6] sm:$0xf]
    %v1177 = vmul.f32 %v918, 2.0
    %v1178 = vsub.f32 %v1177, %v918
    %v1179 = vstv %s1175
    %v1180 = vmul.f32 %v1171, %v1179
    %v1181 = vadd.f32 %v1178, %v1180
    %1183 = vrot.lane.b32.xlu0 %v1176, 16
    %v1184 = vpop.permute.xlu0 %1183
    %v1186 = vmul.f32 %v1171, %v1184
    %1188 = vrot.lane.b32.xlu0 %v1186, 112
    %v1189 = vpop.permute.xlu0 %1188
    %v1191 = vadd.f32 %v1186, %v1189
    %1192 = vrot.lane.b32.xlu0 %v1186, 96
    %v1193 = vpop.permute.xlu0 %1192
    %v1195 = vadd.f32 %v1191, %v1193
    %1197 = vrot.lane.b32.xlu0 %v1195, 112
    %v1198 = vpop.permute.xlu0 %1197
    %v1200 = vadd.f32 %v1181, %v1198
    %v1201 = vstv %s1173
    %v1202 = vmul.f32 %v1201, %v95
    %v1203 = vlaneseq
    %v1204 = vshrl.u32 %v1203, 7
    %v1205 = vsub.s32 0, %v1204
    %v1206 = vrot.slane %v1202, %v1205
    %v1208 = vsel %vm327, %v1200, 0
    %1210 = vmatprep.subr.mxu0 0.0
    %1211 = vmatpush1.msra.mxu0 %v96
    %1212 = vmatprep.subr.mxu0 0.0
    %1213 = vmatpush1.msra.mxu0 %v97
    %1214 = vmatprep.subr.mxu0 0.0
    %1215 = vmatpush1.msra.mxu0 0.0
    %1216 = vmatprep.subr.mxu0 0.0
    %1217 = vmatpush1.msra.mxu0 0.0
    %1218 = vmatprep.subr.mxu0 0.0
    %1219 = vmatpush1.msra.mxu0 0.0
    %1220 = vmatprep.subr.mxu0 0.0
    %1221 = vmatpush1.msra.mxu0 0.0
    %1222 = vmatprep.subr.mxu0 0.0
    %1223 = vmatpush1.msra.mxu0 0.0
    %1224 = vmatprep.subr.mxu0 0.0
    %1225 = vmatpush1.msra.mxu0 0.0
    %1226 = vmatprep.subr.mxu0 0.0
    %1227 = vmatpush1.msra.mxu0 0.0
    %1228 = vmatprep.subr.mxu0 0.0
    %1229 = vmatpush1.msra.mxu0 0.0
    %1230 = vmatprep.subr.mxu0 0.0
    %1231 = vmatpush1.msra.mxu0 0.0
    %1232 = vmatprep.subr.mxu0 0.0
    %1233 = vmatpush1.msra.mxu0 0.0
    %1234 = vmatprep.subr.mxu0 0.0
    %1235 = vmatpush1.msra.mxu0 0.0
    %1236 = vmatprep.subr.mxu0 0.0
    %1237 = vmatpush1.msra.mxu0 0.0
    %1238 = vmatprep.subr.mxu0 0.0
    %1239 = vmatpush1.msra.mxu0 0.0
    %1240 = vmatprep.subr.mxu0 0.0
    %1241 = vmatpush1.msra.mxu0 0.0
    %1242 = vmatprep.subr.mxu0 0.0
    %1243 = vmatpush1.msra.mxu0 0.0
    %1244 = vmatprep.subr.mxu0 0.0
    %1245 = vmatpush1.msra.mxu0 0.0
    %1246 = vmatprep.subr.mxu0 0.0
    %1247 = vmatpush1.msra.mxu0 0.0
    %1248 = vmatprep.subr.mxu0 0.0
    %1249 = vmatpush1.msra.mxu0 0.0
    %1250 = vmatprep.subr.mxu0 0.0
    %1251 = vmatpush1.msra.mxu0 0.0
    %1252 = vmatprep.subr.mxu0 0.0
    %1253 = vmatpush1.msra.mxu0 0.0
    %1254 = vmatprep.subr.mxu0 0.0
    %1255 = vmatpush1.msra.mxu0 0.0
    %1256 = vmatprep.subr.mxu0 0.0
    %1257 = vmatpush1.msra.mxu0 0.0
    %1258 = vmatprep.subr.mxu0 0.0
    %1259 = vmatpush1.msra.mxu0 0.0
    %1260 = vmatprep.subr.mxu0 0.0
    %1261 = vmatpush1.msra.mxu0 0.0
    %1262 = vmatprep.subr.mxu0 0.0
    %1263 = vmatpush1.msra.mxu0 0.0
    %1264 = vmatprep.subr.mxu0 0.0
    %1265 = vmatpush1.msra.mxu0 0.0
    %1266 = vmatprep.subr.mxu0 0.0
    %1267 = vmatpush1.msra.mxu0 0.0
    %1268 = vmatprep.subr.mxu0 0.0
    %1269 = vmatpush1.msra.mxu0 0.0
    %1270 = vmatprep.subr.mxu0 0.0
    %1271 = vmatpush1.msra.mxu0 0.0
    %1272 = vmatprep.subr.mxu0 0.0
    %1273 = vmatpush1.msra.mxu0 0.0
    %1274 = vmatprep.mubr.f32.mxu0 0.0
    %1275 = vmatmul.mubr.f32.gmra.mrb[0].mxu0 %v1208
    %v1276 = vpop.f32.mrb[0].mxu0
    %v1277 = vadd.f32 %v1206, %v1276
    %v1278 = vpop.f32.mrb[0].mxu0
    %1279 = vdwg.mxu0
    %v1280 = vadd.f32 %v1277, %v885
    %v1281 = vmul.f32 %v1280, 0.909
    %v1282 = vsub.f32 0.0, %v1280
    %v1283 = vmul.f32 %v1282, 1.442695
    %v1284 = vpow.pop %v1283
    %v1285 = vadd.f32 %v1284, 1.0
    %v1286 = vrcp.pop %v1285
    %v1287 = vmul.f32 1.0, %v1286
    %v1288 = vmul.f32 %v1281, %v1287
    %v1290 = vsel %vm1012, %v1288, 0
    %1292 = vmatprep.subr.mxu0 0.0
    %1293 = vmatpush1.msra.mxu0 %v100
    %1294 = vmatprep.subr.mxu0 0.0
    %1295 = vmatpush1.msra.mxu0 %v101
    %1296 = vmatprep.subr.mxu0 0.0
    %1297 = vmatpush1.msra.mxu0 %v102
    %1298 = vmatprep.subr.mxu0 0.0
    %1299 = vmatpush1.msra.mxu0 %v103
    %1300 = vmatprep.subr.mxu0 0.0
    %1301 = vmatpush1.msra.mxu0 %v104
    %1302 = vmatprep.subr.mxu0 0.0
    %1303 = vmatpush1.msra.mxu0 %v105
    %1304 = vmatprep.subr.mxu0 0.0
    %1305 = vmatpush1.msra.mxu0 %v106
    %1306 = vmatprep.subr.mxu0 0.0
    %1307 = vmatpush1.msra.mxu0 %v107
    %1308 = vmatprep.subr.mxu0 0.0
    %1309 = vmatpush1.msra.mxu0 0.0
    %1310 = vmatprep.subr.mxu0 0.0
    %1311 = vmatpush1.msra.mxu0 0.0
    %1312 = vmatprep.subr.mxu0 0.0
    %1313 = vmatpush1.msra.mxu0 0.0
    %1314 = vmatprep.subr.mxu0 0.0
    %1315 = vmatpush1.msra.mxu0 0.0
    %1316 = vmatprep.subr.mxu0 0.0
    %1317 = vmatpush1.msra.mxu0 0.0
    %1318 = vmatprep.subr.mxu0 0.0
    %1319 = vmatpush1.msra.mxu0 0.0
    %1320 = vmatprep.subr.mxu0 0.0
    %1321 = vmatpush1.msra.mxu0 0.0
    %1322 = vmatprep.subr.mxu0 0.0
    %1323 = vmatpush1.msra.mxu0 0.0
    %1324 = vmatprep.subr.mxu0 0.0
    %1325 = vmatpush1.msra.mxu0 0.0
    %1326 = vmatprep.subr.mxu0 0.0
    %1327 = vmatpush1.msra.mxu0 0.0
    %1328 = vmatprep.subr.mxu0 0.0
    %1329 = vmatpush1.msra.mxu0 0.0
    %1330 = vmatprep.subr.mxu0 0.0
    %1331 = vmatpush1.msra.mxu0 0.0
    %1332 = vmatprep.subr.mxu0 0.0
    %1333 = vmatpush1.msra.mxu0 0.0
    %1334 = vmatprep.subr.mxu0 0.0
    %1335 = vmatpush1.msra.mxu0 0.0
    %1336 = vmatprep.subr.mxu0 0.0
    %1337 = vmatpush1.msra.mxu0 0.0
    %1338 = vmatprep.subr.mxu0 0.0
    %1339 = vmatpush1.msra.mxu0 0.0
    %1340 = vmatprep.subr.mxu0 0.0
    %1341 = vmatpush1.msra.mxu0 0.0
    %1342 = vmatprep.subr.mxu0 0.0
    %1343 = vmatpush1.msra.mxu0 0.0
    %1344 = vmatprep.subr.mxu0 0.0
    %1345 = vmatpush1.msra.mxu0 0.0
    %1346 = vmatprep.subr.mxu0 0.0
    %1347 = vmatpush1.msra.mxu0 0.0
    %1348 = vmatprep.subr.mxu0 0.0
    %1349 = vmatpush1.msra.mxu0 0.0
    %1350 = vmatprep.subr.mxu0 0.0
    %1351 = vmatpush1.msra.mxu0 0.0
    %1352 = vmatprep.subr.mxu0 0.0
    %1353 = vmatpush1.msra.mxu0 0.0
    %1354 = vmatprep.subr.mxu0 0.0
    %1355 = vmatpush1.msra.mxu0 0.0
    %1356 = vmatprep.mubr.f32.mxu0 0.0
    %1357 = vmatmul.mubr.f32.gmra.mrb[0].mxu0 %v1290
    %v1358 = vpop.f32.mrb[0].mxu0
    %v1359 = vadd.f32 %v1011, %v1358
    %v1360 = vpop.f32.mrb[0].mxu0
    %1361 = vdwg.mxu0
    %v1362 = vmul.f32 %v1359, 0.909
    %v1363 = vsub.f32 0.0, %v1359
    %v1364 = vmul.f32 %v1363, 1.442695
    %v1365 = vpow.pop %v1364
    %v1366 = vadd.f32 %v1365, 1.0
    %v1367 = vrcp.pop %v1366
    %v1368 = vmul.f32 1.0, %v1367
    %v1369 = vmul.f32 %v1362, %v1368
    %v1371 = vsel %vm1012, %v1369, 0
    %1373 = vmatprep.subr.mxu0 0.0
    %1374 = vmatpush1.msra.mxu0 %v109
    %1375 = vmatprep.subr.mxu0 0.0
    %1376 = vmatpush1.msra.mxu0 %v110
    %1377 = vmatprep.subr.mxu0 0.0
    %1378 = vmatpush1.msra.mxu0 %v111
    %1379 = vmatprep.subr.mxu0 0.0
    %1380 = vmatpush1.msra.mxu0 %v112
    %1381 = vmatprep.subr.mxu0 0.0
    %1382 = vmatpush1.msra.mxu0 %v113
    %1383 = vmatprep.subr.mxu0 0.0
    %1384 = vmatpush1.msra.mxu0 %v114
    %1385 = vmatprep.subr.mxu0 0.0
    %1386 = vmatpush1.msra.mxu0 %v115
    %1387 = vmatprep.subr.mxu0 0.0
    %1388 = vmatpush1.msra.mxu0 %v116
    %1389 = vmatprep.subr.mxu0 0.0
    %1390 = vmatpush1.msra.mxu0 0.0
    %1391 = vmatprep.subr.mxu0 0.0
    %1392 = vmatpush1.msra.mxu0 0.0
    %1393 = vmatprep.subr.mxu0 0.0
    %1394 = vmatpush1.msra.mxu0 0.0
    %1395 = vmatprep.subr.mxu0 0.0
    %1396 = vmatpush1.msra.mxu0 0.0
    %1397 = vmatprep.subr.mxu0 0.0
    %1398 = vmatpush1.msra.mxu0 0.0
    %1399 = vmatprep.subr.mxu0 0.0
    %1400 = vmatpush1.msra.mxu0 0.0
    %1401 = vmatprep.subr.mxu0 0.0
    %1402 = vmatpush1.msra.mxu0 0.0
    %1403 = vmatprep.subr.mxu0 0.0
    %1404 = vmatpush1.msra.mxu0 0.0
    %1405 = vmatprep.subr.mxu0 0.0
    %1406 = vmatpush1.msra.mxu0 0.0
    %1407 = vmatprep.subr.mxu0 0.0
    %1408 = vmatpush1.msra.mxu0 0.0
    %1409 = vmatprep.subr.mxu0 0.0
    %1410 = vmatpush1.msra.mxu0 0.0
    %1411 = vmatprep.subr.mxu0 0.0
    %1412 = vmatpush1.msra.mxu0 0.0
    %1413 = vmatprep.subr.mxu0 0.0
    %1414 = vmatpush1.msra.mxu0 0.0
    %1415 = vmatprep.subr.mxu0 0.0
    %1416 = vmatpush1.msra.mxu0 0.0
    %1417 = vmatprep.subr.mxu0 0.0
    %1418 = vmatpush1.msra.mxu0 0.0
    %1419 = vmatprep.subr.mxu0 0.0
    %1420 = vmatpush1.msra.mxu0 0.0
    %1421 = vmatprep.subr.mxu0 0.0
    %1422 = vmatpush1.msra.mxu0 0.0
    %1423 = vmatprep.subr.mxu0 0.0
    %1424 = vmatpush1.msra.mxu0 0.0
    %1425 = vmatprep.subr.mxu0 0.0
    %1426 = vmatpush1.msra.mxu0 0.0
    %1427 = vmatprep.subr.mxu0 0.0
    %1428 = vmatpush1.msra.mxu0 0.0
    %1429 = vmatprep.subr.mxu0 0.0
    %1430 = vmatpush1.msra.mxu0 0.0
    %1431 = vmatprep.subr.mxu0 0.0
    %1432 = vmatpush1.msra.mxu0 0.0
    %1433 = vmatprep.subr.mxu0 0.0
    %1434 = vmatpush1.msra.mxu0 0.0
    %1435 = vmatprep.subr.mxu0 0.0
    %1436 = vmatpush1.msra.mxu0 0.0
    %1437 = vmatprep.mubr.f32.mxu0 0.0
    %1438 = vmatmul.mubr.f32.gmra.mrb[0].mxu0 %v1371
    %v1439 = vpop.f32.mrb[0].mxu0
    %v1440 = vadd.f32 %v1097, %v1439
    %v1441 = vpop.f32.mrb[0].mxu0
    %1442 = vdwg.mxu0
    %v1443 = vtanh.pop %v1440
    %s1444 = smul.f32 %s1175, 0.5
    %v1445 = vadd.f32 %v1171, %v1443
    %v1446 = vstv %s1444
    %v1447 = vmul.f32 %v1446, %v1445
    %v1448 = vadd.f32 %v918, %v1447
    %v1449 = vmul.f32 %v1445, %v1184
    %1451 = vrot.lane.b32.xlu0 %v1449, 112
    %v1452 = vpop.permute.xlu0 %1451
    %v1454 = vadd.f32 %v1449, %v1452
    %1455 = vrot.lane.b32.xlu0 %v1449, 96
    %v1456 = vpop.permute.xlu0 %1455
    %v1458 = vadd.f32 %v1454, %v1456
    %v1459 = vmul.f32 %v1458, 0.5
    %1461 = vrot.lane.b32.xlu0 %v1459, 112
    %v1462 = vpop.permute.xlu0 %1461
    %v1464 = vadd.f32 %v1448, %v1462
    %s1465 = scalar_lea.vmem [#allocation2], 4
    %1466 = vst.msk [vmem:[%s1465] sm:$0xf] %vm862, %v1464
    %s1467 = sld [smem:[#allocation3 + $0x2]]
    %s1468 = sld [smem:[#allocation3 + $0x1]]
    %s1469 = ssub.f32 %s1467, %s1468
    %s1470 = scalar_lea.vmem [#allocation6], 4
    %v1471 = vld [vmem:[%s1470] sm:$0xf]
    %v1472 = vmul.f32 %v1464, 2.0
    %v1473 = vsub.f32 %v1472, %v1200
    %v1474 = vstv %s1469
    %v1475 = vmul.f32 %v1443, %v1474
    %v1476 = vadd.f32 %v1473, %v1475
    %1478 = vrot.lane.b32.xlu0 %v1471, 16
    %v1479 = vpop.permute.xlu0 %1478
    %v1481 = vmul.f32 %v1443, %v1479
    %1483 = vrot.lane.b32.xlu0 %v1481, 112
    %v1484 = vpop.permute.xlu0 %1483
    %v1486 = vadd.f32 %v1481, %v1484
    %1487 = vrot.lane.b32.xlu0 %v1481, 96
    %v1488 = vpop.permute.xlu0 %1487
    %v1490 = vadd.f32 %v1486, %v1488
    %1492 = vrot.lane.b32.xlu0 %v1490, 112
    %v1493 = vpop.permute.xlu0 %1492
    %v1495 = vadd.f32 %v1476, %v1493
    %v1496 = vstv %s1467
    %v1497 = vmul.f32 %v1496, %v95
    %v1498 = vlaneseq
    %v1499 = vshrl.u32 %v1498, 7
    %v1500 = vsub.s32 0, %v1499
    %v1501 = vrot.slane %v1497, %v1500
    %v1503 = vsel %vm327, %v1495, 0
    %1505 = vmatprep.subr.mxu0 0.0
    %1506 = vmatpush1.msra.mxu0 %v96
    %1507 = vmatprep.subr.mxu0 0.0
    %1508 = vmatpush1.msra.mxu0 %v97
    %1509 = vmatprep.subr.mxu0 0.0
    %1510 = vmatpush1.msra.mxu0 0.0
    %1511 = vmatprep.subr.mxu0 0.0
    %1512 = vmatpush1.msra.mxu0 0.0
    %1513 = vmatprep.subr.mxu0 0.0
    %1514 = vmatpush1.msra.mxu0 0.0
    %1515 = vmatprep.subr.mxu0 0.0
    %1516 = vmatpush1.msra.mxu0 0.0
    %1517 = vmatprep.subr.mxu0 0.0
    %1518 = vmatpush1.msra.mxu0 0.0
    %1519 = vmatprep.subr.mxu0 0.0
    %1520 = vmatpush1.msra.mxu0 0.0
    %1521 = vmatprep.subr.mxu0 0.0
    %1522 = vmatpush1.msra.mxu0 0.0
    %1523 = vmatprep.subr.mxu0 0.0
    %1524 = vmatpush1.msra.mxu0 0.0
    %1525 = vmatprep.subr.mxu0 0.0
    %1526 = vmatpush1.msra.mxu0 0.0
    %1527 = vmatprep.subr.mxu0 0.0
    %1528 = vmatpush1.msra.mxu0 0.0
    %1529 = vmatprep.subr.mxu0 0.0
    %1530 = vmatpush1.msra.mxu0 0.0
    %1531 = vmatprep.subr.mxu0 0.0
    %1532 = vmatpush1.msra.mxu0 0.0
    %1533 = vmatprep.subr.mxu0 0.0
    %1534 = vmatpush1.msra.mxu0 0.0
    %1535 = vmatprep.subr.mxu0 0.0
    %1536 = vmatpush1.msra.mxu0 0.0
    %1537 = vmatprep.subr.mxu0 0.0
    %1538 = vmatpush1.msra.mxu0 0.0
    %1539 = vmatprep.subr.mxu0 0.0
    %1540 = vmatpush1.msra.mxu0 0.0
    %1541 = vmatprep.subr.mxu0 0.0
    %1542 = vmatpush1.msra.mxu0 0.0
    %1543 = vmatprep.subr.mxu0 0.0
    %1544 = vmatpush1.msra.mxu0 0.0
    %1545 = vmatprep.subr.mxu0 0.0
    %1546 = vmatpush1.msra.mxu0 0.0
    %1547 = vmatprep.subr.mxu0 0.0
    %1548 = vmatpush1.msra.mxu0 0.0
    %1549 = vmatprep.subr.mxu0 0.0
    %1550 = vmatpush1.msra.mxu0 0.0
    %1551 = vmatprep.subr.mxu0 0.0
    %1552 = vmatpush1.msra.mxu0 0.0
    %1553 = vmatprep.subr.mxu0 0.0
    %1554 = vmatpush1.msra.mxu0 0.0
    %1555 = vmatprep.subr.mxu0 0.0
    %1556 = vmatpush1.msra.mxu0 0.0
    %1557 = vmatprep.subr.mxu0 0.0
    %1558 = vmatpush1.msra.mxu0 0.0
    %1559 = vmatprep.subr.mxu0 0.0
    %1560 = vmatpush1.msra.mxu0 0.0
    %1561 = vmatprep.subr.mxu0 0.0
    %1562 = vmatpush1.msra.mxu0 0.0
    %1563 = vmatprep.subr.mxu0 0.0
    %1564 = vmatpush1.msra.mxu0 0.0
    %1565 = vmatprep.subr.mxu0 0.0
    %1566 = vmatpush1.msra.mxu0 0.0
    %1567 = vmatprep.subr.mxu0 0.0
    %1568 = vmatpush1.msra.mxu0 0.0
    %1569 = vmatprep.mubr.f32.mxu0 0.0
    %1570 = vmatmul.mubr.f32.gmra.mrb[0].mxu0 %v1503
    %v1571 = vpop.f32.mrb[0].mxu0
    %v1572 = vadd.f32 %v1501, %v1571
    %v1573 = vpop.f32.mrb[0].mxu0
    %1574 = vdwg.mxu0
    %v1575 = vadd.f32 %v1572, %v885
    %v1576 = vmul.f32 %v1575, 0.909
    %v1577 = vsub.f32 0.0, %v1575
    %v1578 = vmul.f32 %v1577, 1.442695
    %v1579 = vpow.pop %v1578
    %v1580 = vadd.f32 %v1579, 1.0
    %v1581 = vrcp.pop %v1580
    %v1582 = vmul.f32 1.0, %v1581
    %v1583 = vmul.f32 %v1576, %v1582
    %v1585 = vsel %vm1012, %v1583, 0
    %1587 = vmatprep.subr.mxu0 0.0
    %1588 = vmatpush1.msra.mxu0 %v100
    %1589 = vmatprep.subr.mxu0 0.0
    %1590 = vmatpush1.msra.mxu0 %v101
    %1591 = vmatprep.subr.mxu0 0.0
    %1592 = vmatpush1.msra.mxu0 %v102
    %1593 = vmatprep.subr.mxu0 0.0
    %1594 = vmatpush1.msra.mxu0 %v103
    %1595 = vmatprep.subr.mxu0 0.0
    %1596 = vmatpush1.msra.mxu0 %v104
    %1597 = vmatprep.subr.mxu0 0.0
    %1598 = vmatpush1.msra.mxu0 %v105
    %1599 = vmatprep.subr.mxu0 0.0
    %1600 = vmatpush1.msra.mxu0 %v106
    %1601 = vmatprep.subr.mxu0 0.0
    %1602 = vmatpush1.msra.mxu0 %v107
    %1603 = vmatprep.subr.mxu0 0.0
    %1604 = vmatpush1.msra.mxu0 0.0
    %1605 = vmatprep.subr.mxu0 0.0
    %1606 = vmatpush1.msra.mxu0 0.0
    %1607 = vmatprep.subr.mxu0 0.0
    %1608 = vmatpush1.msra.mxu0 0.0
    %1609 = vmatprep.subr.mxu0 0.0
    %1610 = vmatpush1.msra.mxu0 0.0
    %1611 = vmatprep.subr.mxu0 0.0
    %1612 = vmatpush1.msra.mxu0 0.0
    %1613 = vmatprep.subr.mxu0 0.0
    %1614 = vmatpush1.msra.mxu0 0.0
    %1615 = vmatprep.subr.mxu0 0.0
    %1616 = vmatpush1.msra.mxu0 0.0
    %1617 = vmatprep.subr.mxu0 0.0
    %1618 = vmatpush1.msra.mxu0 0.0
    %1619 = vmatprep.subr.mxu0 0.0
    %1620 = vmatpush1.msra.mxu0 0.0
    %1621 = vmatprep.subr.mxu0 0.0
    %1622 = vmatpush1.msra.mxu0 0.0
    %1623 = vmatprep.subr.mxu0 0.0
    %1624 = vmatpush1.msra.mxu0 0.0
    %1625 = vmatprep.subr.mxu0 0.0
    %1626 = vmatpush1.msra.mxu0 0.0
    %1627 = vmatprep.subr.mxu0 0.0
    %1628 = vmatpush1.msra.mxu0 0.0
    %1629 = vmatprep.subr.mxu0 0.0
    %1630 = vmatpush1.msra.mxu0 0.0
    %1631 = vmatprep.subr.mxu0 0.0
    %1632 = vmatpush1.msra.mxu0 0.0
    %1633 = vmatprep.subr.mxu0 0.0
    %1634 = vmatpush1.msra.mxu0 0.0
    %1635 = vmatprep.subr.mxu0 0.0
    %1636 = vmatpush1.msra.mxu0 0.0
    %1637 = vmatprep.subr.mxu0 0.0
    %1638 = vmatpush1.msra.mxu0 0.0
    %1639 = vmatprep.subr.mxu0 0.0
    %1640 = vmatpush1.msra.mxu0 0.0
    %1641 = vmatprep.subr.mxu0 0.0
    %1642 = vmatpush1.msra.mxu0 0.0
    %1643 = vmatprep.subr.mxu0 0.0
    %1644 = vmatpush1.msra.mxu0 0.0
    %1645 = vmatprep.subr.mxu0 0.0
    %1646 = vmatpush1.msra.mxu0 0.0
    %1647 = vmatprep.subr.mxu0 0.0
    %1648 = vmatpush1.msra.mxu0 0.0
    %1649 = vmatprep.subr.mxu0 0.0
    %1650 = vmatpush1.msra.mxu0 0.0
    %1651 = vmatprep.mubr.f32.mxu0 0.0
    %1652 = vmatmul.mubr.f32.gmra.mrb[0].mxu0 %v1585
    %v1653 = vpop.f32.mrb[0].mxu0
    %v1654 = vadd.f32 %v1011, %v1653
    %v1655 = vpop.f32.mrb[0].mxu0
    %1656 = vdwg.mxu0
    %v1657 = vmul.f32 %v1654, 0.909
    %v1658 = vsub.f32 0.0, %v1654
    %v1659 = vmul.f32 %v1658, 1.442695
    %v1660 = vpow.pop %v1659
    %v1661 = vadd.f32 %v1660, 1.0
    %v1662 = vrcp.pop %v1661
    %v1663 = vmul.f32 1.0, %v1662
    %v1664 = vmul.f32 %v1657, %v1663
    %v1666 = vsel %vm1012, %v1664, 0
    %1668 = vmatprep.subr.mxu0 0.0
    %1669 = vmatpush1.msra.mxu0 %v109
    %1670 = vmatprep.subr.mxu0 0.0
    %1671 = vmatpush1.msra.mxu0 %v110
    %1672 = vmatprep.subr.mxu0 0.0
    %1673 = vmatpush1.msra.mxu0 %v111
    %1674 = vmatprep.subr.mxu0 0.0
    %1675 = vmatpush1.msra.mxu0 %v112
    %1676 = vmatprep.subr.mxu0 0.0
    %1677 = vmatpush1.msra.mxu0 %v113
    %1678 = vmatprep.subr.mxu0 0.0
    %1679 = vmatpush1.msra.mxu0 %v114
    %1680 = vmatprep.subr.mxu0 0.0
    %1681 = vmatpush1.msra.mxu0 %v115
    %1682 = vmatprep.subr.mxu0 0.0
    %1683 = vmatpush1.msra.mxu0 %v116
    %1684 = vmatprep.subr.mxu0 0.0
    %1685 = vmatpush1.msra.mxu0 0.0
    %1686 = vmatprep.subr.mxu0 0.0
    %1687 = vmatpush1.msra.mxu0 0.0
    %1688 = vmatprep.subr.mxu0 0.0
    %1689 = vmatpush1.msra.mxu0 0.0
    %1690 = vmatprep.subr.mxu0 0.0
    %1691 = vmatpush1.msra.mxu0 0.0
    %1692 = vmatprep.subr.mxu0 0.0
    %1693 = vmatpush1.msra.mxu0 0.0
    %1694 = vmatprep.subr.mxu0 0.0
    %1695 = vmatpush1.msra.mxu0 0.0
    %1696 = vmatprep.subr.mxu0 0.0
    %1697 = vmatpush1.msra.mxu0 0.0
    %1698 = vmatprep.subr.mxu0 0.0
    %1699 = vmatpush1.msra.mxu0 0.0
    %1700 = vmatprep.subr.mxu0 0.0
    %1701 = vmatpush1.msra.mxu0 0.0
    %1702 = vmatprep.subr.mxu0 0.0
    %1703 = vmatpush1.msra.mxu0 0.0
    %1704 = vmatprep.subr.mxu0 0.0
    %1705 = vmatpush1.msra.mxu0 0.0
    %1706 = vmatprep.subr.mxu0 0.0
    %1707 = vmatpush1.msra.mxu0 0.0
    %1708 = vmatprep.subr.mxu0 0.0
    %1709 = vmatpush1.msra.mxu0 0.0
    %1710 = vmatprep.subr.mxu0 0.0
    %1711 = vmatpush1.msra.mxu0 0.0
    %1712 = vmatprep.subr.mxu0 0.0
    %1713 = vmatpush1.msra.mxu0 0.0
    %1714 = vmatprep.subr.mxu0 0.0
    %1715 = vmatpush1.msra.mxu0 0.0
    %1716 = vmatprep.subr.mxu0 0.0
    %1717 = vmatpush1.msra.mxu0 0.0
    %1718 = vmatprep.subr.mxu0 0.0
    %1719 = vmatpush1.msra.mxu0 0.0
    %1720 = vmatprep.subr.mxu0 0.0
    %1721 = vmatpush1.msra.mxu0 0.0
    %1722 = vmatprep.subr.mxu0 0.0
    %1723 = vmatpush1.msra.mxu0 0.0
    %1724 = vmatprep.subr.mxu0 0.0
    %1725 = vmatpush1.msra.mxu0 0.0
    %1726 = vmatprep.subr.mxu0 0.0
    %1727 = vmatpush1.msra.mxu0 0.0
    %1728 = vmatprep.subr.mxu0 0.0
    %1729 = vmatpush1.msra.mxu0 0.0
    %1730 = vmatprep.subr.mxu0 0.0
    %1731 = vmatpush1.msra.mxu0 0.0
    %1732 = vmatprep.mubr.f32.mxu0 0.0
    %1733 = vmatmul.mubr.f32.gmra.mrb[0].mxu0 %v1666
    %v1734 = vpop.f32.mrb[0].mxu0
    %v1735 = vadd.f32 %v1097, %v1734
    %v1736 = vpop.f32.mrb[0].mxu0
    %1737 = vdwg.mxu0
    %v1738 = vtanh.pop %v1735
    %s1739 = smul.f32 %s1469, 0.5
    %v1740 = vadd.f32 %v1443, %v1738
    %v1741 = vstv %s1739
    %v1742 = vmul.f32 %v1741, %v1740
    %v1743 = vadd.f32 %v1464, %v1742
    %v1744 = vmul.f32 %v1740, %v1479
    %1746 = vrot.lane.b32.xlu0 %v1744, 112
    %v1747 = vpop.permute.xlu0 %1746
    %v1749 = vadd.f32 %v1744, %v1747
    %1750 = vrot.lane.b32.xlu0 %v1744, 96
    %v1751 = vpop.permute.xlu0 %1750
    %v1753 = vadd.f32 %v1749, %v1751
    %v1754 = vmul.f32 %v1753, 0.5
    %1756 = vrot.lane.b32.xlu0 %v1754, 112
    %v1757 = vpop.permute.xlu0 %1756
    %v1759 = vadd.f32 %v1743, %v1757
    %s1760 = scalar_lea.vmem [#allocation2], 8
    %1761 = vst.msk [vmem:[%s1760] sm:$0xf] %vm862, %v1759
    %s1762 = sld [smem:[#allocation3 + $0x3]]
    %s1763 = sld [smem:[#allocation3 + $0x2]]
    %s1764 = ssub.f32 %s1762, %s1763
    %s1765 = scalar_lea.vmem [#allocation6], 8
    %v1766 = vld [vmem:[%s1765] sm:$0xf]
    %v1767 = vmul.f32 %v1759, 2.0
    %v1768 = vsub.f32 %v1767, %v1495
    %v1769 = vstv %s1764
    %v1770 = vmul.f32 %v1738, %v1769
    %v1771 = vadd.f32 %v1768, %v1770
    %1773 = vrot.lane.b32.xlu0 %v1766, 16
    %v1774 = vpop.permute.xlu0 %1773
    %v1776 = vmul.f32 %v1738, %v1774
    %1778 = vrot.lane.b32.xlu0 %v1776, 112
    %v1779 = vpop.permute.xlu0 %1778
    %v1781 = vadd.f32 %v1776, %v1779
    %1782 = vrot.lane.b32.xlu0 %v1776, 96
    %v1783 = vpop.permute.xlu0 %1782
    %v1785 = vadd.f32 %v1781, %v1783
    %1787 = vrot.lane.b32.xlu0 %v1785, 112
    %v1788 = vpop.permute.xlu0 %1787
    %v1790 = vadd.f32 %v1771, %v1788
    %v1791 = vstv %s1762
    %v1792 = vmul.f32 %v1791, %v95
    %v1793 = vlaneseq
    %v1794 = vshrl.u32 %v1793, 7
    %v1795 = vsub.s32 0, %v1794
    %v1796 = vrot.slane %v1792, %v1795
    %v1798 = vsel %vm327, %v1790, 0
    %1800 = vmatprep.subr.mxu0 0.0
    %1801 = vmatpush1.msra.mxu0 %v96
    %1802 = vmatprep.subr.mxu0 0.0
    %1803 = vmatpush1.msra.mxu0 %v97
    %1804 = vmatprep.subr.mxu0 0.0
    %1805 = vmatpush1.msra.mxu0 0.0
    %1806 = vmatprep.subr.mxu0 0.0
    %1807 = vmatpush1.msra.mxu0 0.0
    %1808 = vmatprep.subr.mxu0 0.0
    %1809 = vmatpush1.msra.mxu0 0.0
    %1810 = vmatprep.subr.mxu0 0.0
    %1811 = vmatpush1.msra.mxu0 0.0
    %1812 = vmatprep.subr.mxu0 0.0
    %1813 = vmatpush1.msra.mxu0 0.0
    %1814 = vmatprep.subr.mxu0 0.0
    %1815 = vmatpush1.msra.mxu0 0.0
    %1816 = vmatprep.subr.mxu0 0.0
    %1817 = vmatpush1.msra.mxu0 0.0
    %1818 = vmatprep.subr.mxu0 0.0
    %1819 = vmatpush1.msra.mxu0 0.0
    %1820 = vmatprep.subr.mxu0 0.0
    %1821 = vmatpush1.msra.mxu0 0.0
    %1822 = vmatprep.subr.mxu0 0.0
    %1823 = vmatpush1.msra.mxu0 0.0
    %1824 = vmatprep.subr.mxu0 0.0
    %1825 = vmatpush1.msra.mxu0 0.0
    %1826 = vmatprep.subr.mxu0 0.0
    %1827 = vmatpush1.msra.mxu0 0.0
    %1828 = vmatprep.subr.mxu0 0.0
    %1829 = vmatpush1.msra.mxu0 0.0
    %1830 = vmatprep.subr.mxu0 0.0
    %1831 = vmatpush1.msra.mxu0 0.0
    %1832 = vmatprep.subr.mxu0 0.0
    %1833 = vmatpush1.msra.mxu0 0.0
    %1834 = vmatprep.subr.mxu0 0.0
    %1835 = vmatpush1.msra.mxu0 0.0
    %1836 = vmatprep.subr.mxu0 0.0
    %1837 = vmatpush1.msra.mxu0 0.0
    %1838 = vmatprep.subr.mxu0 0.0
    %1839 = vmatpush1.msra.mxu0 0.0
    %1840 = vmatprep.subr.mxu0 0.0
    %1841 = vmatpush1.msra.mxu0 0.0
    %1842 = vmatprep.subr.mxu0 0.0
    %1843 = vmatpush1.msra.mxu0 0.0
    %1844 = vmatprep.subr.mxu0 0.0
    %1845 = vmatpush1.msra.mxu0 0.0
    %1846 = vmatprep.subr.mxu0 0.0
    %1847 = vmatpush1.msra.mxu0 0.0
    %1848 = vmatprep.subr.mxu0 0.0
    %1849 = vmatpush1.msra.mxu0 0.0
    %1850 = vmatprep.subr.mxu0 0.0
    %1851 = vmatpush1.msra.mxu0 0.0
    %1852 = vmatprep.subr.mxu0 0.0
    %1853 = vmatpush1.msra.mxu0 0.0
    %1854 = vmatprep.subr.mxu0 0.0
    %1855 = vmatpush1.msra.mxu0 0.0
    %1856 = vmatprep.subr.mxu0 0.0
    %1857 = vmatpush1.msra.mxu0 0.0
    %1858 = vmatprep.subr.mxu0 0.0
    %1859 = vmatpush1.msra.mxu0 0.0
    %1860 = vmatprep.subr.mxu0 0.0
    %1861 = vmatpush1.msra.mxu0 0.0
    %1862 = vmatprep.subr.mxu0 0.0
    %1863 = vmatpush1.msra.mxu0 0.0
    %1864 = vmatprep.mubr.f32.mxu0 0.0
    %1865 = vmatmul.mubr.f32.gmra.mrb[0].mxu0 %v1798
    %v1866 = vpop.f32.mrb[0].mxu0
    %v1867 = vadd.f32 %v1796, %v1866
    %v1868 = vpop.f32.mrb[0].mxu0
    %1869 = vdwg.mxu0
    %v1870 = vadd.f32 %v1867, %v885
    %v1871 = vmul.f32 %v1870, 0.909
    %v1872 = vsub.f32 0.0, %v1870
    %v1873 = vmul.f32 %v1872, 1.442695
    %v1874 = vpow.pop %v1873
    %v1875 = vadd.f32 %v1874, 1.0
    %v1876 = vrcp.pop %v1875
    %v1877 = vmul.f32 1.0, %v1876
    %v1878 = vmul.f32 %v1871, %v1877
    %v1880 = vsel %vm1012, %v1878, 0
    %1882 = vmatprep.subr.mxu0 0.0
    %1883 = vmatpush1.msra.mxu0 %v100
    %1884 = vmatprep.subr.mxu0 0.0
    %1885 = vmatpush1.msra.mxu0 %v101
    %1886 = vmatprep.subr.mxu0 0.0
    %1887 = vmatpush1.msra.mxu0 %v102
    %1888 = vmatprep.subr.mxu0 0.0
    %1889 = vmatpush1.msra.mxu0 %v103
    %1890 = vmatprep.subr.mxu0 0.0
    %1891 = vmatpush1.msra.mxu0 %v104
    %1892 = vmatprep.subr.mxu0 0.0
    %1893 = vmatpush1.msra.mxu0 %v105
    %1894 = vmatprep.subr.mxu0 0.0
    %1895 = vmatpush1.msra.mxu0 %v106
    %1896 = vmatprep.subr.mxu0 0.0
    %1897 = vmatpush1.msra.mxu0 %v107
    %1898 = vmatprep.subr.mxu0 0.0
    %1899 = vmatpush1.msra.mxu0 0.0
    %1900 = vmatprep.subr.mxu0 0.0
    %1901 = vmatpush1.msra.mxu0 0.0
    %1902 = vmatprep.subr.mxu0 0.0
    %1903 = vmatpush1.msra.mxu0 0.0
    %1904 = vmatprep.subr.mxu0 0.0
    %1905 = vmatpush1.msra.mxu0 0.0
    %1906 = vmatprep.subr.mxu0 0.0
    %1907 = vmatpush1.msra.mxu0 0.0
    %1908 = vmatprep.subr.mxu0 0.0
    %1909 = vmatpush1.msra.mxu0 0.0
    %1910 = vmatprep.subr.mxu0 0.0
    %1911 = vmatpush1.msra.mxu0 0.0
    %1912 = vmatprep.subr.mxu0 0.0
    %1913 = vmatpush1.msra.mxu0 0.0
    %1914 = vmatprep.subr.mxu0 0.0
    %1915 = vmatpush1.msra.mxu0 0.0
    %1916 = vmatprep.subr.mxu0 0.0
    %1917 = vmatpush1.msra.mxu0 0.0
    %1918 = vmatprep.subr.mxu0 0.0
    %1919 = vmatpush1.msra.mxu0 0.0
    %1920 = vmatprep.subr.mxu0 0.0
    %1921 = vmatpush1.msra.mxu0 0.0
    %1922 = vmatprep.subr.mxu0 0.0
    %1923 = vmatpush1.msra.mxu0 0.0
    %1924 = vmatprep.subr.mxu0 0.0
    %1925 = vmatpush1.msra.mxu0 0.0
    %1926 = vmatprep.subr.mxu0 0.0
    %1927 = vmatpush1.msra.mxu0 0.0
    %1928 = vmatprep.subr.mxu0 0.0
    %1929 = vmatpush1.msra.mxu0 0.0
    %1930 = vmatprep.subr.mxu0 0.0
    %1931 = vmatpush1.msra.mxu0 0.0
    %1932 = vmatprep.subr.mxu0 0.0
    %1933 = vmatpush1.msra.mxu0 0.0
    %1934 = vmatprep.subr.mxu0 0.0
    %1935 = vmatpush1.msra.mxu0 0.0
    %1936 = vmatprep.subr.mxu0 0.0
    %1937 = vmatpush1.msra.mxu0 0.0
    %1938 = vmatprep.subr.mxu0 0.0
    %1939 = vmatpush1.msra.mxu0 0.0
    %1940 = vmatprep.subr.mxu0 0.0
    %1941 = vmatpush1.msra.mxu0 0.0
    %1942 = vmatprep.subr.mxu0 0.0
    %1943 = vmatpush1.msra.mxu0 0.0
    %1944 = vmatprep.subr.mxu0 0.0
    %1945 = vmatpush1.msra.mxu0 0.0
    %1946 = vmatprep.mubr.f32.mxu0 0.0
    %1947 = vmatmul.mubr.f32.gmra.mrb[0].mxu0 %v1880
    %v1948 = vpop.f32.mrb[0].mxu0
    %v1949 = vadd.f32 %v1011, %v1948
    %v1950 = vpop.f32.mrb[0].mxu0
    %1951 = vdwg.mxu0
    %v1952 = vmul.f32 %v1949, 0.909
    %v1953 = vsub.f32 0.0, %v1949
    %v1954 = vmul.f32 %v1953, 1.442695
    %v1955 = vpow.pop %v1954
    %v1956 = vadd.f32 %v1955, 1.0
    %v1957 = vrcp.pop %v1956
    %v1958 = vmul.f32 1.0, %v1957
    %v1959 = vmul.f32 %v1952, %v1958
    %v1961 = vsel %vm1012, %v1959, 0
    %1963 = vmatprep.subr.mxu0 0.0
    %1964 = vmatpush1.msra.mxu0 %v109
    %1965 = vmatprep.subr.mxu0 0.0
    %1966 = vmatpush1.msra.mxu0 %v110
    %1967 = vmatprep.subr.mxu0 0.0
    %1968 = vmatpush1.msra.mxu0 %v111
    %1969 = vmatprep.subr.mxu0 0.0
    %1970 = vmatpush1.msra.mxu0 %v112
    %1971 = vmatprep.subr.mxu0 0.0
    %1972 = vmatpush1.msra.mxu0 %v113
    %1973 = vmatprep.subr.mxu0 0.0
    %1974 = vmatpush1.msra.mxu0 %v114
    %1975 = vmatprep.subr.mxu0 0.0
    %1976 = vmatpush1.msra.mxu0 %v115
    %1977 = vmatprep.subr.mxu0 0.0
    %1978 = vmatpush1.msra.mxu0 %v116
    %1979 = vmatprep.subr.mxu0 0.0
    %1980 = vmatpush1.msra.mxu0 0.0
    %1981 = vmatprep.subr.mxu0 0.0
    %1982 = vmatpush1.msra.mxu0 0.0
    %1983 = vmatprep.subr.mxu0 0.0
    %1984 = vmatpush1.msra.mxu0 0.0
    %1985 = vmatprep.subr.mxu0 0.0
    %1986 = vmatpush1.msra.mxu0 0.0
    %1987 = vmatprep.subr.mxu0 0.0
    %1988 = vmatpush1.msra.mxu0 0.0
    %1989 = vmatprep.subr.mxu0 0.0
    %1990 = vmatpush1.msra.mxu0 0.0
    %1991 = vmatprep.subr.mxu0 0.0
    %1992 = vmatpush1.msra.mxu0 0.0
    %1993 = vmatprep.subr.mxu0 0.0
    %1994 = vmatpush1.msra.mxu0 0.0
    %1995 = vmatprep.subr.mxu0 0.0
    %1996 = vmatpush1.msra.mxu0 0.0
    %1997 = vmatprep.subr.mxu0 0.0
    %1998 = vmatpush1.msra.mxu0 0.0
    %1999 = vmatprep.subr.mxu0 0.0
    %2000 = vmatpush1.msra.mxu0 0.0
    %2001 = vmatprep.subr.mxu0 0.0
    %2002 = vmatpush1.msra.mxu0 0.0
    %2003 = vmatprep.subr.mxu0 0.0
    %2004 = vmatpush1.msra.mxu0 0.0
    %2005 = vmatprep.subr.mxu0 0.0
    %2006 = vmatpush1.msra.mxu0 0.0
    %2007 = vmatprep.subr.mxu0 0.0
    %2008 = vmatpush1.msra.mxu0 0.0
    %2009 = vmatprep.subr.mxu0 0.0
    %2010 = vmatpush1.msra.mxu0 0.0
    %2011 = vmatprep.subr.mxu0 0.0
    %2012 = vmatpush1.msra.mxu0 0.0
    %2013 = vmatprep.subr.mxu0 0.0
    %2014 = vmatpush1.msra.mxu0 0.0
    %2015 = vmatprep.subr.mxu0 0.0
    %2016 = vmatpush1.msra.mxu0 0.0
    %2017 = vmatprep.subr.mxu0 0.0
    %2018 = vmatpush1.msra.mxu0 0.0
    %2019 = vmatprep.subr.mxu0 0.0
    %2020 = vmatpush1.msra.mxu0 0.0
    %2021 = vmatprep.subr.mxu0 0.0
    %2022 = vmatpush1.msra.mxu0 0.0
    %2023 = vmatprep.subr.mxu0 0.0
    %2024 = vmatpush1.msra.mxu0 0.0
    %2025 = vmatprep.subr.mxu0 0.0
    %2026 = vmatpush1.msra.mxu0 0.0
    %2027 = vmatprep.mubr.f32.mxu0 0.0
    %2028 = vmatmul.mubr.f32.gmra.mrb[0].mxu0 %v1961
    %v2029 = vpop.f32.mrb[0].mxu0
    %v2030 = vadd.f32 %v1097, %v2029
    %v2031 = vpop.f32.mrb[0].mxu0
    %2032 = vdwg.mxu0
    %v2033 = vtanh.pop %v2030
    %s2034 = smul.f32 %s1764, 0.5
    %v2035 = vadd.f32 %v1738, %v2033
    %v2036 = vstv %s2034
    %v2037 = vmul.f32 %v2036, %v2035
    %v2038 = vadd.f32 %v1759, %v2037
    %v2039 = vmul.f32 %v2035, %v1774
    %2041 = vrot.lane.b32.xlu0 %v2039, 112
    %v2042 = vpop.permute.xlu0 %2041
    %v2044 = vadd.f32 %v2039, %v2042
    %2045 = vrot.lane.b32.xlu0 %v2039, 96
    %v2046 = vpop.permute.xlu0 %2045
    %v2048 = vadd.f32 %v2044, %v2046
    %v2049 = vmul.f32 %v2048, 0.5
    %2051 = vrot.lane.b32.xlu0 %v2049, 112
    %v2052 = vpop.permute.xlu0 %2051
    %v2054 = vadd.f32 %v2038, %v2052
    %s2055 = scalar_lea.vmem [#allocation2], 12
    %2056 = vst.msk [vmem:[%s2055] sm:$0xf] %vm862, %v2054
    %s2057 = sld [smem:[#allocation3 + $0x4]]
    %s2058 = sld [smem:[#allocation3 + $0x3]]
    %s2059 = ssub.f32 %s2057, %s2058
    %s2060 = scalar_lea.vmem [#allocation6], 12
    %v2061 = vld [vmem:[%s2060] sm:$0xf]
    %v2062 = vmul.f32 %v2054, 2.0
    %v2063 = vsub.f32 %v2062, %v1790
    %v2064 = vstv %s2059
    %v2065 = vmul.f32 %v2033, %v2064
    %v2066 = vadd.f32 %v2063, %v2065
    %2068 = vrot.lane.b32.xlu0 %v2061, 16
    %v2069 = vpop.permute.xlu0 %2068
    %v2071 = vmul.f32 %v2033, %v2069
    %2073 = vrot.lane.b32.xlu0 %v2071, 112
    %v2074 = vpop.permute.xlu0 %2073
    %v2076 = vadd.f32 %v2071, %v2074
    %2077 = vrot.lane.b32.xlu0 %v2071, 96
    %v2078 = vpop.permute.xlu0 %2077
    %v2080 = vadd.f32 %v2076, %v2078
    %2082 = vrot.lane.b32.xlu0 %v2080, 112
    %v2083 = vpop.permute.xlu0 %2082
    %v2085 = vadd.f32 %v2066, %v2083
    %v2086 = vstv %s2057
    %v2087 = vmul.f32 %v2086, %v95
    %v2088 = vlaneseq
    %v2089 = vshrl.u32 %v2088, 7
    %v2090 = vsub.s32 0, %v2089
    %v2091 = vrot.slane %v2087, %v2090
    %v2093 = vsel %vm327, %v2085, 0
    %2095 = vmatprep.subr.mxu0 0.0
    %2096 = vmatpush1.msra.mxu0 %v96
    %2097 = vmatprep.subr.mxu0 0.0
    %2098 = vmatpush1.msra.mxu0 %v97
    %2099 = vmatprep.subr.mxu0 0.0
    %2100 = vmatpush1.msra.mxu0 0.0
    %2101 = vmatprep.subr.mxu0 0.0
    %2102 = vmatpush1.msra.mxu0 0.0
    %2103 = vmatprep.subr.mxu0 0.0
    %2104 = vmatpush1.msra.mxu0 0.0
    %2105 = vmatprep.subr.mxu0 0.0
    %2106 = vmatpush1.msra.mxu0 0.0
    %2107 = vmatprep.subr.mxu0 0.0
    %2108 = vmatpush1.msra.mxu0 0.0
    %2109 = vmatprep.subr.mxu0 0.0
    %2110 = vmatpush1.msra.mxu0 0.0
    %2111 = vmatprep.subr.mxu0 0.0
    %2112 = vmatpush1.msra.mxu0 0.0
    %2113 = vmatprep.subr.mxu0 0.0
    %2114 = vmatpush1.msra.mxu0 0.0
    %2115 = vmatprep.subr.mxu0 0.0
    %2116 = vmatpush1.msra.mxu0 0.0
    %2117 = vmatprep.subr.mxu0 0.0
    %2118 = vmatpush1.msra.mxu0 0.0
    %2119 = vmatprep.subr.mxu0 0.0
    %2120 = vmatpush1.msra.mxu0 0.0
    %2121 = vmatprep.subr.mxu0 0.0
    %2122 = vmatpush1.msra.mxu0 0.0
    %2123 = vmatprep.subr.mxu0 0.0
    %2124 = vmatpush1.msra.mxu0 0.0
    %2125 = vmatprep.subr.mxu0 0.0
    %2126 = vmatpush1.msra.mxu0 0.0
    %2127 = vmatprep.subr.mxu0 0.0
    %2128 = vmatpush1.msra.mxu0 0.0
    %2129 = vmatprep.subr.mxu0 0.0
    %2130 = vmatpush1.msra.mxu0 0.0
    %2131 = vmatprep.subr.mxu0 0.0
    %2132 = vmatpush1.msra.mxu0 0.0
    %2133 = vmatprep.subr.mxu0 0.0
    %2134 = vmatpush1.msra.mxu0 0.0
    %2135 = vmatprep.subr.mxu0 0.0
    %2136 = vmatpush1.msra.mxu0 0.0
    %2137 = vmatprep.subr.mxu0 0.0
    %2138 = vmatpush1.msra.mxu0 0.0
    %2139 = vmatprep.subr.mxu0 0.0
    %2140 = vmatpush1.msra.mxu0 0.0
    %2141 = vmatprep.subr.mxu0 0.0
    %2142 = vmatpush1.msra.mxu0 0.0
    %2143 = vmatprep.subr.mxu0 0.0
    %2144 = vmatpush1.msra.mxu0 0.0
    %2145 = vmatprep.subr.mxu0 0.0
    %2146 = vmatpush1.msra.mxu0 0.0
    %2147 = vmatprep.subr.mxu0 0.0
    %2148 = vmatpush1.msra.mxu0 0.0
    %2149 = vmatprep.subr.mxu0 0.0
    %2150 = vmatpush1.msra.mxu0 0.0
    %2151 = vmatprep.subr.mxu0 0.0
    %2152 = vmatpush1.msra.mxu0 0.0
    %2153 = vmatprep.subr.mxu0 0.0
    %2154 = vmatpush1.msra.mxu0 0.0
    %2155 = vmatprep.subr.mxu0 0.0
    %2156 = vmatpush1.msra.mxu0 0.0
    %2157 = vmatprep.subr.mxu0 0.0
    %2158 = vmatpush1.msra.mxu0 0.0
    %2159 = vmatprep.mubr.f32.mxu0 0.0
    %2160 = vmatmul.mubr.f32.gmra.mrb[0].mxu0 %v2093
    %v2161 = vpop.f32.mrb[0].mxu0
    %v2162 = vadd.f32 %v2091, %v2161
    %v2163 = vpop.f32.mrb[0].mxu0
    %2164 = vdwg.mxu0
    %v2165 = vadd.f32 %v2162, %v885
    %v2166 = vmul.f32 %v2165, 0.909
    %v2167 = vsub.f32 0.0, %v2165
    %v2168 = vmul.f32 %v2167, 1.442695
    %v2169 = vpow.pop %v2168
    %v2170 = vadd.f32 %v2169, 1.0
    %v2171 = vrcp.pop %v2170
    %v2172 = vmul.f32 1.0, %v2171
    %v2173 = vmul.f32 %v2166, %v2172
    %v2175 = vsel %vm1012, %v2173, 0
    %2177 = vmatprep.subr.mxu0 0.0
    %2178 = vmatpush1.msra.mxu0 %v100
    %2179 = vmatprep.subr.mxu0 0.0
    %2180 = vmatpush1.msra.mxu0 %v101
    %2181 = vmatprep.subr.mxu0 0.0
    %2182 = vmatpush1.msra.mxu0 %v102
    %2183 = vmatprep.subr.mxu0 0.0
    %2184 = vmatpush1.msra.mxu0 %v103
    %2185 = vmatprep.subr.mxu0 0.0
    %2186 = vmatpush1.msra.mxu0 %v104
    %2187 = vmatprep.subr.mxu0 0.0
    %2188 = vmatpush1.msra.mxu0 %v105
    %2189 = vmatprep.subr.mxu0 0.0
    %2190 = vmatpush1.msra.mxu0 %v106
    %2191 = vmatprep.subr.mxu0 0.0
    %2192 = vmatpush1.msra.mxu0 %v107
    %2193 = vmatprep.subr.mxu0 0.0
    %2194 = vmatpush1.msra.mxu0 0.0
    %2195 = vmatprep.subr.mxu0 0.0
    %2196 = vmatpush1.msra.mxu0 0.0
    %2197 = vmatprep.subr.mxu0 0.0
    %2198 = vmatpush1.msra.mxu0 0.0
    %2199 = vmatprep.subr.mxu0 0.0
    %2200 = vmatpush1.msra.mxu0 0.0
    %2201 = vmatprep.subr.mxu0 0.0
    %2202 = vmatpush1.msra.mxu0 0.0
    %2203 = vmatprep.subr.mxu0 0.0
    %2204 = vmatpush1.msra.mxu0 0.0
    %2205 = vmatprep.subr.mxu0 0.0
    %2206 = vmatpush1.msra.mxu0 0.0
    %2207 = vmatprep.subr.mxu0 0.0
    %2208 = vmatpush1.msra.mxu0 0.0
    %2209 = vmatprep.subr.mxu0 0.0
    %2210 = vmatpush1.msra.mxu0 0.0
    %2211 = vmatprep.subr.mxu0 0.0
    %2212 = vmatpush1.msra.mxu0 0.0
    %2213 = vmatprep.subr.mxu0 0.0
    %2214 = vmatpush1.msra.mxu0 0.0
    %2215 = vmatprep.subr.mxu0 0.0
    %2216 = vmatpush1.msra.mxu0 0.0
    %2217 = vmatprep.subr.mxu0 0.0
    %2218 = vmatpush1.msra.mxu0 0.0
    %2219 = vmatprep.subr.mxu0 0.0
    %2220 = vmatpush1.msra.mxu0 0.0
    %2221 = vmatprep.subr.mxu0 0.0
    %2222 = vmatpush1.msra.mxu0 0.0
    %2223 = vmatprep.subr.mxu0 0.0
    %2224 = vmatpush1.msra.mxu0 0.0
    %2225 = vmatprep.subr.mxu0 0.0
    %2226 = vmatpush1.msra.mxu0 0.0
    %2227 = vmatprep.subr.mxu0 0.0
    %2228 = vmatpush1.msra.mxu0 0.0
    %2229 = vmatprep.subr.mxu0 0.0
    %2230 = vmatpush1.msra.mxu0 0.0
    %2231 = vmatprep.subr.mxu0 0.0
    %2232 = vmatpush1.msra.mxu0 0.0
    %2233 = vmatprep.subr.mxu0 0.0
    %2234 = vmatpush1.msra.mxu0 0.0
    %2235 = vmatprep.subr.mxu0 0.0
    %2236 = vmatpush1.msra.mxu0 0.0
    %2237 = vmatprep.subr.mxu0 0.0
    %2238 = vmatpush1.msra.mxu0 0.0
    %2239 = vmatprep.subr.mxu0 0.0
    %2240 = vmatpush1.msra.mxu0 0.0
    %2241 = vmatprep.mubr.f32.mxu0 0.0
    %2242 = vmatmul.mubr.f32.gmra.mrb[0].mxu0 %v2175
    %v2243 = vpop.f32.mrb[0].mxu0
    %v2244 = vadd.f32 %v1011, %v2243
    %v2245 = vpop.f32.mrb[0].mxu0
    %2246 = vdwg.mxu0
    %v2247 = vmul.f32 %v2244, 0.909
    %v2248 = vsub.f32 0.0, %v2244
    %v2249 = vmul.f32 %v2248, 1.442695
    %v2250 = vpow.pop %v2249
    %v2251 = vadd.f32 %v2250, 1.0
    %v2252 = vrcp.pop %v2251
    %v2253 = vmul.f32 1.0, %v2252
    %v2254 = vmul.f32 %v2247, %v2253
    %v2256 = vsel %vm1012, %v2254, 0
    %2258 = vmatprep.subr.mxu0 0.0
    %2259 = vmatpush1.msra.mxu0 %v109
    %2260 = vmatprep.subr.mxu0 0.0
    %2261 = vmatpush1.msra.mxu0 %v110
    %2262 = vmatprep.subr.mxu0 0.0
    %2263 = vmatpush1.msra.mxu0 %v111
    %2264 = vmatprep.subr.mxu0 0.0
    %2265 = vmatpush1.msra.mxu0 %v112
    %2266 = vmatprep.subr.mxu0 0.0
    %2267 = vmatpush1.msra.mxu0 %v113
    %2268 = vmatprep.subr.mxu0 0.0
    %2269 = vmatpush1.msra.mxu0 %v114
    %2270 = vmatprep.subr.mxu0 0.0
    %2271 = vmatpush1.msra.mxu0 %v115
    %2272 = vmatprep.subr.mxu0 0.0
    %2273 = vmatpush1.msra.mxu0 %v116
    %2274 = vmatprep.subr.mxu0 0.0
    %2275 = vmatpush1.msra.mxu0 0.0
    %2276 = vmatprep.subr.mxu0 0.0
    %2277 = vmatpush1.msra.mxu0 0.0
    %2278 = vmatprep.subr.mxu0 0.0
    %2279 = vmatpush1.msra.mxu0 0.0
    %2280 = vmatprep.subr.mxu0 0.0
    %2281 = vmatpush1.msra.mxu0 0.0
    %2282 = vmatprep.subr.mxu0 0.0
    %2283 = vmatpush1.msra.mxu0 0.0
    %2284 = vmatprep.subr.mxu0 0.0
    %2285 = vmatpush1.msra.mxu0 0.0
    %2286 = vmatprep.subr.mxu0 0.0
    %2287 = vmatpush1.msra.mxu0 0.0
    %2288 = vmatprep.subr.mxu0 0.0
    %2289 = vmatpush1.msra.mxu0 0.0
    %2290 = vmatprep.subr.mxu0 0.0
    %2291 = vmatpush1.msra.mxu0 0.0
    %2292 = vmatprep.subr.mxu0 0.0
    %2293 = vmatpush1.msra.mxu0 0.0
    %2294 = vmatprep.subr.mxu0 0.0
    %2295 = vmatpush1.msra.mxu0 0.0
    %2296 = vmatprep.subr.mxu0 0.0
    %2297 = vmatpush1.msra.mxu0 0.0
    %2298 = vmatprep.subr.mxu0 0.0
    %2299 = vmatpush1.msra.mxu0 0.0
    %2300 = vmatprep.subr.mxu0 0.0
    %2301 = vmatpush1.msra.mxu0 0.0
    %2302 = vmatprep.subr.mxu0 0.0
    %2303 = vmatpush1.msra.mxu0 0.0
    %2304 = vmatprep.subr.mxu0 0.0
    %2305 = vmatpush1.msra.mxu0 0.0
    %2306 = vmatprep.subr.mxu0 0.0
    %2307 = vmatpush1.msra.mxu0 0.0
    %2308 = vmatprep.subr.mxu0 0.0
    %2309 = vmatpush1.msra.mxu0 0.0
    %2310 = vmatprep.subr.mxu0 0.0
    %2311 = vmatpush1.msra.mxu0 0.0
    %2312 = vmatprep.subr.mxu0 0.0
    %2313 = vmatpush1.msra.mxu0 0.0
    %2314 = vmatprep.subr.mxu0 0.0
    %2315 = vmatpush1.msra.mxu0 0.0
    %2316 = vmatprep.subr.mxu0 0.0
    %2317 = vmatpush1.msra.mxu0 0.0
    %2318 = vmatprep.subr.mxu0 0.0
    %2319 = vmatpush1.msra.mxu0 0.0
    %2320 = vmatprep.subr.mxu0 0.0
    %2321 = vmatpush1.msra.mxu0 0.0
    %2322 = vmatprep.mubr.f32.mxu0 0.0
    %2323 = vmatmul.mubr.f32.gmra.mrb[0].mxu0 %v2256
    %v2324 = vpop.f32.mrb[0].mxu0
    %v2325 = vadd.f32 %v1097, %v2324
    %v2326 = vpop.f32.mrb[0].mxu0
    %2327 = vdwg.mxu0
    %v2328 = vtanh.pop %v2325
    %s2329 = smul.f32 %s2059, 0.5
    %v2330 = vadd.f32 %v2033, %v2328
    %v2331 = vstv %s2329
    %v2332 = vmul.f32 %v2331, %v2330
    %v2333 = vadd.f32 %v2054, %v2332
    %v2334 = vmul.f32 %v2330, %v2069
    %2336 = vrot.lane.b32.xlu0 %v2334, 112
    %v2337 = vpop.permute.xlu0 %2336
    %v2339 = vadd.f32 %v2334, %v2337
    %2340 = vrot.lane.b32.xlu0 %v2334, 96
    %v2341 = vpop.permute.xlu0 %2340
    %v2343 = vadd.f32 %v2339, %v2341
    %v2344 = vmul.f32 %v2343, 0.5
    %2346 = vrot.lane.b32.xlu0 %v2344, 112
    %v2347 = vpop.permute.xlu0 %2346
    %v2349 = vadd.f32 %v2333, %v2347
    %s2350 = scalar_lea.vmem [#allocation2], 16
    %2351 = vst.msk [vmem:[%s2350] sm:$0xf] %vm862, %v2349
    %s2352 = sld [smem:[#allocation3 + $0x5]]
    %s2353 = sld [smem:[#allocation3 + $0x4]]
    %s2354 = ssub.f32 %s2352, %s2353
    %s2355 = scalar_lea.vmem [#allocation6], 16
    %v2356 = vld [vmem:[%s2355] sm:$0xf]
    %v2357 = vmul.f32 %v2349, 2.0
    %v2358 = vsub.f32 %v2357, %v2085
    %v2359 = vstv %s2354
    %v2360 = vmul.f32 %v2328, %v2359
    %v2361 = vadd.f32 %v2358, %v2360
    %2363 = vrot.lane.b32.xlu0 %v2356, 16
    %v2364 = vpop.permute.xlu0 %2363
    %v2366 = vmul.f32 %v2328, %v2364
    %2368 = vrot.lane.b32.xlu0 %v2366, 112
    %v2369 = vpop.permute.xlu0 %2368
    %v2371 = vadd.f32 %v2366, %v2369
    %2372 = vrot.lane.b32.xlu0 %v2366, 96
    %v2373 = vpop.permute.xlu0 %2372
    %v2375 = vadd.f32 %v2371, %v2373
    %2377 = vrot.lane.b32.xlu0 %v2375, 112
    %v2378 = vpop.permute.xlu0 %2377
    %v2380 = vadd.f32 %v2361, %v2378
    %v2381 = vstv %s2352
    %v2382 = vmul.f32 %v2381, %v95
    %v2383 = vlaneseq
    %v2384 = vshrl.u32 %v2383, 7
    %v2385 = vsub.s32 0, %v2384
    %v2386 = vrot.slane %v2382, %v2385
    %v2388 = vsel %vm327, %v2380, 0
    %2390 = vmatprep.subr.mxu0 0.0
    %2391 = vmatpush1.msra.mxu0 %v96
    %2392 = vmatprep.subr.mxu0 0.0
    %2393 = vmatpush1.msra.mxu0 %v97
    %2394 = vmatprep.subr.mxu0 0.0
    %2395 = vmatpush1.msra.mxu0 0.0
    %2396 = vmatprep.subr.mxu0 0.0
    %2397 = vmatpush1.msra.mxu0 0.0
    %2398 = vmatprep.subr.mxu0 0.0
    %2399 = vmatpush1.msra.mxu0 0.0
    %2400 = vmatprep.subr.mxu0 0.0
    %2401 = vmatpush1.msra.mxu0 0.0
    %2402 = vmatprep.subr.mxu0 0.0
    %2403 = vmatpush1.msra.mxu0 0.0
    %2404 = vmatprep.subr.mxu0 0.0
    %2405 = vmatpush1.msra.mxu0 0.0
    %2406 = vmatprep.subr.mxu0 0.0
    %2407 = vmatpush1.msra.mxu0 0.0
    %2408 = vmatprep.subr.mxu0 0.0
    %2409 = vmatpush1.msra.mxu0 0.0
    %2410 = vmatprep.subr.mxu0 0.0
    %2411 = vmatpush1.msra.mxu0 0.0
    %2412 = vmatprep.subr.mxu0 0.0
    %2413 = vmatpush1.msra.mxu0 0.0
    %2414 = vmatprep.subr.mxu0 0.0
    %2415 = vmatpush1.msra.mxu0 0.0
    %2416 = vmatprep.subr.mxu0 0.0
    %2417 = vmatpush1.msra.mxu0 0.0
    %2418 = vmatprep.subr.mxu0 0.0
    %2419 = vmatpush1.msra.mxu0 0.0
    %2420 = vmatprep.subr.mxu0 0.0
    %2421 = vmatpush1.msra.mxu0 0.0
    %2422 = vmatprep.subr.mxu0 0.0
    %2423 = vmatpush1.msra.mxu0 0.0
    %2424 = vmatprep.subr.mxu0 0.0
    %2425 = vmatpush1.msra.mxu0 0.0
    %2426 = vmatprep.subr.mxu0 0.0
    %2427 = vmatpush1.msra.mxu0 0.0
    %2428 = vmatprep.subr.mxu0 0.0
    %2429 = vmatpush1.msra.mxu0 0.0
    %2430 = vmatprep.subr.mxu0 0.0
    %2431 = vmatpush1.msra.mxu0 0.0
    %2432 = vmatprep.subr.mxu0 0.0
    %2433 = vmatpush1.msra.mxu0 0.0
    %2434 = vmatprep.subr.mxu0 0.0
    %2435 = vmatpush1.msra.mxu0 0.0
    %2436 = vmatprep.subr.mxu0 0.0
    %2437 = vmatpush1.msra.mxu0 0.0
    %2438 = vmatprep.subr.mxu0 0.0
    %2439 = vmatpush1.msra.mxu0 0.0
    %2440 = vmatprep.subr.mxu0 0.0
    %2441 = vmatpush1.msra.mxu0 0.0
    %2442 = vmatprep.subr.mxu0 0.0
    %2443 = vmatpush1.msra.mxu0 0.0
    %2444 = vmatprep.subr.mxu0 0.0
    %2445 = vmatpush1.msra.mxu0 0.0
    %2446 = vmatprep.subr.mxu0 0.0
    %2447 = vmatpush1.msra.mxu0 0.0
    %2448 = vmatprep.subr.mxu0 0.0
    %2449 = vmatpush1.msra.mxu0 0.0
    %2450 = vmatprep.subr.mxu0 0.0
    %2451 = vmatpush1.msra.mxu0 0.0
    %2452 = vmatprep.subr.mxu0 0.0
    %2453 = vmatpush1.msra.mxu0 0.0
    %2454 = vmatprep.mubr.f32.mxu0 0.0
    %2455 = vmatmul.mubr.f32.gmra.mrb[0].mxu0 %v2388
    %v2456 = vpop.f32.mrb[0].mxu0
    %v2457 = vadd.f32 %v2386, %v2456
    %v2458 = vpop.f32.mrb[0].mxu0
    %2459 = vdwg.mxu0
    %v2460 = vadd.f32 %v2457, %v885
    %v2461 = vmul.f32 %v2460, 0.909
    %v2462 = vsub.f32 0.0, %v2460
    %v2463 = vmul.f32 %v2462, 1.442695
    %v2464 = vpow.pop %v2463
    %v2465 = vadd.f32 %v2464, 1.0
    %v2466 = vrcp.pop %v2465
    %v2467 = vmul.f32 1.0, %v2466
    %v2468 = vmul.f32 %v2461, %v2467
    %v2470 = vsel %vm1012, %v2468, 0
    %2472 = vmatprep.subr.mxu0 0.0
    %2473 = vmatpush1.msra.mxu0 %v100
    %2474 = vmatprep.subr.mxu0 0.0
    %2475 = vmatpush1.msra.mxu0 %v101
    %2476 = vmatprep.subr.mxu0 0.0
    %2477 = vmatpush1.msra.mxu0 %v102
    %2478 = vmatprep.subr.mxu0 0.0
    %2479 = vmatpush1.msra.mxu0 %v103
    %2480 = vmatprep.subr.mxu0 0.0
    %2481 = vmatpush1.msra.mxu0 %v104
    %2482 = vmatprep.subr.mxu0 0.0
    %2483 = vmatpush1.msra.mxu0 %v105
    %2484 = vmatprep.subr.mxu0 0.0
    %2485 = vmatpush1.msra.mxu0 %v106
    %2486 = vmatprep.subr.mxu0 0.0
    %2487 = vmatpush1.msra.mxu0 %v107
    %2488 = vmatprep.subr.mxu0 0.0
    %2489 = vmatpush1.msra.mxu0 0.0
    %2490 = vmatprep.subr.mxu0 0.0
    %2491 = vmatpush1.msra.mxu0 0.0
    %2492 = vmatprep.subr.mxu0 0.0
    %2493 = vmatpush1.msra.mxu0 0.0
    %2494 = vmatprep.subr.mxu0 0.0
    %2495 = vmatpush1.msra.mxu0 0.0
    %2496 = vmatprep.subr.mxu0 0.0
    %2497 = vmatpush1.msra.mxu0 0.0
    %2498 = vmatprep.subr.mxu0 0.0
    %2499 = vmatpush1.msra.mxu0 0.0
    %2500 = vmatprep.subr.mxu0 0.0
    %2501 = vmatpush1.msra.mxu0 0.0
    %2502 = vmatprep.subr.mxu0 0.0
    %2503 = vmatpush1.msra.mxu0 0.0
    %2504 = vmatprep.subr.mxu0 0.0
    %2505 = vmatpush1.msra.mxu0 0.0
    %2506 = vmatprep.subr.mxu0 0.0
    %2507 = vmatpush1.msra.mxu0 0.0
    %2508 = vmatprep.subr.mxu0 0.0
    %2509 = vmatpush1.msra.mxu0 0.0
    %2510 = vmatprep.subr.mxu0 0.0
    %2511 = vmatpush1.msra.mxu0 0.0
    %2512 = vmatprep.subr.mxu0 0.0
    %2513 = vmatpush1.msra.mxu0 0.0
    %2514 = vmatprep.subr.mxu0 0.0
    %2515 = vmatpush1.msra.mxu0 0.0
    %2516 = vmatprep.subr.mxu0 0.0
    %2517 = vmatpush1.msra.mxu0 0.0
    %2518 = vmatprep.subr.mxu0 0.0
    %2519 = vmatpush1.msra.mxu0 0.0
    %2520 = vmatprep.subr.mxu0 0.0
    %2521 = vmatpush1.msra.mxu0 0.0
    %2522 = vmatprep.subr.mxu0 0.0
    %2523 = vmatpush1.msra.mxu0 0.0
    %2524 = vmatprep.subr.mxu0 0.0
    %2525 = vmatpush1.msra.mxu0 0.0
    %2526 = vmatprep.subr.mxu0 0.0
    %2527 = vmatpush1.msra.mxu0 0.0
    %2528 = vmatprep.subr.mxu0 0.0
    %2529 = vmatpush1.msra.mxu0 0.0
    %2530 = vmatprep.subr.mxu0 0.0
    %2531 = vmatpush1.msra.mxu0 0.0
    %2532 = vmatprep.subr.mxu0 0.0
    %2533 = vmatpush1.msra.mxu0 0.0
    %2534 = vmatprep.subr.mxu0 0.0
    %2535 = vmatpush1.msra.mxu0 0.0
    %2536 = vmatprep.mubr.f32.mxu0 0.0
    %2537 = vmatmul.mubr.f32.gmra.mrb[0].mxu0 %v2470
    %v2538 = vpop.f32.mrb[0].mxu0
    %v2539 = vadd.f32 %v1011, %v2538
    %v2540 = vpop.f32.mrb[0].mxu0
    %2541 = vdwg.mxu0
    %v2542 = vmul.f32 %v2539, 0.909
    %v2543 = vsub.f32 0.0, %v2539
    %v2544 = vmul.f32 %v2543, 1.442695
    %v2545 = vpow.pop %v2544
    %v2546 = vadd.f32 %v2545, 1.0
    %v2547 = vrcp.pop %v2546
    %v2548 = vmul.f32 1.0, %v2547
    %v2549 = vmul.f32 %v2542, %v2548
    %v2551 = vsel %vm1012, %v2549, 0
    %2553 = vmatprep.subr.mxu0 0.0
    %2554 = vmatpush1.msra.mxu0 %v109
    %2555 = vmatprep.subr.mxu0 0.0
    %2556 = vmatpush1.msra.mxu0 %v110
    %2557 = vmatprep.subr.mxu0 0.0
    %2558 = vmatpush1.msra.mxu0 %v111
    %2559 = vmatprep.subr.mxu0 0.0
    %2560 = vmatpush1.msra.mxu0 %v112
    %2561 = vmatprep.subr.mxu0 0.0
    %2562 = vmatpush1.msra.mxu0 %v113
    %2563 = vmatprep.subr.mxu0 0.0
    %2564 = vmatpush1.msra.mxu0 %v114
    %2565 = vmatprep.subr.mxu0 0.0
    %2566 = vmatpush1.msra.mxu0 %v115
    %2567 = vmatprep.subr.mxu0 0.0
    %2568 = vmatpush1.msra.mxu0 %v116
    %2569 = vmatprep.subr.mxu0 0.0
    %2570 = vmatpush1.msra.mxu0 0.0
    %2571 = vmatprep.subr.mxu0 0.0
    %2572 = vmatpush1.msra.mxu0 0.0
    %2573 = vmatprep.subr.mxu0 0.0
    %2574 = vmatpush1.msra.mxu0 0.0
    %2575 = vmatprep.subr.mxu0 0.0
    %2576 = vmatpush1.msra.mxu0 0.0
    %2577 = vmatprep.subr.mxu0 0.0
    %2578 = vmatpush1.msra.mxu0 0.0
    %2579 = vmatprep.subr.mxu0 0.0
    %2580 = vmatpush1.msra.mxu0 0.0
    %2581 = vmatprep.subr.mxu0 0.0
    %2582 = vmatpush1.msra.mxu0 0.0
    %2583 = vmatprep.subr.mxu0 0.0
    %2584 = vmatpush1.msra.mxu0 0.0
    %2585 = vmatprep.subr.mxu0 0.0
    %2586 = vmatpush1.msra.mxu0 0.0
    %2587 = vmatprep.subr.mxu0 0.0
    %2588 = vmatpush1.msra.mxu0 0.0
    %2589 = vmatprep.subr.mxu0 0.0
    %2590 = vmatpush1.msra.mxu0 0.0
    %2591 = vmatprep.subr.mxu0 0.0
    %2592 = vmatpush1.msra.mxu0 0.0
    %2593 = vmatprep.subr.mxu0 0.0
    %2594 = vmatpush1.msra.mxu0 0.0
    %2595 = vmatprep.subr.mxu0 0.0
    %2596 = vmatpush1.msra.mxu0 0.0
    %2597 = vmatprep.subr.mxu0 0.0
    %2598 = vmatpush1.msra.mxu0 0.0
    %2599 = vmatprep.subr.mxu0 0.0
    %2600 = vmatpush1.msra.mxu0 0.0
    %2601 = vmatprep.subr.mxu0 0.0
    %2602 = vmatpush1.msra.mxu0 0.0
    %2603 = vmatprep.subr.mxu0 0.0
    %2604 = vmatpush1.msra.mxu0 0.0
    %2605 = vmatprep.subr.mxu0 0.0
    %2606 = vmatpush1.msra.mxu0 0.0
    %2607 = vmatprep.subr.mxu0 0.0
    %2608 = vmatpush1.msra.mxu0 0.0
    %2609 = vmatprep.subr.mxu0 0.0
    %2610 = vmatpush1.msra.mxu0 0.0
    %2611 = vmatprep.subr.mxu0 0.0
    %2612 = vmatpush1.msra.mxu0 0.0
    %2613 = vmatprep.subr.mxu0 0.0
    %2614 = vmatpush1.msra.mxu0 0.0
    %2615 = vmatprep.subr.mxu0 0.0
    %2616 = vmatpush1.msra.mxu0 0.0
    %2617 = vmatprep.mubr.f32.mxu0 0.0
    %2618 = vmatmul.mubr.f32.gmra.mrb[0].mxu0 %v2551
    %v2619 = vpop.f32.mrb[0].mxu0
    %v2620 = vadd.f32 %v1097, %v2619
    %v2621 = vpop.f32.mrb[0].mxu0
    %2622 = vdwg.mxu0
    %v2623 = vtanh.pop %v2620
    %s2624 = smul.f32 %s2354, 0.5
    %v2625 = vadd.f32 %v2328, %v2623
    %v2626 = vstv %s2624
    %v2627 = vmul.f32 %v2626, %v2625
    %v2628 = vadd.f32 %v2349, %v2627
    %v2629 = vmul.f32 %v2625, %v2364
    %2631 = vrot.lane.b32.xlu0 %v2629, 112
    %v2632 = vpop.permute.xlu0 %2631
    %v2634 = vadd.f32 %v2629, %v2632
    %2635 = vrot.lane.b32.xlu0 %v2629, 96
    %v2636 = vpop.permute.xlu0 %2635
    %v2638 = vadd.f32 %v2634, %v2636
    %v2639 = vmul.f32 %v2638, 0.5
    %2641 = vrot.lane.b32.xlu0 %v2639, 112
    %v2642 = vpop.permute.xlu0 %2641
    %v2644 = vadd.f32 %v2628, %v2642
    %s2645 = scalar_lea.vmem [#allocation2], 20
    %2646 = vst.msk [vmem:[%s2645] sm:$0xf] %vm862, %v2644
    %s2647 = sld [smem:[#allocation3 + $0x6]]
    %s2648 = sld [smem:[#allocation3 + $0x5]]
    %s2649 = ssub.f32 %s2647, %s2648
    %s2650 = scalar_lea.vmem [#allocation6], 20
    %v2651 = vld [vmem:[%s2650] sm:$0xf]
    %v2652 = vmul.f32 %v2644, 2.0
    %v2653 = vsub.f32 %v2652, %v2380
    %v2654 = vstv %s2649
    %v2655 = vmul.f32 %v2623, %v2654
    %v2656 = vadd.f32 %v2653, %v2655
    %2658 = vrot.lane.b32.xlu0 %v2651, 16
    %v2659 = vpop.permute.xlu0 %2658
    %v2661 = vmul.f32 %v2623, %v2659
    %2663 = vrot.lane.b32.xlu0 %v2661, 112
    %v2664 = vpop.permute.xlu0 %2663
    %v2666 = vadd.f32 %v2661, %v2664
    %2667 = vrot.lane.b32.xlu0 %v2661, 96
    %v2668 = vpop.permute.xlu0 %2667
    %v2670 = vadd.f32 %v2666, %v2668
    %2672 = vrot.lane.b32.xlu0 %v2670, 112
    %v2673 = vpop.permute.xlu0 %2672
    %v2675 = vadd.f32 %v2656, %v2673
    %v2676 = vstv %s2647
    %v2677 = vmul.f32 %v2676, %v95
    %v2678 = vlaneseq
    %v2679 = vshrl.u32 %v2678, 7
    %v2680 = vsub.s32 0, %v2679
    %v2681 = vrot.slane %v2677, %v2680
    %v2683 = vsel %vm327, %v2675, 0
    %2685 = vmatprep.subr.mxu0 0.0
    %2686 = vmatpush1.msra.mxu0 %v96
    %2687 = vmatprep.subr.mxu0 0.0
    %2688 = vmatpush1.msra.mxu0 %v97
    %2689 = vmatprep.subr.mxu0 0.0
    %2690 = vmatpush1.msra.mxu0 0.0
    %2691 = vmatprep.subr.mxu0 0.0
    %2692 = vmatpush1.msra.mxu0 0.0
    %2693 = vmatprep.subr.mxu0 0.0
    %2694 = vmatpush1.msra.mxu0 0.0
    %2695 = vmatprep.subr.mxu0 0.0
    %2696 = vmatpush1.msra.mxu0 0.0
    %2697 = vmatprep.subr.mxu0 0.0
    %2698 = vmatpush1.msra.mxu0 0.0
    %2699 = vmatprep.subr.mxu0 0.0
    %2700 = vmatpush1.msra.mxu0 0.0
    %2701 = vmatprep.subr.mxu0 0.0
    %2702 = vmatpush1.msra.mxu0 0.0
    %2703 = vmatprep.subr.mxu0 0.0
    %2704 = vmatpush1.msra.mxu0 0.0
    %2705 = vmatprep.subr.mxu0 0.0
    %2706 = vmatpush1.msra.mxu0 0.0
    %2707 = vmatprep.subr.mxu0 0.0
    %2708 = vmatpush1.msra.mxu0 0.0
    %2709 = vmatprep.subr.mxu0 0.0
    %2710 = vmatpush1.msra.mxu0 0.0
    %2711 = vmatprep.subr.mxu0 0.0
    %2712 = vmatpush1.msra.mxu0 0.0
    %2713 = vmatprep.subr.mxu0 0.0
    %2714 = vmatpush1.msra.mxu0 0.0
    %2715 = vmatprep.subr.mxu0 0.0
    %2716 = vmatpush1.msra.mxu0 0.0
    %2717 = vmatprep.subr.mxu0 0.0
    %2718 = vmatpush1.msra.mxu0 0.0
    %2719 = vmatprep.subr.mxu0 0.0
    %2720 = vmatpush1.msra.mxu0 0.0
    %2721 = vmatprep.subr.mxu0 0.0
    %2722 = vmatpush1.msra.mxu0 0.0
    %2723 = vmatprep.subr.mxu0 0.0
    %2724 = vmatpush1.msra.mxu0 0.0
    %2725 = vmatprep.subr.mxu0 0.0
    %2726 = vmatpush1.msra.mxu0 0.0
    %2727 = vmatprep.subr.mxu0 0.0
    %2728 = vmatpush1.msra.mxu0 0.0
    %2729 = vmatprep.subr.mxu0 0.0
    %2730 = vmatpush1.msra.mxu0 0.0
    %2731 = vmatprep.subr.mxu0 0.0
    %2732 = vmatpush1.msra.mxu0 0.0
    %2733 = vmatprep.subr.mxu0 0.0
    %2734 = vmatpush1.msra.mxu0 0.0
    %2735 = vmatprep.subr.mxu0 0.0
    %2736 = vmatpush1.msra.mxu0 0.0
    %2737 = vmatprep.subr.mxu0 0.0
    %2738 = vmatpush1.msra.mxu0 0.0
    %2739 = vmatprep.subr.mxu0 0.0
    %2740 = vmatpush1.msra.mxu0 0.0
    %2741 = vmatprep.subr.mxu0 0.0
    %2742 = vmatpush1.msra.mxu0 0.0
    %2743 = vmatprep.subr.mxu0 0.0
    %2744 = vmatpush1.msra.mxu0 0.0
    %2745 = vmatprep.subr.mxu0 0.0
    %2746 = vmatpush1.msra.mxu0 0.0
    %2747 = vmatprep.subr.mxu0 0.0
    %2748 = vmatpush1.msra.mxu0 0.0
    %2749 = vmatprep.mubr.f32.mxu0 0.0
    %2750 = vmatmul.mubr.f32.gmra.mrb[0].mxu0 %v2683
    %v2751 = vpop.f32.mrb[0].mxu0
    %v2752 = vadd.f32 %v2681, %v2751
    %v2753 = vpop.f32.mrb[0].mxu0
    %2754 = vdwg.mxu0
    %v2755 = vadd.f32 %v2752, %v885
    %v2756 = vmul.f32 %v2755, 0.909
    %v2757 = vsub.f32 0.0, %v2755
    %v2758 = vmul.f32 %v2757, 1.442695
    %v2759 = vpow.pop %v2758
    %v2760 = vadd.f32 %v2759, 1.0
    %v2761 = vrcp.pop %v2760
    %v2762 = vmul.f32 1.0, %v2761
    %v2763 = vmul.f32 %v2756, %v2762
    %v2765 = vsel %vm1012, %v2763, 0
    %2767 = vmatprep.subr.mxu0 0.0
    %2768 = vmatpush1.msra.mxu0 %v100
    %2769 = vmatprep.subr.mxu0 0.0
    %2770 = vmatpush1.msra.mxu0 %v101
    %2771 = vmatprep.subr.mxu0 0.0
    %2772 = vmatpush1.msra.mxu0 %v102
    %2773 = vmatprep.subr.mxu0 0.0
    %2774 = vmatpush1.msra.mxu0 %v103
    %2775 = vmatprep.subr.mxu0 0.0
    %2776 = vmatpush1.msra.mxu0 %v104
    %2777 = vmatprep.subr.mxu0 0.0
    %2778 = vmatpush1.msra.mxu0 %v105
    %2779 = vmatprep.subr.mxu0 0.0
    %2780 = vmatpush1.msra.mxu0 %v106
    %2781 = vmatprep.subr.mxu0 0.0
    %2782 = vmatpush1.msra.mxu0 %v107
    %2783 = vmatprep.subr.mxu0 0.0
    %2784 = vmatpush1.msra.mxu0 0.0
    %2785 = vmatprep.subr.mxu0 0.0
    %2786 = vmatpush1.msra.mxu0 0.0
    %2787 = vmatprep.subr.mxu0 0.0
    %2788 = vmatpush1.msra.mxu0 0.0
    %2789 = vmatprep.subr.mxu0 0.0
    %2790 = vmatpush1.msra.mxu0 0.0
    %2791 = vmatprep.subr.mxu0 0.0
    %2792 = vmatpush1.msra.mxu0 0.0
    %2793 = vmatprep.subr.mxu0 0.0
    %2794 = vmatpush1.msra.mxu0 0.0
    %2795 = vmatprep.subr.mxu0 0.0
    %2796 = vmatpush1.msra.mxu0 0.0
    %2797 = vmatprep.subr.mxu0 0.0
    %2798 = vmatpush1.msra.mxu0 0.0
    %2799 = vmatprep.subr.mxu0 0.0
    %2800 = vmatpush1.msra.mxu0 0.0
    %2801 = vmatprep.subr.mxu0 0.0
    %2802 = vmatpush1.msra.mxu0 0.0
    %2803 = vmatprep.subr.mxu0 0.0
    %2804 = vmatpush1.msra.mxu0 0.0
    %2805 = vmatprep.subr.mxu0 0.0
    %2806 = vmatpush1.msra.mxu0 0.0
    %2807 = vmatprep.subr.mxu0 0.0
    %2808 = vmatpush1.msra.mxu0 0.0
    %2809 = vmatprep.subr.mxu0 0.0
    %2810 = vmatpush1.msra.mxu0 0.0
    %2811 = vmatprep.subr.mxu0 0.0
    %2812 = vmatpush1.msra.mxu0 0.0
    %2813 = vmatprep.subr.mxu0 0.0
    %2814 = vmatpush1.msra.mxu0 0.0
    %2815 = vmatprep.subr.mxu0 0.0
    %2816 = vmatpush1.msra.mxu0 0.0
    %2817 = vmatprep.subr.mxu0 0.0
    %2818 = vmatpush1.msra.mxu0 0.0
    %2819 = vmatprep.subr.mxu0 0.0
    %2820 = vmatpush1.msra.mxu0 0.0
    %2821 = vmatprep.subr.mxu0 0.0
    %2822 = vmatpush1.msra.mxu0 0.0
    %2823 = vmatprep.subr.mxu0 0.0
    %2824 = vmatpush1.msra.mxu0 0.0
    %2825 = vmatprep.subr.mxu0 0.0
    %2826 = vmatpush1.msra.mxu0 0.0
    %2827 = vmatprep.subr.mxu0 0.0
    %2828 = vmatpush1.msra.mxu0 0.0
    %2829 = vmatprep.subr.mxu0 0.0
    %2830 = vmatpush1.msra.mxu0 0.0
    %2831 = vmatprep.mubr.f32.mxu0 0.0
    %2832 = vmatmul.mubr.f32.gmra.mrb[0].mxu0 %v2765
    %v2833 = vpop.f32.mrb[0].mxu0
    %v2834 = vadd.f32 %v1011, %v2833
    %v2835 = vpop.f32.mrb[0].mxu0
    %2836 = vdwg.mxu0
    %v2837 = vmul.f32 %v2834, 0.909
    %v2838 = vsub.f32 0.0, %v2834
    %v2839 = vmul.f32 %v2838, 1.442695
    %v2840 = vpow.pop %v2839
    %v2841 = vadd.f32 %v2840, 1.0
    %v2842 = vrcp.pop %v2841
    %v2843 = vmul.f32 1.0, %v2842
    %v2844 = vmul.f32 %v2837, %v2843
    %v2846 = vsel %vm1012, %v2844, 0
    %2848 = vmatprep.subr.mxu0 0.0
    %2849 = vmatpush1.msra.mxu0 %v109
    %2850 = vmatprep.subr.mxu0 0.0
    %2851 = vmatpush1.msra.mxu0 %v110
    %2852 = vmatprep.subr.mxu0 0.0
    %2853 = vmatpush1.msra.mxu0 %v111
    %2854 = vmatprep.subr.mxu0 0.0
    %2855 = vmatpush1.msra.mxu0 %v112
    %2856 = vmatprep.subr.mxu0 0.0
    %2857 = vmatpush1.msra.mxu0 %v113
    %2858 = vmatprep.subr.mxu0 0.0
    %2859 = vmatpush1.msra.mxu0 %v114
    %2860 = vmatprep.subr.mxu0 0.0
    %2861 = vmatpush1.msra.mxu0 %v115
    %2862 = vmatprep.subr.mxu0 0.0
    %2863 = vmatpush1.msra.mxu0 %v116
    %2864 = vmatprep.subr.mxu0 0.0
    %2865 = vmatpush1.msra.mxu0 0.0
    %2866 = vmatprep.subr.mxu0 0.0
    %2867 = vmatpush1.msra.mxu0 0.0
    %2868 = vmatprep.subr.mxu0 0.0
    %2869 = vmatpush1.msra.mxu0 0.0
    %2870 = vmatprep.subr.mxu0 0.0
    %2871 = vmatpush1.msra.mxu0 0.0
    %2872 = vmatprep.subr.mxu0 0.0
    %2873 = vmatpush1.msra.mxu0 0.0
    %2874 = vmatprep.subr.mxu0 0.0
    %2875 = vmatpush1.msra.mxu0 0.0
    %2876 = vmatprep.subr.mxu0 0.0
    %2877 = vmatpush1.msra.mxu0 0.0
    %2878 = vmatprep.subr.mxu0 0.0
    %2879 = vmatpush1.msra.mxu0 0.0
    %2880 = vmatprep.subr.mxu0 0.0
    %2881 = vmatpush1.msra.mxu0 0.0
    %2882 = vmatprep.subr.mxu0 0.0
    %2883 = vmatpush1.msra.mxu0 0.0
    %2884 = vmatprep.subr.mxu0 0.0
    %2885 = vmatpush1.msra.mxu0 0.0
    %2886 = vmatprep.subr.mxu0 0.0
    %2887 = vmatpush1.msra.mxu0 0.0
    %2888 = vmatprep.subr.mxu0 0.0
    %2889 = vmatpush1.msra.mxu0 0.0
    %2890 = vmatprep.subr.mxu0 0.0
    %2891 = vmatpush1.msra.mxu0 0.0
    %2892 = vmatprep.subr.mxu0 0.0
    %2893 = vmatpush1.msra.mxu0 0.0
    %2894 = vmatprep.subr.mxu0 0.0
    %2895 = vmatpush1.msra.mxu0 0.0
    %2896 = vmatprep.subr.mxu0 0.0
    %2897 = vmatpush1.msra.mxu0 0.0
    %2898 = vmatprep.subr.mxu0 0.0
    %2899 = vmatpush1.msra.mxu0 0.0
    %2900 = vmatprep.subr.mxu0 0.0
    %2901 = vmatpush1.msra.mxu0 0.0
    %2902 = vmatprep.subr.mxu0 0.0
    %2903 = vmatpush1.msra.mxu0 0.0
    %2904 = vmatprep.subr.mxu0 0.0
    %2905 = vmatpush1.msra.mxu0 0.0
    %2906 = vmatprep.subr.mxu0 0.0
    %2907 = vmatpush1.msra.mxu0 0.0
    %2908 = vmatprep.subr.mxu0 0.0
    %2909 = vmatpush1.msra.mxu0 0.0
    %2910 = vmatprep.subr.mxu0 0.0
    %2911 = vmatpush1.msra.mxu0 0.0
    %2912 = vmatprep.mubr.f32.mxu0 0.0
    %2913 = vmatmul.mubr.f32.gmra.mrb[0].mxu0 %v2846
    %v2914 = vpop.f32.mrb[0].mxu0
    %v2915 = vadd.f32 %v1097, %v2914
    %v2916 = vpop.f32.mrb[0].mxu0
    %2917 = vdwg.mxu0
    %v2918 = vtanh.pop %v2915
    %s2919 = smul.f32 %s2649, 0.5
    %v2920 = vadd.f32 %v2623, %v2918
    %v2921 = vstv %s2919
    %v2922 = vmul.f32 %v2921, %v2920
    %v2923 = vadd.f32 %v2644, %v2922
    %v2924 = vmul.f32 %v2920, %v2659
    %2926 = vrot.lane.b32.xlu0 %v2924, 112
    %v2927 = vpop.permute.xlu0 %2926
    %v2929 = vadd.f32 %v2924, %v2927
    %2930 = vrot.lane.b32.xlu0 %v2924, 96
    %v2931 = vpop.permute.xlu0 %2930
    %v2933 = vadd.f32 %v2929, %v2931
    %v2934 = vmul.f32 %v2933, 0.5
    %2936 = vrot.lane.b32.xlu0 %v2934, 112
    %v2937 = vpop.permute.xlu0 %2936
    %v2939 = vadd.f32 %v2923, %v2937
    %s2940 = scalar_lea.vmem [#allocation2], 24
    %2941 = vst.msk [vmem:[%s2940] sm:$0xf] %vm862, %v2939
    %s2942 = sld [smem:[#allocation3 + $0x7]]
    %s2943 = sld [smem:[#allocation3 + $0x6]]
    %s2944 = ssub.f32 %s2942, %s2943
    %s2945 = scalar_lea.vmem [#allocation6], 24
    %v2946 = vld [vmem:[%s2945] sm:$0xf]
    %v2947 = vmul.f32 %v2939, 2.0
    %v2948 = vsub.f32 %v2947, %v2675
    %v2949 = vstv %s2944
    %v2950 = vmul.f32 %v2918, %v2949
    %v2951 = vadd.f32 %v2948, %v2950
    %2953 = vrot.lane.b32.xlu0 %v2946, 16
    %v2954 = vpop.permute.xlu0 %2953
    %v2956 = vmul.f32 %v2918, %v2954
    %2958 = vrot.lane.b32.xlu0 %v2956, 112
    %v2959 = vpop.permute.xlu0 %2958
    %v2961 = vadd.f32 %v2956, %v2959
    %2962 = vrot.lane.b32.xlu0 %v2956, 96
    %v2963 = vpop.permute.xlu0 %2962
    %v2965 = vadd.f32 %v2961, %v2963
    %2967 = vrot.lane.b32.xlu0 %v2965, 112
    %v2968 = vpop.permute.xlu0 %2967
    %v2970 = vadd.f32 %v2951, %v2968
    %v2971 = vstv %s2942
    %v2972 = vmul.f32 %v2971, %v95
    %v2973 = vlaneseq
    %v2974 = vshrl.u32 %v2973, 7
    %v2975 = vsub.s32 0, %v2974
    %v2976 = vrot.slane %v2972, %v2975
    %v2978 = vsel %vm327, %v2970, 0
    %2980 = vmatprep.subr.mxu0 0.0
    %2981 = vmatpush1.msra.mxu0 %v96
    %2982 = vmatprep.subr.mxu0 0.0
    %2983 = vmatpush1.msra.mxu0 %v97
    %2984 = vmatprep.subr.mxu0 0.0
    %2985 = vmatpush1.msra.mxu0 0.0
    %2986 = vmatprep.subr.mxu0 0.0
    %2987 = vmatpush1.msra.mxu0 0.0
    %2988 = vmatprep.subr.mxu0 0.0
    %2989 = vmatpush1.msra.mxu0 0.0
    %2990 = vmatprep.subr.mxu0 0.0
    %2991 = vmatpush1.msra.mxu0 0.0
    %2992 = vmatprep.subr.mxu0 0.0
    %2993 = vmatpush1.msra.mxu0 0.0
    %2994 = vmatprep.subr.mxu0 0.0
    %2995 = vmatpush1.msra.mxu0 0.0
    %2996 = vmatprep.subr.mxu0 0.0
    %2997 = vmatpush1.msra.mxu0 0.0
    %2998 = vmatprep.subr.mxu0 0.0
    %2999 = vmatpush1.msra.mxu0 0.0
    %3000 = vmatprep.subr.mxu0 0.0
    %3001 = vmatpush1.msra.mxu0 0.0
    %3002 = vmatprep.subr.mxu0 0.0
    %3003 = vmatpush1.msra.mxu0 0.0
    %3004 = vmatprep.subr.mxu0 0.0
    %3005 = vmatpush1.msra.mxu0 0.0
    %3006 = vmatprep.subr.mxu0 0.0
    %3007 = vmatpush1.msra.mxu0 0.0
    %3008 = vmatprep.subr.mxu0 0.0
    %3009 = vmatpush1.msra.mxu0 0.0
    %3010 = vmatprep.subr.mxu0 0.0
    %3011 = vmatpush1.msra.mxu0 0.0
    %3012 = vmatprep.subr.mxu0 0.0
    %3013 = vmatpush1.msra.mxu0 0.0
    %3014 = vmatprep.subr.mxu0 0.0
    %3015 = vmatpush1.msra.mxu0 0.0
    %3016 = vmatprep.subr.mxu0 0.0
    %3017 = vmatpush1.msra.mxu0 0.0
    %3018 = vmatprep.subr.mxu0 0.0
    %3019 = vmatpush1.msra.mxu0 0.0
    %3020 = vmatprep.subr.mxu0 0.0
    %3021 = vmatpush1.msra.mxu0 0.0
    %3022 = vmatprep.subr.mxu0 0.0
    %3023 = vmatpush1.msra.mxu0 0.0
    %3024 = vmatprep.subr.mxu0 0.0
    %3025 = vmatpush1.msra.mxu0 0.0
    %3026 = vmatprep.subr.mxu0 0.0
    %3027 = vmatpush1.msra.mxu0 0.0
    %3028 = vmatprep.subr.mxu0 0.0
    %3029 = vmatpush1.msra.mxu0 0.0
    %3030 = vmatprep.subr.mxu0 0.0
    %3031 = vmatpush1.msra.mxu0 0.0
    %3032 = vmatprep.subr.mxu0 0.0
    %3033 = vmatpush1.msra.mxu0 0.0
    %3034 = vmatprep.subr.mxu0 0.0
    %3035 = vmatpush1.msra.mxu0 0.0
    %3036 = vmatprep.subr.mxu0 0.0
    %3037 = vmatpush1.msra.mxu0 0.0
    %3038 = vmatprep.subr.mxu0 0.0
    %3039 = vmatpush1.msra.mxu0 0.0
    %3040 = vmatprep.subr.mxu0 0.0
    %3041 = vmatpush1.msra.mxu0 0.0
    %3042 = vmatprep.subr.mxu0 0.0
    %3043 = vmatpush1.msra.mxu0 0.0
    %3044 = vmatprep.mubr.f32.mxu0 0.0
    %3045 = vmatmul.mubr.f32.gmra.mrb[0].mxu0 %v2978
    %v3046 = vpop.f32.mrb[0].mxu0
    %v3047 = vadd.f32 %v2976, %v3046
    %v3048 = vpop.f32.mrb[0].mxu0
    %3049 = vdwg.mxu0
    %v3050 = vadd.f32 %v3047, %v885
    %v3051 = vmul.f32 %v3050, 0.909
    %v3052 = vsub.f32 0.0, %v3050
    %v3053 = vmul.f32 %v3052, 1.442695
    %v3054 = vpow.pop %v3053
    %v3055 = vadd.f32 %v3054, 1.0
    %v3056 = vrcp.pop %v3055
    %v3057 = vmul.f32 1.0, %v3056
    %v3058 = vmul.f32 %v3051, %v3057
    %v3060 = vsel %vm1012, %v3058, 0
    %3062 = vmatprep.subr.mxu0 0.0
    %3063 = vmatpush1.msra.mxu0 %v100
    %3064 = vmatprep.subr.mxu0 0.0
    %3065 = vmatpush1.msra.mxu0 %v101
    %3066 = vmatprep.subr.mxu0 0.0
    %3067 = vmatpush1.msra.mxu0 %v102
    %3068 = vmatprep.subr.mxu0 0.0
    %3069 = vmatpush1.msra.mxu0 %v103
    %3070 = vmatprep.subr.mxu0 0.0
    %3071 = vmatpush1.msra.mxu0 %v104
    %3072 = vmatprep.subr.mxu0 0.0
    %3073 = vmatpush1.msra.mxu0 %v105
    %3074 = vmatprep.subr.mxu0 0.0
    %3075 = vmatpush1.msra.mxu0 %v106
    %3076 = vmatprep.subr.mxu0 0.0
    %3077 = vmatpush1.msra.mxu0 %v107
    %3078 = vmatprep.subr.mxu0 0.0
    %3079 = vmatpush1.msra.mxu0 0.0
    %3080 = vmatprep.subr.mxu0 0.0
    %3081 = vmatpush1.msra.mxu0 0.0
    %3082 = vmatprep.subr.mxu0 0.0
    %3083 = vmatpush1.msra.mxu0 0.0
    %3084 = vmatprep.subr.mxu0 0.0
    %3085 = vmatpush1.msra.mxu0 0.0
    %3086 = vmatprep.subr.mxu0 0.0
    %3087 = vmatpush1.msra.mxu0 0.0
    %3088 = vmatprep.subr.mxu0 0.0
    %3089 = vmatpush1.msra.mxu0 0.0
    %3090 = vmatprep.subr.mxu0 0.0
    %3091 = vmatpush1.msra.mxu0 0.0
    %3092 = vmatprep.subr.mxu0 0.0
    %3093 = vmatpush1.msra.mxu0 0.0
    %3094 = vmatprep.subr.mxu0 0.0
    %3095 = vmatpush1.msra.mxu0 0.0
    %3096 = vmatprep.subr.mxu0 0.0
    %3097 = vmatpush1.msra.mxu0 0.0
    %3098 = vmatprep.subr.mxu0 0.0
    %3099 = vmatpush1.msra.mxu0 0.0
    %3100 = vmatprep.subr.mxu0 0.0
    %3101 = vmatpush1.msra.mxu0 0.0
    %3102 = vmatprep.subr.mxu0 0.0
    %3103 = vmatpush1.msra.mxu0 0.0
    %3104 = vmatprep.subr.mxu0 0.0
    %3105 = vmatpush1.msra.mxu0 0.0
    %3106 = vmatprep.subr.mxu0 0.0
    %3107 = vmatpush1.msra.mxu0 0.0
    %3108 = vmatprep.subr.mxu0 0.0
    %3109 = vmatpush1.msra.mxu0 0.0
    %3110 = vmatprep.subr.mxu0 0.0
    %3111 = vmatpush1.msra.mxu0 0.0
    %3112 = vmatprep.subr.mxu0 0.0
    %3113 = vmatpush1.msra.mxu0 0.0
    %3114 = vmatprep.subr.mxu0 0.0
    %3115 = vmatpush1.msra.mxu0 0.0
    %3116 = vmatprep.subr.mxu0 0.0
    %3117 = vmatpush1.msra.mxu0 0.0
    %3118 = vmatprep.subr.mxu0 0.0
    %3119 = vmatpush1.msra.mxu0 0.0
    %3120 = vmatprep.subr.mxu0 0.0
    %3121 = vmatpush1.msra.mxu0 0.0
    %3122 = vmatprep.subr.mxu0 0.0
    %3123 = vmatpush1.msra.mxu0 0.0
    %3124 = vmatprep.subr.mxu0 0.0
    %3125 = vmatpush1.msra.mxu0 0.0
    %3126 = vmatprep.mubr.f32.mxu0 0.0
    %3127 = vmatmul.mubr.f32.gmra.mrb[0].mxu0 %v3060
    %v3128 = vpop.f32.mrb[0].mxu0
    %v3129 = vadd.f32 %v1011, %v3128
    %v3130 = vpop.f32.mrb[0].mxu0
    %3131 = vdwg.mxu0
    %v3132 = vmul.f32 %v3129, 0.909
    %v3133 = vsub.f32 0.0, %v3129
    %v3134 = vmul.f32 %v3133, 1.442695
    %v3135 = vpow.pop %v3134
    %v3136 = vadd.f32 %v3135, 1.0
    %v3137 = vrcp.pop %v3136
    %v3138 = vmul.f32 1.0, %v3137
    %v3139 = vmul.f32 %v3132, %v3138
    %v3141 = vsel %vm1012, %v3139, 0
    %3143 = vmatprep.subr.mxu0 0.0
    %3144 = vmatpush1.msra.mxu0 %v109
    %3145 = vmatprep.subr.mxu0 0.0
    %3146 = vmatpush1.msra.mxu0 %v110
    %3147 = vmatprep.subr.mxu0 0.0
    %3148 = vmatpush1.msra.mxu0 %v111
    %3149 = vmatprep.subr.mxu0 0.0
    %3150 = vmatpush1.msra.mxu0 %v112
    %3151 = vmatprep.subr.mxu0 0.0
    %3152 = vmatpush1.msra.mxu0 %v113
    %3153 = vmatprep.subr.mxu0 0.0
    %3154 = vmatpush1.msra.mxu0 %v114
    %3155 = vmatprep.subr.mxu0 0.0
    %3156 = vmatpush1.msra.mxu0 %v115
    %3157 = vmatprep.subr.mxu0 0.0
    %3158 = vmatpush1.msra.mxu0 %v116
    %3159 = vmatprep.subr.mxu0 0.0
    %3160 = vmatpush1.msra.mxu0 0.0
    %3161 = vmatprep.subr.mxu0 0.0
    %3162 = vmatpush1.msra.mxu0 0.0
    %3163 = vmatprep.subr.mxu0 0.0
    %3164 = vmatpush1.msra.mxu0 0.0
    %3165 = vmatprep.subr.mxu0 0.0
    %3166 = vmatpush1.msra.mxu0 0.0
    %3167 = vmatprep.subr.mxu0 0.0
    %3168 = vmatpush1.msra.mxu0 0.0
    %3169 = vmatprep.subr.mxu0 0.0
    %3170 = vmatpush1.msra.mxu0 0.0
    %3171 = vmatprep.subr.mxu0 0.0
    %3172 = vmatpush1.msra.mxu0 0.0
    %3173 = vmatprep.subr.mxu0 0.0
    %3174 = vmatpush1.msra.mxu0 0.0
    %3175 = vmatprep.subr.mxu0 0.0
    %3176 = vmatpush1.msra.mxu0 0.0
    %3177 = vmatprep.subr.mxu0 0.0
    %3178 = vmatpush1.msra.mxu0 0.0
    %3179 = vmatprep.subr.mxu0 0.0
    %3180 = vmatpush1.msra.mxu0 0.0
    %3181 = vmatprep.subr.mxu0 0.0
    %3182 = vmatpush1.msra.mxu0 0.0
    %3183 = vmatprep.subr.mxu0 0.0
    %3184 = vmatpush1.msra.mxu0 0.0
    %3185 = vmatprep.subr.mxu0 0.0
    %3186 = vmatpush1.msra.mxu0 0.0
    %3187 = vmatprep.subr.mxu0 0.0
    %3188 = vmatpush1.msra.mxu0 0.0
    %3189 = vmatprep.subr.mxu0 0.0
    %3190 = vmatpush1.msra.mxu0 0.0
    %3191 = vmatprep.subr.mxu0 0.0
    %3192 = vmatpush1.msra.mxu0 0.0
    %3193 = vmatprep.subr.mxu0 0.0
    %3194 = vmatpush1.msra.mxu0 0.0
    %3195 = vmatprep.subr.mxu0 0.0
    %3196 = vmatpush1.msra.mxu0 0.0
    %3197 = vmatprep.subr.mxu0 0.0
    %3198 = vmatpush1.msra.mxu0 0.0
    %3199 = vmatprep.subr.mxu0 0.0
    %3200 = vmatpush1.msra.mxu0 0.0
    %3201 = vmatprep.subr.mxu0 0.0
    %3202 = vmatpush1.msra.mxu0 0.0
    %3203 = vmatprep.subr.mxu0 0.0
    %3204 = vmatpush1.msra.mxu0 0.0
    %3205 = vmatprep.subr.mxu0 0.0
    %3206 = vmatpush1.msra.mxu0 0.0
    %3207 = vmatprep.mubr.f32.mxu0 0.0
    %3208 = vmatmul.mubr.f32.gmra.mrb[0].mxu0 %v3141
    %v3209 = vpop.f32.mrb[0].mxu0
    %v3210 = vadd.f32 %v1097, %v3209
    %v3211 = vpop.f32.mrb[0].mxu0
    %3212 = vdwg.mxu0
    %v3213 = vtanh.pop %v3210
    %s3214 = smul.f32 %s2944, 0.5
    %v3215 = vadd.f32 %v2918, %v3213
    %v3216 = vstv %s3214
    %v3217 = vmul.f32 %v3216, %v3215
    %v3218 = vadd.f32 %v2939, %v3217
    %v3219 = vmul.f32 %v3215, %v2954
    %3221 = vrot.lane.b32.xlu0 %v3219, 112
    %v3222 = vpop.permute.xlu0 %3221
    %v3224 = vadd.f32 %v3219, %v3222
    %3225 = vrot.lane.b32.xlu0 %v3219, 96
    %v3226 = vpop.permute.xlu0 %3225
    %v3228 = vadd.f32 %v3224, %v3226
    %v3229 = vmul.f32 %v3228, 0.5
    %3231 = vrot.lane.b32.xlu0 %v3229, 112
    %v3232 = vpop.permute.xlu0 %3231
    %v3234 = vadd.f32 %v3218, %v3232
    %s3235 = scalar_lea.vmem [#allocation2], 28
    %3236 = vst.msk [vmem:[%s3235] sm:$0xf] %vm862, %v3234
    %v3237 = vld [vmem:[#allocation2] sm:$0xf]
    %v3238 = vld [vmem:[#allocation2 + $0x4] sm:$0xf]
    %v3239 = vld [vmem:[#allocation2 + $0x8] sm:$0xf]
    %v3240 = vld [vmem:[#allocation2 + $0xc] sm:$0xf]
    %v3241 = vld [vmem:[#allocation2 + $0x10] sm:$0xf]
    %v3242 = vld [vmem:[#allocation2 + $0x14] sm:$0xf]
    %v3243 = vld [vmem:[#allocation2 + $0x18] sm:$0xf]
    %v3244 = vld [vmem:[#allocation2 + $0x1c] sm:$0xf]
    %v3245 = vlaneseq
    %v3246 = vshrl.u32 %v3245, 7
    %v3247 = vsub.s32 0, %v3246
    %v3248 = vrot.slane %v121, %v3247
    %v3249 = vmul.f32 %v3237, %v3248
    %v3250 = vmul.f32 %v3238, %v3248
    %v3251 = vmul.f32 %v3239, %v3248
    %v3252 = vmul.f32 %v3240, %v3248
    %v3253 = vmul.f32 %v3241, %v3248
    %v3254 = vmul.f32 %v3242, %v3248
    %v3255 = vmul.f32 %v3243, %v3248
    %v3256 = vmul.f32 %v3244, %v3248
    %3258 = vset.pattern.permute.xlu0 0
    %3259 = vperm.xlu0 %3258, %v896
    %v3260 = vpop.permute.xlu0 %3259
    %v3262 = vadd.f32 %v3249, %v3260
    %v3263 = vadd.f32 %v3250, %v3260
    %v3264 = vadd.f32 %v3251, %v3260
    %v3265 = vadd.f32 %v3252, %v3260
    %v3266 = vadd.f32 %v3253, %v3260
    %v3267 = vadd.f32 %v3254, %v3260
    %v3268 = vadd.f32 %v3255, %v3260
    %v3269 = vadd.f32 %v3256, %v3260
    %v3270 = vsel %vm862, %v3262, 0.0
    %3271 = vadd.xlane.f32.xlu0 %v3270
    %v3272 = vpop.xlane.xlu0 %3271
    %v3273 = vsel %vm862, %v3263, 0.0
    %3274 = vadd.xlane.f32.xlu0 %v3273
    %v3275 = vpop.xlane.xlu0 %3274
    %v3276 = vsel %vm862, %v3264, 0.0
    %3277 = vadd.xlane.f32.xlu0 %v3276
    %v3278 = vpop.xlane.xlu0 %3277
    %v3279 = vsel %vm862, %v3265, 0.0
    %3280 = vadd.xlane.f32.xlu0 %v3279
    %v3281 = vpop.xlane.xlu0 %3280
    %v3282 = vsel %vm862, %v3266, 0.0
    %3283 = vadd.xlane.f32.xlu0 %v3282
    %v3284 = vpop.xlane.xlu0 %3283
    %v3285 = vsel %vm862, %v3267, 0.0
    %3286 = vadd.xlane.f32.xlu0 %v3285
    %v3287 = vpop.xlane.xlu0 %3286
    %v3288 = vsel %vm862, %v3268, 0.0
    %3289 = vadd.xlane.f32.xlu0 %v3288
    %v3290 = vpop.xlane.xlu0 %3289
    %v3291 = vsel %vm862, %v3269, 0.0
    %3292 = vadd.xlane.f32.xlu0 %v3291
    %v3293 = vpop.xlane.xlu0 %3292
    %v3302 = vlaneseq
    %v3303 = vand.u32 %v3302, 127
    %v3304 = vlaneseq
    %v3305 = vshrl.u32 %v3304, 7
    %v3306 = vsub.s32 %v3303, %v3305
    %v3307 = vrot.slane %v3272, %v3306
    %v3308 = vlaneseq
    %v3309 = vshrl.u32 %v3308, 7
    %v3310 = vsub.s32 %v3303, %v3309
    %v3311 = vrot.slane %v3275, %v3310
    %v3312 = vlaneseq
    %v3313 = vshrl.u32 %v3312, 7
    %v3314 = vsub.s32 %v3303, %v3313
    %v3315 = vrot.slane %v3278, %v3314
    %v3316 = vlaneseq
    %v3317 = vshrl.u32 %v3316, 7
    %v3318 = vsub.s32 %v3303, %v3317
    %v3319 = vrot.slane %v3281, %v3318
    %v3320 = vlaneseq
    %v3321 = vshrl.u32 %v3320, 7
    %v3322 = vsub.s32 %v3303, %v3321
    %v3323 = vrot.slane %v3284, %v3322
    %v3324 = vlaneseq
    %v3325 = vshrl.u32 %v3324, 7
    %v3326 = vsub.s32 %v3303, %v3325
    %v3327 = vrot.slane %v3287, %v3326
    %v3328 = vlaneseq
    %v3329 = vshrl.u32 %v3328, 7
    %v3330 = vsub.s32 %v3303, %v3329
    %v3331 = vrot.slane %v3290, %v3330
    %v3332 = vlaneseq
    %v3333 = vshrl.u32 %v3332, 7
    %v3334 = vsub.s32 %v3303, %v3333
    %v3335 = vrot.slane %v3293, %v3334
    %vm3336 = vcmask 1041409
    %v3337 = vsel %vm3336, %v3311, %v3307
    %vm3338 = vcmask 1042434
    %v3339 = vsel %vm3338, %v3315, %v3337
    %vm3340 = vcmask 1043459
    %v3341 = vsel %vm3340, %v3319, %v3339
    %vm3342 = vcmask 1044484
    %v3343 = vsel %vm3342, %v3323, %v3341
    %vm3344 = vcmask 1045509
    %v3345 = vsel %vm3344, %v3327, %v3343
    %vm3346 = vcmask 1046534
    %v3347 = vsel %vm3346, %v3331, %v3345
    %vm3348 = vcmask 1047559
    %v3349 = vsel %vm3348, %v3335, %v3347
    %vm3351 = vcmask 31744
    %3352 = vst.msk [vmem:[%s7] sm:$0xff] %vm3351, %v3349
    // Predicated region
    $region42: #{tpu_custom_call.1} parent=1 // pred_check
      _
    $region43: #{tpu_custom_call.1} parent=1 // pred_check_branch
      %3354 = sbr.rel (0) target = $region45
    $region44: #{tpu_custom_call.1} parent=1 // pred_region
      _
    $region45: #{tpu_custom_call.1} parent=1 // pred_fallthru
      _
    // Predicated region
    $region46: #{tpu_custom_call.1} parent=1 // pred_check
      _
    $region47: #{tpu_custom_call.1} parent=1 // pred_check_branch
      %3356 = sbr.rel (0) target = $region49
    $region48: #{tpu_custom_call.1} parent=1 // pred_region
      _
    $region49: #{tpu_custom_call.1} parent=1 // pred_fallthru
      _
    %3357 = vsyncpa [#allocation4], 1
    %3358 = vsyncpa [#allocation8], 1
    %3359 = vsyncpa [#allocation5], 1

</llo_original>
